<compile_context>
chip_gen: v5e
topology: v5e:2x2
jax: 0.10.0
libtpu: 0.0.40
codegen_flags: <defaults>
</compile_context>

<pallas_src>
import functools

import jax
import jax.numpy as jnp
from jax import lax
from jax.experimental import pallas as pl
from jax.experimental.pallas import tpu as pltpu


def _make_kernels(K, Wp, W, R, Cout, neg_slope):
    """Build phase-1 (conv+act+stats) and phase-2 (conv+act+normalize) bodies."""

    def conv_act(x_ref, w_ref, b_ref):
        # x_ref: (1, 1, Rh, Cin) halo'd, W-padded, row-flattened input tile.
        # w_ref: (K*K*Cin, Cpad) tap-folded, lane-padded weights.
        # b_ref: (1, Cpad) f32 conv bias.
        taps = [
            x_ref[0, 0, pl.ds(kh * Wp + kw, R), :]        # (R, Cin) ref slices
            for kh in range(K)
            for kw in range(K)
        ]
        lhs = jnp.concatenate(taps, axis=-1)              # (R, K*K*Cin)
        conv = jnp.dot(lhs, w_ref[...],
                       preferred_element_type=jnp.float32)  # single MXU pass
        conv = conv + b_ref[...]
        return jnp.where(conv >= 0.0, conv, neg_slope * conv)   # LeakyReLU

    def stats_kernel(x_ref, w_ref, b_ref, st_ref):
        act = conv_act(x_ref, w_ref, b_ref)               # (R, Cpad) f32
        # Rows whose flattened index lands on the W padding are wrap-around
        # garbage; mask them out of the batch statistics.
        col = lax.broadcasted_iota(jnp.int32, (R, 1), 0) % Wp
        act_m = jnp.where(col < W, act, 0.0)
        s1 = jnp.sum(act_m, axis=0, keepdims=True)        # (1, Cpad)
        s2 = jnp.sum(act_m * act_m, axis=0, keepdims=True)
        rid = lax.broadcasted_iota(jnp.int32, (2, st_ref.shape[-1]), 0)
        st_ref[...] = jnp.where(rid == 0, s1, s2)[None, None]

    def norm_kernel(x_ref, w_ref, b_ref, sc_ref, sh_ref, o_ref):
        act = conv_act(x_ref, w_ref, b_ref)
        y = act * sc_ref[...] + sh_ref[...]               # one FMA per element
        o_ref[...] = y[:, :Cout].astype(o_ref.dtype)[None, None]

    return stats_kernel, norm_kernel


def _vmem_budget_bytes():
    """Generation-aware scoped-VMEM budget.

    v5e/v6e (128 MiB physical) -> ~100 MiB; v7x (64 MiB) / unknown -> ~40 MiB.
    """
    phys = 64 * 1024 * 1024
    try:
        info_fn = getattr(pltpu, "get_tpu_info", None)
        if info_fn is not None:
            phys = int(getattr(info_fn(), "vmem_capacity_bytes", phys))
    except Exception:
        pass
    return int(min(max(phys - 24 * 1024 * 1024, 16 * 1024 * 1024),
                   100 * 1024 * 1024))


def cnn_block_no_maxpool(x, w, bias, gamma, beta, *,
                         eps=1e-5, neg_slope=0.01, tile_h=None,
                         operand_dtype=None):
    """BatchNorm2d(LeakyReLU(Conv2d_same(x))), NHWC, training-mode BN stats.

    x:             (N, H, W, Cin) float32
    w:             (K, K, Cin, Cout) -- K must be 3; stride=1, dilation=1, groups=1
    bias:          (Cout,) conv bias
    gamma/beta:    (Cout,) BatchNorm affine parameters
    operand_dtype: dtype of the matmul operands (input / weights).  Default
                   keeps x.dtype.  jnp.bfloat16 is recommended on v6e/v7x.
    """
    N, H, W, Cin = x.shape
    K, K2, Cin_w, Cout = w.shape
    assert K == 3 and K2 == 3 and Cin_w == Cin, "kernel_size=3, groups=1 only"
    pad = (K - 1) // 2
    Wp = W + 2 * pad
    Cpad = ((Cout + 127) // 128) * 128
    KKC = K * K * Cin
    op_dtype = x.dtype if operand_dtype is None else operand_dtype
    op_isz = jnp.dtype(op_dtype).itemsize

    # ---- VMEM-budget-driven H-tile selection --------------------------------
    budget = _vmem_budget_bytes()

    def tile_bytes(th):
        r = th * Wp
        rh = (th + K - 1) * Wp + (K - 1)
        return (2 * rh * Cin * op_isz                 # double-buffered input
                + 2 * KKC * Cpad * op_isz             # resident weights (2 bufs)
                + 6 * Cpad * 4                        # bias / scale / shift
                + 2 * max(r * Cout, 2 * Cpad) * 4     # output / stats blocks
                + r * KKC * op_isz                    # folded LHS temporary
                + 3 * r * Cpad * 4)                   # conv/act temporaries

    if tile_h is None:
        fitting = [d for d in range(1, H + 1)
                   if H % d == 0 and tile_bytes(d) <= budget // 2]
        tile_h = max(fitting) if fitting else 1
        if N == 1 and tile_h == H:
            # Keep >= 2 grid steps so both v7x TensorCores get work.
            smaller = [d for d in fitting if d < H]
            if smaller:
                tile_h = max(smaller)
    assert H % tile_h == 0, "tile_h must divide H"
    TH = tile_h
    n_t = H // TH
    R = TH * Wp                         # output rows computed per tile
    Rh = (TH + K - 1) * Wp + (K - 1)    # halo'd input rows per tile (+ slack)

    # ---- operand prep: ONE halo'd input copy (no per-tap duplication) -------
    xpad = jnp.pad(x, ((0, 0), (pad, pad), (pad, pad), (0, 0)))
    # xh[n, t, h_loc*Wp + wp, ci] = xpad[n, t*TH + h_loc, wp, ci] for
    # h_loc in [0, TH+K-1); the trailing K-1 zero slack rows are only read by
    # pad-column output rows, which are masked / discarded.
    row_idx = (jnp.arange(n_t)[:, None] * TH
               + jnp.arange(TH + K - 1)[None, :])              # (n_t, TH+K-1)
    xh = xpad[:, row_idx].reshape(N, n_t, (TH + K - 1) * Wp, Cin)
    xh = jnp.pad(xh, ((0, 0), (0, 0), (0, K - 1), (0, 0))).astype(op_dtype)

    # Tap-folded weights: (K, K, Cin, Cout) -> (K*K*Cin, Cpad); row order
    # matches the in-kernel tap concatenation (kh-major, then kw, then ci).
    w2 = jnp.pad(w.reshape(KKC, Cout), ((0, 0), (0, Cpad - Cout)))
    w2 = w2.astype(op_dtype)
    b2 = jnp.pad(bias, (0, Cpad - Cout)).reshape(1, Cpad).astype(jnp.float32)

    stats_kernel, norm_kernel = _make_kernels(K, Wp, W, R, Cout, neg_slope)

    # ---- specs ---------------------------------------------------------------
    grid = (N, n_t)
    x_spec = pl.BlockSpec((1, 1, Rh, Cin), lambda n, t: (n, t, 0, 0))
    w_spec = pl.BlockSpec((KKC, Cpad), lambda n, t: (0, 0))
    vec_spec = pl.BlockSpec((1, Cpad), lambda n, t: (0, 0))
    st_spec = pl.BlockSpec((1, 1, 2, Cpad), lambda n, t: (n, t, 0, 0))
    out_spec = pl.BlockSpec((1, 1, R, Cout), lambda n, t: (n, t, 0, 0))

    vmem_limit = int(min(max(2 * tile_bytes(TH), 16 * 1024 * 1024), budget))
    cparams = pltpu.CompilerParams(
        dimension_semantics=("parallel", "parallel"),
        vmem_limit_bytes=vmem_limit)

    conv_flops = 2 * N * n_t * R * KKC * Cpad
    xw_bytes = N * n_t * Rh * Cin * op_isz + KKC * Cpad * op_isz

    # ---- phase 1: folded conv + bias + LeakyReLU + per-tile sum / sumsq ------
    stats = pl.pallas_call(
        stats_kernel,
        out_shape=jax.ShapeDtypeStruct((N, n_t, 2, Cpad), jnp.float32),
        grid_spec=pltpu.PrefetchScalarGridSpec(
            num_scalar_prefetch=0,
            grid=grid,
            in_specs=[x_spec, w_spec, vec_spec],
            out_specs=st_spec),
        compiler_params=cparams,
        cost_estimate=pl.CostEstimate(
            flops=conv_flops + 6 * N * n_t * R * Cpad,
            transcendentals=0,
            bytes_accessed=xw_bytes + N * n_t * 2 * Cpad * 4),
    )(xh, w2, b2)

    # ---- global BatchNorm statistics (tiny reduction, plain JAX) -------------
    # NOTE: var = E[x^2] - E[x]^2 in f32 (clamped at 0); adequate for BN-scale
    # activations, though a shifted two-pass would be more robust for huge
    # per-channel |mean|.
    count = N * H * W
    s1 = jnp.sum(stats[:, :, 0, :], axis=(0, 1))                # (Cpad,)
    s2 = jnp.sum(stats[:, :, 1, :], axis=(0, 1))                # (Cpad,)
    mean = s1 / count
    var = jnp.maximum(s2 / count - mean * mean, 0.0)            # biased, as BN
    g2 = jnp.pad(gamma, (0, Cpad - Cout)).astype(jnp.float32)
    be2 = jnp.pad(beta, (0, Cpad - Cout)).astype(jnp.float32)
    scale = g2 * lax.rsqrt(var + eps)
    shift = be2 - mean * scale
    scale2 = scale.reshape(1, Cpad)
    shift2 = shift.reshape(1, Cpad)

    # ---- phase 2: recompute folded conv + act, apply y = act*scale + shift ---
    y = pl.pallas_call(
        norm_kernel,
        out_shape=jax.ShapeDtypeStruct((N, n_t, R, Cout), x.dtype),
        grid_spec=pltpu.PrefetchScalarGridSpec(
            num_scalar_prefetch=0,
            grid=grid,
            in_specs=[x_spec, w_spec, vec_spec, vec_spec, vec_spec],
            out_specs=out_spec),
        compiler_params=cparams,
        cost_estimate=pl.CostEstimate(
            flops=conv_flops + 4 * N * n_t * R * Cpad,
            transcendentals=0,
            bytes_accessed=xw_bytes + N * n_t * R * Cout * 4),
    )(xh, w2, b2, scale2, shift2)

    # ---- drop the W-padding columns and restore (N, H, W, Cout) --------------
    y = y.reshape(N, n_t, TH, Wp, Cout)[:, :, :, :W, :]
    return y.reshape(N, H, W, Cout)


def _reference(x, w, bias, gamma, beta, eps=1e-5, neg_slope=0.01):
    """Pure-JAX reference (conv 'SAME' + LeakyReLU + batch-stat BatchNorm)."""
    conv = lax.conv_general_dilated(
        x, w, window_strides=(1, 1), padding="SAME",
        dimension_numbers=("NHWC", "HWIO", "NHWC"),
    ) + bias[None, None, None, :]
    act = jnp.where(conv >= 0.0, conv, neg_slope * conv)
    mean = jnp.mean(act, axis=(0, 1, 2), keepdims=True)
    var = jnp.mean(jnp.square(act - mean), axis=(0, 1, 2), keepdims=True)
    y = (act - mean) * lax.rsqrt(var + eps)
    return y * gamma[None, None, None, :] + beta[None, None, None, :]


if __name__ == "__main__":
    # Small shapes: batch=2, in_channels=4, out_channels=8, spatial=16x16, K=3.
    N, H, W, Cin, Cout, K = 2, 16, 16, 4, 8, 3

    key = jax.random.PRNGKey(0)
    kx, kw, kb = jax.random.split(key, 3)
    x = jax.random.normal(kx, (N, H, W, Cin), dtype=jnp.float32)
    w = 0.1 * jax.random.normal(kw, (K, K, Cin, Cout), dtype=jnp.float32)
    b = 0.1 * jax.random.normal(kb, (Cout,), dtype=jnp.float32)
    gamma = jnp.ones((Cout,), dtype=jnp.float32)   # BatchNorm2d weight init
    beta = jnp.zeros((Cout,), dtype=jnp.float32)   # BatchNorm2d bias init

    ref = _reference(x, w, b, gamma, beta)

    # tile_h=8 -> grid (N=2, n_t=2): exercises the halo gather / multi-tile
    # partial-stat reduction path.
    fwd_tiled = jax.jit(functools.partial(cnn_block_no_maxpool, tile_h=8))
    out_tiled = jax.block_until_ready(fwd_tiled(x, w, b, gamma, beta))
    assert out_tiled.shape == (N, H, W, Cout)
    assert jnp.allclose(out_tiled, ref, rtol=1e-4, atol=1e-4), \
        "mismatch vs reference (tiled)"

    # Auto tile selection (VMEM-budget driven) -> whole image per tile here.
    fwd_auto = jax.jit(cnn_block_no_maxpool)
    out_auto = jax.block_until_ready(fwd_auto(x, w, b, gamma, beta))
    assert jnp.allclose(out_auto, ref, rtol=1e-4, atol=1e-4), \
        "mismatch vs reference (auto tile)"

    print("KERNEL_OK")
</pallas_src>

<mosaic_0001>
module attributes {stable_mosaic.version = 11 : i64} {
  func.func @stats_kernel(%arg0: i32, %arg1: i32, %arg2: memref<1x1x182x4xf32, #tpu.memory_space<vmem>>, %arg3: memref<36x128xf32, #tpu.memory_space<vmem>>, %arg4: memref<1x128xf32, #tpu.memory_space<vmem>>, %arg5: memref<1x1x2x128xf32, #tpu.memory_space<vmem>>) attributes {dimension_semantics = [#tpu.dimension_semantics<parallel>, #tpu.dimension_semantics<parallel>], iteration_bounds = array<i64: 2, 2>, scalar_prefetch = 0 : i64, scratch_operands = 0 : i64, tpu.core_type = #tpu.core_type<tc>, window_params = [{transform_indices = @transform_0, window_bounds = array<i64: 1, 1, 182, 4>}, {pipeline_mode = #tpu.pipeline_mode<synchronous>, transform_indices = @transform_1, window_bounds = array<i64: 36, 128>}, {pipeline_mode = #tpu.pipeline_mode<synchronous>, transform_indices = @transform_2, window_bounds = array<i64: 1, 128>}, {transform_indices = @transform_3, window_bounds = array<i64: 1, 1, 2, 128>}]} {
    %c0 = arith.constant 0 : index
    %c0_0 = arith.constant 0 : index
    %c0_1 = arith.constant 0 : index
    %c0_2 = arith.constant 0 : index
    %0 = vector.load %arg2[%c0, %c0_0, %c0_1, %c0_2] : memref<1x1x182x4xf32, #tpu.memory_space<vmem>>, vector<1x1x144x4xf32>
    %1 = vector.shape_cast %0 : vector<1x1x144x4xf32> to vector<144x4xf32>
    %c0_3 = arith.constant 0 : index
    %c0_4 = arith.constant 0 : index
    %c1 = arith.constant 1 : index
    %c0_5 = arith.constant 0 : index
    %2 = vector.load %arg2[%c0_3, %c0_4, %c1, %c0_5] : memref<1x1x182x4xf32, #tpu.memory_space<vmem>>, vector<1x1x144x4xf32>
    %3 = vector.shape_cast %2 : vector<1x1x144x4xf32> to vector<144x4xf32>
    %c0_6 = arith.constant 0 : index
    %c0_7 = arith.constant 0 : index
    %c2 = arith.constant 2 : index
    %c0_8 = arith.constant 0 : index
    %4 = vector.load %arg2[%c0_6, %c0_7, %c2, %c0_8] : memref<1x1x182x4xf32, #tpu.memory_space<vmem>>, vector<1x1x144x4xf32>
    %5 = vector.shape_cast %4 : vector<1x1x144x4xf32> to vector<144x4xf32>
    %c0_9 = arith.constant 0 : index
    %c0_10 = arith.constant 0 : index
    %c18 = arith.constant 18 : index
    %c0_11 = arith.constant 0 : index
    %6 = vector.load %arg2[%c0_9, %c0_10, %c18, %c0_11] : memref<1x1x182x4xf32, #tpu.memory_space<vmem>>, vector<1x1x144x4xf32>
    %7 = vector.shape_cast %6 : vector<1x1x144x4xf32> to vector<144x4xf32>
    %c0_12 = arith.constant 0 : index
    %c0_13 = arith.constant 0 : index
    %c19 = arith.constant 19 : index
    %c0_14 = arith.constant 0 : index
    %8 = vector.load %arg2[%c0_12, %c0_13, %c19, %c0_14] : memref<1x1x182x4xf32, #tpu.memory_space<vmem>>, vector<1x1x144x4xf32>
    %9 = vector.shape_cast %8 : vector<1x1x144x4xf32> to vector<144x4xf32>
    %c0_15 = arith.constant 0 : index
    %c0_16 = arith.constant 0 : index
    %c20 = arith.constant 20 : index
    %c0_17 = arith.constant 0 : index
    %10 = vector.load %arg2[%c0_15, %c0_16, %c20, %c0_17] : memref<1x1x182x4xf32, #tpu.memory_space<vmem>>, vector<1x1x144x4xf32>
    %11 = vector.shape_cast %10 : vector<1x1x144x4xf32> to vector<144x4xf32>
    %c0_18 = arith.constant 0 : index
    %c0_19 = arith.constant 0 : index
    %c36 = arith.constant 36 : index
    %c0_20 = arith.constant 0 : index
    %12 = vector.load %arg2[%c0_18, %c0_19, %c36, %c0_20] : memref<1x1x182x4xf32, #tpu.memory_space<vmem>>, vector<1x1x144x4xf32>
    %13 = vector.shape_cast %12 : vector<1x1x144x4xf32> to vector<144x4xf32>
    %c0_21 = arith.constant 0 : index
    %c0_22 = arith.constant 0 : index
    %c37 = arith.constant 37 : index
    %c0_23 = arith.constant 0 : index
    %14 = vector.load %arg2[%c0_21, %c0_22, %c37, %c0_23] : memref<1x1x182x4xf32, #tpu.memory_space<vmem>>, vector<1x1x144x4xf32>
    %15 = vector.shape_cast %14 : vector<1x1x144x4xf32> to vector<144x4xf32>
    %c0_24 = arith.constant 0 : index
    %c0_25 = arith.constant 0 : index
    %c38 = arith.constant 38 : index
    %c0_26 = arith.constant 0 : index
    %16 = vector.load %arg2[%c0_24, %c0_25, %c38, %c0_26] : memref<1x1x182x4xf32, #tpu.memory_space<vmem>>, vector<1x1x144x4xf32>
    %17 = vector.shape_cast %16 : vector<1x1x144x4xf32> to vector<144x4xf32>
    %18 = tpu.concatenate %1, %3, %5, %7, %9, %11, %13, %15, %17 in 1 : vector<144x4xf32>, vector<144x4xf32>, vector<144x4xf32>, vector<144x4xf32>, vector<144x4xf32>, vector<144x4xf32>, vector<144x4xf32>, vector<144x4xf32>, vector<144x4xf32> -> vector<144x36xf32>
    %c0_27 = arith.constant 0 : index
    %c0_28 = arith.constant 0 : index
    %19 = vector.load %arg3[%c0_27, %c0_28] : memref<36x128xf32, #tpu.memory_space<vmem>>, vector<36x128xf32>
    %cst = arith.constant dense<0.000000e+00> : vector<144x128xf32>
    %20 = tpu.matmul %18, %19, %cst {dimension_numbers = #tpu.dot_dimension_numbers<[1], [0], [0], [1], [0, 0, 1, 1], [], []>} : vector<144x36xf32>, vector<36x128xf32>, vector<144x128xf32> -> vector<144x128xf32>
    %c0_29 = arith.constant 0 : index
    %c0_30 = arith.constant 0 : index
    %21 = vector.load %arg4[%c0_29, %c0_30] : memref<1x128xf32, #tpu.memory_space<vmem>>, vector<1x128xf32>
    %22 = vector.broadcast %21 : vector<1x128xf32> to vector<144x128xf32>
    %23 = arith.addf %20, %22 : vector<144x128xf32>
    %cst_31 = arith.constant 0.000000e+00 : f32
    %24 = vector.broadcast %cst_31 : f32 to vector<144x128xf32>
    %25 = arith.cmpf oge, %23, %24 : vector<144x128xf32>
    %cst_32 = arith.constant 0.00999999977 : f32
    %26 = vector.broadcast %cst_32 : f32 to vector<144x128xf32>
    %27 = arith.mulf %26, %23 : vector<144x128xf32>
    %28 = arith.select %25, %23, %27 : vector<144x128xi1>, vector<144x128xf32>
    %29 = tpu.iota {dimensions = array<i32: 0>} : vector<144x1xi32>
    %c18_i32 = arith.constant 18 : i32
    %c0_i32 = arith.constant 0 : i32
    %30 = arith.cmpi eq, %c18_i32, %c0_i32 : i32
    %c1_i32 = arith.constant 1 : i32
    %31 = arith.select %30, %c1_i32, %c18_i32 : i32
    %32 = vector.broadcast %31 : i32 to vector<144x1xi32>
    %33 = arith.remsi %29, %32 : vector<144x1xi32>
    %c0_i32_33 = arith.constant 0 : i32
    %34 = vector.broadcast %c0_i32_33 : i32 to vector<144x1xi32>
    %35 = arith.cmpi ne, %33, %34 : vector<144x1xi32>
    %c0_i32_34 = arith.constant 0 : i32
    %36 = vector.broadcast %c0_i32_34 : i32 to vector<144x1xi32>
    %37 = arith.cmpi slt, %33, %36 : vector<144x1xi32>
    %c0_i32_35 = arith.constant 0 : i32
    %38 = arith.cmpi slt, %31, %c0_i32_35 : i32
    %39 = vector.broadcast %38 : i1 to vector<144x1xi1>
    %40 = vector.broadcast %39 : vector<144x1xi1> to vector<144x1xi1>
    %41 = arith.xori %37, %40 : vector<144x1xi1>
    %42 = arith.andi %41, %35 : vector<144x1xi1>
    %43 = vector.broadcast %31 : i32 to vector<144x1xi32>
    %44 = arith.addi %33, %43 : vector<144x1xi32>
    %45 = arith.select %42, %44, %33 : vector<144x1xi1>, vector<144x1xi32>
    %c16_i32 = arith.constant 16 : i32
    %46 = vector.broadcast %c16_i32 : i32 to vector<144x1xi32>
    %47 = arith.cmpi slt, %45, %46 : vector<144x1xi32>
    %cst_36 = arith.constant 0.000000e+00 : f32
    %48 = vector.shape_cast %47 : vector<144x1xi1> to vector<144x1xi1>
    %49 = vector.broadcast %48 : vector<144x1xi1> to vector<144x128xi1>
    %50 = vector.broadcast %cst_36 : f32 to vector<144x128xf32>
    %51 = arith.select %49, %28, %50 : vector<144x128xi1>, vector<144x128xf32>
    %cst_37 = arith.constant dense<0.000000e+00> : vector<128xf32>
    %52 = vector.multi_reduction <add>, %51, %cst_37 [0] : vector<144x128xf32> to vector<128xf32>
    %53 = vector.shape_cast %52 : vector<128xf32> to vector<1x128xf32>
    %54 = arith.mulf %51, %51 : vector<144x128xf32>
    %cst_38 = arith.constant dense<0.000000e+00> : vector<128xf32>
    %55 = vector.multi_reduction <add>, %54, %cst_38 [0] : vector<144x128xf32> to vector<128xf32>
    %56 = vector.shape_cast %55 : vector<128xf32> to vector<1x128xf32>
    %57 = tpu.iota {dimensions = array<i32: 0>} : vector<2x128xi32>
    %c0_i32_39 = arith.constant 0 : i32
    %58 = vector.broadcast %c0_i32_39 : i32 to vector<2x128xi32>
    %59 = arith.cmpi eq, %57, %58 : vector<2x128xi32>
    %60 = vector.shape_cast %53 : vector<1x128xf32> to vector<1x128xf32>
    %61 = vector.broadcast %60 : vector<1x128xf32> to vector<2x128xf32>
    %62 = vector.shape_cast %56 : vector<1x128xf32> to vector<1x128xf32>
    %63 = vector.broadcast %62 : vector<1x128xf32> to vector<2x128xf32>
    %64 = arith.select %59, %61, %63 : vector<2x128xi1>, vector<2x128xf32>
    %65 = vector.shape_cast %64 : vector<2x128xf32> to vector<1x1x2x128xf32>
    %c0_40 = arith.constant 0 : index
    %c0_41 = arith.constant 0 : index
    %c0_42 = arith.constant 0 : index
    %c0_43 = arith.constant 0 : index
    %66 = vector.load %arg5[%c0_40, %c0_41, %c0_42, %c0_43] : memref<1x1x2x128xf32, #tpu.memory_space<vmem>>, vector<1x1x2x128xf32>
    tpu.vector_store %arg5[%c0_40, %c0_41, %c0_42, %c0_43], %65 {strides = array<i32>} : memref<1x1x2x128xf32, #tpu.memory_space<vmem>>, vector<1x1x2x128xf32>,
    return
  }
  func.func @transform_0(%arg0: i32, %arg1: i32) -> (i32, i32, i32, i32) {
    %c0_i32 = arith.constant 0 : i32
    %c0_i32_0 = arith.constant 0 : i32
    %c0_i32_1 = arith.constant 0 : i32
    return %arg0, %arg1, %c0_i32, %c0_i32_0 : i32, i32, i32, i32
  }
  func.func @transform_1(%arg0: i32, %arg1: i32) -> (i32, i32) {
    %c0_i32 = arith.constant 0 : i32
    %c0_i32_0 = arith.constant 0 : i32
    %c0_i32_1 = arith.constant 0 : i32
    return %c0_i32, %c0_i32_0 : i32, i32
  }
  func.func @transform_2(%arg0: i32, %arg1: i32) -> (i32, i32) {
    %c0_i32 = arith.constant 0 : i32
    %c0_i32_0 = arith.constant 0 : i32
    %c0_i32_1 = arith.constant 0 : i32
    return %c0_i32, %c0_i32_0 : i32, i32
  }
  func.func @transform_3(%arg0: i32, %arg1: i32) -> (i32, i32, i32, i32) {
    %c0_i32 = arith.constant 0 : i32
    %c0_i32_0 = arith.constant 0 : i32
    %c0_i32_1 = arith.constant 0 : i32
    return %arg0, %arg1, %c0_i32, %c0_i32_0 : i32, i32, i32, i32
  }
}

module attributes {stable_mosaic.version = 11 : i64} {
  func.func @norm_kernel(%arg0: i32, %arg1: i32, %arg2: memref<1x1x182x4xf32, #tpu.memory_space<vmem>>, %arg3: memref<36x128xf32, #tpu.memory_space<vmem>>, %arg4: memref<1x128xf32, #tpu.memory_space<vmem>>, %arg5: memref<1x128xf32, #tpu.memory_space<vmem>>, %arg6: memref<1x128xf32, #tpu.memory_space<vmem>>, %arg7: memref<1x1x144x8xf32, #tpu.memory_space<vmem>>) attributes {dimension_semantics = [#tpu.dimension_semantics<parallel>, #tpu.dimension_semantics<parallel>], iteration_bounds = array<i64: 2, 2>, scalar_prefetch = 0 : i64, scratch_operands = 0 : i64, tpu.core_type = #tpu.core_type<tc>, window_params = [{transform_indices = @transform_0, window_bounds = array<i64: 1, 1, 182, 4>}, {pipeline_mode = #tpu.pipeline_mode<synchronous>, transform_indices = @transform_1, window_bounds = array<i64: 36, 128>}, {pipeline_mode = #tpu.pipeline_mode<synchronous>, transform_indices = @transform_2, window_bounds = array<i64: 1, 128>}, {pipeline_mode = #tpu.pipeline_mode<synchronous>, transform_indices = @transform_3, window_bounds = array<i64: 1, 128>}, {pipeline_mode = #tpu.pipeline_mode<synchronous>, transform_indices = @transform_4, window_bounds = array<i64: 1, 128>}, {transform_indices = @transform_5, window_bounds = array<i64: 1, 1, 144, 8>}]} {
    %c0 = arith.constant 0 : index
    %c0_0 = arith.constant 0 : index
    %c0_1 = arith.constant 0 : index
    %c0_2 = arith.constant 0 : index
    %0 = vector.load %arg2[%c0, %c0_0, %c0_1, %c0_2] : memref<1x1x182x4xf32, #tpu.memory_space<vmem>>, vector<1x1x144x4xf32>
    %1 = vector.shape_cast %0 : vector<1x1x144x4xf32> to vector<144x4xf32>
    %c0_3 = arith.constant 0 : index
    %c0_4 = arith.constant 0 : index
    %c1 = arith.constant 1 : index
    %c0_5 = arith.constant 0 : index
    %2 = vector.load %arg2[%c0_3, %c0_4, %c1, %c0_5] : memref<1x1x182x4xf32, #tpu.memory_space<vmem>>, vector<1x1x144x4xf32>
    %3 = vector.shape_cast %2 : vector<1x1x144x4xf32> to vector<144x4xf32>
    %c0_6 = arith.constant 0 : index
    %c0_7 = arith.constant 0 : index
    %c2 = arith.constant 2 : index
    %c0_8 = arith.constant 0 : index
    %4 = vector.load %arg2[%c0_6, %c0_7, %c2, %c0_8] : memref<1x1x182x4xf32, #tpu.memory_space<vmem>>, vector<1x1x144x4xf32>
    %5 = vector.shape_cast %4 : vector<1x1x144x4xf32> to vector<144x4xf32>
    %c0_9 = arith.constant 0 : index
    %c0_10 = arith.constant 0 : index
    %c18 = arith.constant 18 : index
    %c0_11 = arith.constant 0 : index
    %6 = vector.load %arg2[%c0_9, %c0_10, %c18, %c0_11] : memref<1x1x182x4xf32, #tpu.memory_space<vmem>>, vector<1x1x144x4xf32>
    %7 = vector.shape_cast %6 : vector<1x1x144x4xf32> to vector<144x4xf32>
    %c0_12 = arith.constant 0 : index
    %c0_13 = arith.constant 0 : index
    %c19 = arith.constant 19 : index
    %c0_14 = arith.constant 0 : index
    %8 = vector.load %arg2[%c0_12, %c0_13, %c19, %c0_14] : memref<1x1x182x4xf32, #tpu.memory_space<vmem>>, vector<1x1x144x4xf32>
    %9 = vector.shape_cast %8 : vector<1x1x144x4xf32> to vector<144x4xf32>
    %c0_15 = arith.constant 0 : index
    %c0_16 = arith.constant 0 : index
    %c20 = arith.constant 20 : index
    %c0_17 = arith.constant 0 : index
    %10 = vector.load %arg2[%c0_15, %c0_16, %c20, %c0_17] : memref<1x1x182x4xf32, #tpu.memory_space<vmem>>, vector<1x1x144x4xf32>
    %11 = vector.shape_cast %10 : vector<1x1x144x4xf32> to vector<144x4xf32>
    %c0_18 = arith.constant 0 : index
    %c0_19 = arith.constant 0 : index
    %c36 = arith.constant 36 : index
    %c0_20 = arith.constant 0 : index
    %12 = vector.load %arg2[%c0_18, %c0_19, %c36, %c0_20] : memref<1x1x182x4xf32, #tpu.memory_space<vmem>>, vector<1x1x144x4xf32>
    %13 = vector.shape_cast %12 : vector<1x1x144x4xf32> to vector<144x4xf32>
    %c0_21 = arith.constant 0 : index
    %c0_22 = arith.constant 0 : index
    %c37 = arith.constant 37 : index
    %c0_23 = arith.constant 0 : index
    %14 = vector.load %arg2[%c0_21, %c0_22, %c37, %c0_23] : memref<1x1x182x4xf32, #tpu.memory_space<vmem>>, vector<1x1x144x4xf32>
    %15 = vector.shape_cast %14 : vector<1x1x144x4xf32> to vector<144x4xf32>
    %c0_24 = arith.constant 0 : index
    %c0_25 = arith.constant 0 : index
    %c38 = arith.constant 38 : index
    %c0_26 = arith.constant 0 : index
    %16 = vector.load %arg2[%c0_24, %c0_25, %c38, %c0_26] : memref<1x1x182x4xf32, #tpu.memory_space<vmem>>, vector<1x1x144x4xf32>
    %17 = vector.shape_cast %16 : vector<1x1x144x4xf32> to vector<144x4xf32>
    %18 = tpu.concatenate %1, %3, %5, %7, %9, %11, %13, %15, %17 in 1 : vector<144x4xf32>, vector<144x4xf32>, vector<144x4xf32>, vector<144x4xf32>, vector<144x4xf32>, vector<144x4xf32>, vector<144x4xf32>, vector<144x4xf32>, vector<144x4xf32> -> vector<144x36xf32>
    %c0_27 = arith.constant 0 : index
    %c0_28 = arith.constant 0 : index
    %19 = vector.load %arg3[%c0_27, %c0_28] : memref<36x128xf32, #tpu.memory_space<vmem>>, vector<36x128xf32>
    %cst = arith.constant dense<0.000000e+00> : vector<144x128xf32>
    %20 = tpu.matmul %18, %19, %cst {dimension_numbers = #tpu.dot_dimension_numbers<[1], [0], [0], [1], [0, 0, 1, 1], [], []>} : vector<144x36xf32>, vector<36x128xf32>, vector<144x128xf32> -> vector<144x128xf32>
    %c0_29 = arith.constant 0 : index
    %c0_30 = arith.constant 0 : index
    %21 = vector.load %arg4[%c0_29, %c0_30] : memref<1x128xf32, #tpu.memory_space<vmem>>, vector<1x128xf32>
    %22 = vector.broadcast %21 : vector<1x128xf32> to vector<144x128xf32>
    %23 = arith.addf %20, %22 : vector<144x128xf32>
    %cst_31 = arith.constant 0.000000e+00 : f32
    %24 = vector.broadcast %cst_31 : f32 to vector<144x128xf32>
    %25 = arith.cmpf oge, %23, %24 : vector<144x128xf32>
    %cst_32 = arith.constant 0.00999999977 : f32
    %26 = vector.broadcast %cst_32 : f32 to vector<144x128xf32>
    %27 = arith.mulf %26, %23 : vector<144x128xf32>
    %28 = arith.select %25, %23, %27 : vector<144x128xi1>, vector<144x128xf32>
    %c0_33 = arith.constant 0 : index
    %c0_34 = arith.constant 0 : index
    %29 = vector.load %arg5[%c0_33, %c0_34] : memref<1x128xf32, #tpu.memory_space<vmem>>, vector<1x128xf32>
    %30 = vector.broadcast %29 : vector<1x128xf32> to vector<144x128xf32>
    %31 = arith.mulf %28, %30 : vector<144x128xf32>
    %c0_35 = arith.constant 0 : index
    %c0_36 = arith.constant 0 : index
    %32 = vector.load %arg6[%c0_35, %c0_36] : memref<1x128xf32, #tpu.memory_space<vmem>>, vector<1x128xf32>
    %33 = vector.broadcast %32 : vector<1x128xf32> to vector<144x128xf32>
    %34 = arith.addf %31, %33 : vector<144x128xf32>
    %35 = vector.extract_strided_slice %34 {offsets = [0, 0], sizes = [144, 8], strides = [1, 1]} : vector<144x128xf32> to vector<144x8xf32>
    %36 = vector.shape_cast %35 : vector<144x8xf32> to vector<1x1x144x8xf32>
    %c0_37 = arith.constant 0 : index
    %c0_38 = arith.constant 0 : index
    %c0_39 = arith.constant 0 : index
    %c0_40 = arith.constant 0 : index
    %37 = vector.load %arg7[%c0_37, %c0_38, %c0_39, %c0_40] : memref<1x1x144x8xf32, #tpu.memory_space<vmem>>, vector<1x1x144x8xf32>
    tpu.vector_store %arg7[%c0_37, %c0_38, %c0_39, %c0_40], %36 {strides = array<i32>} : memref<1x1x144x8xf32, #tpu.memory_space<vmem>>, vector<1x1x144x8xf32>,
    return
  }
  func.func @transform_0(%arg0: i32, %arg1: i32) -> (i32, i32, i32, i32) {
    %c0_i32 = arith.constant 0 : i32
    %c0_i32_0 = arith.constant 0 : i32
    %c0_i32_1 = arith.constant 0 : i32
    return %arg0, %arg1, %c0_i32, %c0_i32_0 : i32, i32, i32, i32
  }
  func.func @transform_1(%arg0: i32, %arg1: i32) -> (i32, i32) {
    %c0_i32 = arith.constant 0 : i32
    %c0_i32_0 = arith.constant 0 : i32
    %c0_i32_1 = arith.constant 0 : i32
    return %c0_i32, %c0_i32_0 : i32, i32
  }
  func.func @transform_2(%arg0: i32, %arg1: i32) -> (i32, i32) {
    %c0_i32 = arith.constant 0 : i32
    %c0_i32_0 = arith.constant 0 : i32
    %c0_i32_1 = arith.constant 0 : i32
    return %c0_i32, %c0_i32_0 : i32, i32
  }
  func.func @transform_3(%arg0: i32, %arg1: i32) -> (i32, i32) {
    %c0_i32 = arith.constant 0 : i32
    %c0_i32_0 = arith.constant 0 : i32
    %c0_i32_1 = arith.constant 0 : i32
    return %c0_i32, %c0_i32_0 : i32, i32
  }
  func.func @transform_4(%arg0: i32, %arg1: i32) -> (i32, i32) {
    %c0_i32 = arith.constant 0 : i32
    %c0_i32_0 = arith.constant 0 : i32
    %c0_i32_1 = arith.constant 0 : i32
    return %c0_i32, %c0_i32_0 : i32, i32
  }
  func.func @transform_5(%arg0: i32, %arg1: i32) -> (i32, i32, i32, i32) {
    %c0_i32 = arith.constant 0 : i32
    %c0_i32_0 = arith.constant 0 : i32
    %c0_i32_1 = arith.constant 0 : i32
    return %arg0, %arg1, %c0_i32, %c0_i32_0 : i32, i32, i32, i32
  }
}

</mosaic_0001>

<llo_original>
// kernel: cnn_block_no_maxpool.3
$region0: #{cnn_block_no_maxpool.3}
  #allocation0 [shape = 'u32[]', space=smem, size = 0x4, offset = 0x4, fixed_abs, tag = 'smem constant byte address 0x4 - core index']
  #allocation1 [shape = 'u32[72,128]{1,0:T(1,128)}', space=vmem, size = 0x9000, scoped, tag = 'internal scratch']
  %s0 = inlined_call_operand.vmem [shape: f32[2,2,182,4], index: 0, kind: input, shape index: {}]
  %s1 = inlined_call_operand.vmem [shape: f32[36,128], index: 1, kind: input, shape index: {}]
  %s2 = inlined_call_operand.vmem [shape: f32[1,128], index: 2, kind: input, shape index: {}]
  %s3 = inlined_call_operand.vmem [shape: f32[1,128], index: 3, kind: input, shape index: {}]
  %s4 = inlined_call_operand.vmem [shape: f32[1,128], index: 4, kind: input, shape index: {}]
  %s5 = inlined_call_operand.vmem [shape: f32[2,2,144,8], index: 5, kind: output, shape index: {}]
  %s6 = sld [smem:[#allocation0]]
  $region53: #{cnn_block_no_maxpool.3} parent=0
    _
  %s8 = ssub.s32 1, %s6
  %s9 = scalar_select 0, %s8, %s6
  loop: start=0, step=1, limit=6
  $region2: #{cnn_block_no_maxpool.3} parent=0 // loop_pre_header
    _
  $region3: #{cnn_block_no_maxpool.3} parent=0 // loop_header
    %s11 = sphi 0, %s15
    %p12 = scmp.ge.s32.totalorder %s11, 6
    %s18 = sphi 0, %s30
    %s19 = sphi 0, %s26
    %s20 = sphi 0, %s18
    %s21 = sphi 0, %s19
    %s22 = sphi 0, %s20
    %s23 = sphi 0, %s21
    %s35 = sphi 0, %s37
    %s38 = sphi 0, %s35
    %s39 = sphi 0, %s38
    %s55 = sphi 0, %s39
    %s59 = sphi 0, %s59
    %s61 = sphi 0, %s59
    %s62 = sphi 0, %s61
    %s76 = sphi 0, %s62
    %s80 = sphi 0, %s80
    %s82 = sphi 0, %s80
    %s83 = sphi 0, %s82
    %s97 = sphi 0, %s83
    %s101 = sphi 0, %s101
    %s103 = sphi 0, %s101
    %s104 = sphi 0, %s103
    %s118 = sphi 0, %s104
    %s122 = sphi 0, %s122
    %s124 = sphi 0, %s122
    %s125 = sphi 0, %s124
    %s139 = sphi 0, %s125
    %s147 = sphi 0, %s149
    %s150 = sphi 0, %s147
    %s151 = sphi 0, %s150
    %s167 = sphi 0, %s151
  $region4: #{cnn_block_no_maxpool.3} parent=0 // loop_header_branch
    %14 = sbr.rel (%p12) target = $region8
  $region5: #{cnn_block_no_maxpool.3} parent=0 // loop_body
    %s16 = ssub.s32 %s11, 1
    %s17 = ssub.s32 %s11, 2
    %s24 = sadd.s32 1, %s19
    %p25 = scmp.ge.s32.totalorder %s24, 2
    %s26 = scalar_select %p25, 0, %s24
    %s27 = sadd.s32 1, %s18
    %s28 = scalar_select %p25, %s27, %s18
    %p29 = scmp.ge.s32.totalorder %s28, 2
    %s30 = scalar_select %p29, 0, %s28
    %s31 = ssub.s32 %s18, %s30
    %s32 = ssub.s32 %s19, %s26
    %s33 = sor.u32 %s31, %s32
    %p34 = scmp.eq.s32.totalorder %s33, 0
    %s36 = sadd.s32 %s35, 1
    %s37 = scalar_select %p34, %s35, %s36
    %p40 = pneg %p34
    %p41 = scmp.eq.s32.totalorder %s11, 3
    %p42 = por %p40, %p41
    %p43 = scmp.ne.s32.totalorder %s35, %s38
    %p44 = scmp.eq.s32.totalorder %s11, 0
    %p45 = por %p43, %p44
    %p46 = scmp.ne.s32.totalorder %s35, %s38
    %p47 = scmp.eq.s32.totalorder %s16, 3
    %p48 = por %p46, %p47
    %p49 = scmp.ne.s32.totalorder %s38, %s39
    %p50 = scmp.eq.s32.totalorder %s16, 0
    %p51 = por %p49, %p50
    %p52 = scmp.ne.s32.totalorder %s38, %s39
    %p53 = scmp.eq.s32.totalorder %s17, 3
    %p54 = por %p52, %p53
    %p56 = scmp.ne.s32.totalorder %s39, %s55
    %p57 = scmp.eq.s32.totalorder %s17, 0
    %p58 = por %p56, %p57
    %s60 = sadd.s32 %s59, 1
    %p63 = scmp.eq.s32.totalorder %s11, 3
    %p64 = scmp.ne.s32.totalorder %s59, %s61
    %p65 = scmp.eq.s32.totalorder %s11, 0
    %p66 = por %p64, %p65
    %p67 = scmp.ne.s32.totalorder %s59, %s61
    %p68 = scmp.eq.s32.totalorder %s16, 3
    %p69 = por %p67, %p68
    %p70 = scmp.ne.s32.totalorder %s61, %s62
    %p71 = scmp.eq.s32.totalorder %s16, 0
    %p72 = por %p70, %p71
    %p73 = scmp.ne.s32.totalorder %s61, %s62
    %p74 = scmp.eq.s32.totalorder %s17, 3
    %p75 = por %p73, %p74
    %p77 = scmp.ne.s32.totalorder %s62, %s76
    %p78 = scmp.eq.s32.totalorder %s17, 0
    %p79 = por %p77, %p78
    %s81 = sadd.s32 %s80, 1
    %p84 = scmp.eq.s32.totalorder %s11, 3
    %p85 = scmp.ne.s32.totalorder %s80, %s82
    %p86 = scmp.eq.s32.totalorder %s11, 0
    %p87 = por %p85, %p86
    %p88 = scmp.ne.s32.totalorder %s80, %s82
    %p89 = scmp.eq.s32.totalorder %s16, 3
    %p90 = por %p88, %p89
    %p91 = scmp.ne.s32.totalorder %s82, %s83
    %p92 = scmp.eq.s32.totalorder %s16, 0
    %p93 = por %p91, %p92
    %p94 = scmp.ne.s32.totalorder %s82, %s83
    %p95 = scmp.eq.s32.totalorder %s17, 3
    %p96 = por %p94, %p95
    %p98 = scmp.ne.s32.totalorder %s83, %s97
    %p99 = scmp.eq.s32.totalorder %s17, 0
    %p100 = por %p98, %p99
    %s102 = sadd.s32 %s101, 1
    %p105 = scmp.eq.s32.totalorder %s11, 3
    %p106 = scmp.ne.s32.totalorder %s101, %s103
    %p107 = scmp.eq.s32.totalorder %s11, 0
    %p108 = por %p106, %p107
    %p109 = scmp.ne.s32.totalorder %s101, %s103
    %p110 = scmp.eq.s32.totalorder %s16, 3
    %p111 = por %p109, %p110
    %p112 = scmp.ne.s32.totalorder %s103, %s104
    %p113 = scmp.eq.s32.totalorder %s16, 0
    %p114 = por %p112, %p113
    %p115 = scmp.ne.s32.totalorder %s103, %s104
    %p116 = scmp.eq.s32.totalorder %s17, 3
    %p117 = por %p115, %p116
    %p119 = scmp.ne.s32.totalorder %s104, %s118
    %p120 = scmp.eq.s32.totalorder %s17, 0
    %p121 = por %p119, %p120
    %s123 = sadd.s32 %s122, 1
    %p126 = scmp.eq.s32.totalorder %s11, 3
    %p127 = scmp.ne.s32.totalorder %s122, %s124
    %p128 = scmp.eq.s32.totalorder %s11, 0
    %p129 = por %p127, %p128
    %p130 = scmp.ne.s32.totalorder %s122, %s124
    %p131 = scmp.eq.s32.totalorder %s16, 3
    %p132 = por %p130, %p131
    %p133 = scmp.ne.s32.totalorder %s124, %s125
    %p134 = scmp.eq.s32.totalorder %s16, 0
    %p135 = por %p133, %p134
    %p136 = scmp.ne.s32.totalorder %s124, %s125
    %p137 = scmp.eq.s32.totalorder %s17, 3
    %p138 = por %p136, %p137
    %p140 = scmp.ne.s32.totalorder %s125, %s139
    %p141 = scmp.eq.s32.totalorder %s17, 0
    %p142 = por %p140, %p141
    %s143 = ssub.s32 %s18, %s30
    %s144 = ssub.s32 %s19, %s26
    %s145 = sor.u32 %s143, %s144
    %p146 = scmp.eq.s32.totalorder %s145, 0
    %s148 = sadd.s32 %s147, 1
    %s149 = scalar_select %p146, %s147, %s148
    %p152 = pneg %p146
    %p153 = scmp.eq.s32.totalorder %s11, 3
    %p154 = por %p152, %p153
    %p155 = scmp.ne.s32.totalorder %s147, %s150
    %p156 = scmp.eq.s32.totalorder %s11, 0
    %p157 = por %p155, %p156
    %p158 = scmp.ne.s32.totalorder %s147, %s150
    %p159 = scmp.eq.s32.totalorder %s16, 3
    %p160 = por %p158, %p159
    %p161 = scmp.ne.s32.totalorder %s150, %s151
    %p162 = scmp.eq.s32.totalorder %s16, 0
    %p163 = por %p161, %p162
    %p164 = scmp.ne.s32.totalorder %s150, %s151
    %p165 = scmp.eq.s32.totalorder %s17, 3
    %p166 = por %p164, %p165
    %p168 = scmp.ne.s32.totalorder %s151, %s167
    %p169 = scmp.eq.s32.totalorder %s17, 0
    %p170 = por %p168, %p169
    %p171 = scmp.le.s32.totalorder 1, %s11
    %p172 = scmp.lt.s32.totalorder %s11, 5
    %p173 = pnand %p171, %p172
    %p174 = pneg %p173
    // Predicated region
    $region9: #{cnn_block_no_maxpool.3} parent=5 // pred_check
      _
    $region10: #{cnn_block_no_maxpool.3} parent=5 // pred_check_branch
      %176 = sbr.rel (%p173) target = $region12
    $region11: #{cnn_block_no_maxpool.3} parent=5 // pred_region
      %s177 = ssub.s32 %s11, 1
      // Predicated region
      $region13: #{cnn_block_no_maxpool.3} parent=11 // pred_check
        %p178 = pneg %p72
      $region14: #{cnn_block_no_maxpool.3} parent=11 // pred_check_branch
        %180 = sbr.rel (%p178) target = $region16
      $region15: #{cnn_block_no_maxpool.3} parent=11 // pred_region
        _
      $region16: #{cnn_block_no_maxpool.3} parent=11 // pred_fallthru
        _
      // Predicated region
      $region17: #{cnn_block_no_maxpool.3} parent=11 // pred_check
        %p181 = pneg %p93
      $region18: #{cnn_block_no_maxpool.3} parent=11 // pred_check_branch
        %183 = sbr.rel (%p181) target = $region20
      $region19: #{cnn_block_no_maxpool.3} parent=11 // pred_region
        _
      $region20: #{cnn_block_no_maxpool.3} parent=11 // pred_fallthru
        _
      // Predicated region
      $region21: #{cnn_block_no_maxpool.3} parent=11 // pred_check
        %p184 = pneg %p114
      $region22: #{cnn_block_no_maxpool.3} parent=11 // pred_check_branch
        %186 = sbr.rel (%p184) target = $region24
      $region23: #{cnn_block_no_maxpool.3} parent=11 // pred_region
        _
      $region24: #{cnn_block_no_maxpool.3} parent=11 // pred_fallthru
        _
      // Predicated region
      $region25: #{cnn_block_no_maxpool.3} parent=11 // pred_check
        %p187 = pneg %p135
      $region26: #{cnn_block_no_maxpool.3} parent=11 // pred_check_branch
        %189 = sbr.rel (%p187) target = $region28
      $region27: #{cnn_block_no_maxpool.3} parent=11 // pred_region
        _
      $region28: #{cnn_block_no_maxpool.3} parent=11 // pred_fallthru
        _
    $region12: #{cnn_block_no_maxpool.3} parent=5 // pred_fallthru
      _
    %p190 = scmp.lt.s32.totalorder %s11, 4
    // Predicated region
    $region29: #{cnn_block_no_maxpool.3} parent=5 // pred_check
      %p191 = pneg %p190
    $region30: #{cnn_block_no_maxpool.3} parent=5 // pred_check_branch
      %193 = sbr.rel (%p191) target = $region32
    $region31: #{cnn_block_no_maxpool.3} parent=5 // pred_region
      // Predicated region
      $region33: #{cnn_block_no_maxpool.3} parent=31 // pred_check
        %p194 = pneg %p45
      $region34: #{cnn_block_no_maxpool.3} parent=31 // pred_check_branch
        %196 = sbr.rel (%p194) target = $region36
      $region35: #{cnn_block_no_maxpool.3} parent=31 // pred_region
        %p197 = scmp.lt.s32.totalorder %s18, 1
        %s198 = scalar_select %p197, %s18, 1
        %p199 = scmp.lt.s32.totalorder %s19, 1
        %s200 = scalar_select %p199, %s19, 1
        %s201 = smul.addr %s200, 23
        %s202 = smul.addr %s198, 46
        %s203 = sadd.s32 %s201, %s202
        %s204 = smul.addr %s203, 8
        %s205 = scalar_lea.vmem %s0, %s204
      $region36: #{cnn_block_no_maxpool.3} parent=31 // pred_fallthru
        _
    $region32: #{cnn_block_no_maxpool.3} parent=5 // pred_fallthru
      _
    %p206 = scmp.le.s32.totalorder 1, %s11
    %p207 = scmp.lt.s32.totalorder %s11, 5
    %p208 = pnand %p206, %p207
    %p209 = pneg %p208
    // Predicated region
    $region37: #{cnn_block_no_maxpool.3} parent=5 // pred_check
      _
    $region38: #{cnn_block_no_maxpool.3} parent=5 // pred_check_branch
      %211 = sbr.rel (%p208) target = $region40
    $region39: #{cnn_block_no_maxpool.3} parent=5 // pred_region
      %s212 = ssub.s32 %s11, 1
      %p213 = scmp.lt.s32.totalorder %s20, 1
      %s214 = scalar_select %p213, %s20, 1
      %p215 = scmp.lt.s32.totalorder %s21, 1
      %s216 = scalar_select %p215, %s21, 1
      %s217 = smul.addr %s216, 23
      %s218 = smul.addr %s214, 46
      %s219 = sadd.s32 %s217, %s218
      %s220 = smul.addr %s219, 8
      %s221 = scalar_lea.vmem %s0, %s220
      %p222 = pneg %p51
      %p223 = pneg %p48
      %p224 = pneg %p72
      %p225 = pneg %p69
      %p226 = pneg %p93
      %p227 = pneg %p90
      %p228 = pneg %p114
      %p229 = pneg %p111
      %p230 = pneg %p135
      %p231 = pneg %p132
      %p232 = pneg %p163
      %p233 = pneg %p160
      %p234 = scmp.lt.s32.totalorder %s20, 1
      %s235 = scalar_select %p234, %s20, 1
      %p236 = scmp.lt.s32.totalorder %s21, 1
      %s237 = scalar_select %p236, %s21, 1
      %s238 = smul.addr %s237, 18
      %s239 = smul.addr %s235, 36
      %s240 = sadd.s32 %s238, %s239
      %s241 = smul.addr %s240, 8
      %s242 = scalar_lea.vmem %s5, %s241
      %p243 = scmp.lt.s32.totalorder %s20, 1
      %s244 = scalar_select %p243, %s20, 1
      %p245 = scmp.lt.s32.totalorder %s21, 1
      %s246 = scalar_select %p245, %s21, 1
      %s247 = smul.addr %s246, 23
      %s248 = smul.addr %s244, 46
      %s249 = sadd.s32 %s247, %s248
      %s250 = smul.addr %s249, 8
      %s251 = scalar_lea.vmem %s0, %s250
      %p252 = scmp.lt.s32.totalorder %s20, 1
      %s253 = scalar_select %p252, %s20, 1
      %p254 = scmp.lt.s32.totalorder %s21, 1
      %s255 = scalar_select %p254, %s21, 1
      %s256 = smul.addr %s255, 18
      %s257 = smul.addr %s253, 36
      %s258 = sadd.s32 %s256, %s257
      %s259 = smul.addr %s258, 8
      %s260 = scalar_lea.vmem %s5, %s259
      %v261 = vld [vmem:[%s251] sm:$0xff]
      %v262 = vld [vmem:[%s251 + $0x8] sm:$0xff]
      %v263 = vld [vmem:[%s251 + $0x10] sm:$0xff]
      %v264 = vld [vmem:[%s251 + $0x18] sm:$0xff]
      %v265 = vld [vmem:[%s251 + $0x20] sm:$0xff]
      %v266 = vld [vmem:[%s251 + $0x28] sm:$0xff]
      %v267 = vld [vmem:[%s251 + $0x30] sm:$0xff]
      %v268 = vld [vmem:[%s251 + $0x38] sm:$0xff]
      %v269 = vld [vmem:[%s251 + $0x40] sm:$0xff]
      %v270 = vld [vmem:[%s251 + $0x48] sm:$0xff]
      %v271 = vld [vmem:[%s251 + $0x50] sm:$0xff]
      %v272 = vld [vmem:[%s251 + $0x58] sm:$0xff]
      %v273 = vld [vmem:[%s251 + $0x60] sm:$0xff]
      %v274 = vld [vmem:[%s251 + $0x68] sm:$0xff]
      %v275 = vld [vmem:[%s251 + $0x70] sm:$0xff]
      %v276 = vld [vmem:[%s251 + $0x78] sm:$0xff]
      %v277 = vld [vmem:[%s251 + $0x80] sm:$0xff]
      %v278 = vld [vmem:[%s251 + $0x88] sm:$0xff]
      %v279 = vld [vmem:[%s251 + $0x1] sm:$0xff]
      %v280 = vld [vmem:[%s251 + $0x9] sm:$0xff]
      %v281 = vld [vmem:[%s251 + $0x11] sm:$0xff]
      %v282 = vld [vmem:[%s251 + $0x19] sm:$0xff]
      %v283 = vld [vmem:[%s251 + $0x21] sm:$0xff]
      %v284 = vld [vmem:[%s251 + $0x29] sm:$0xff]
      %v285 = vld [vmem:[%s251 + $0x31] sm:$0xff]
      %v286 = vld [vmem:[%s251 + $0x39] sm:$0xff]
      %v287 = vld [vmem:[%s251 + $0x41] sm:$0xff]
      %v288 = vld [vmem:[%s251 + $0x49] sm:$0xff]
      %v289 = vld [vmem:[%s251 + $0x51] sm:$0xff]
      %v290 = vld [vmem:[%s251 + $0x59] sm:$0xff]
      %v291 = vld [vmem:[%s251 + $0x61] sm:$0xff]
      %v292 = vld [vmem:[%s251 + $0x69] sm:$0xff]
      %v293 = vld [vmem:[%s251 + $0x71] sm:$0xff]
      %v294 = vld [vmem:[%s251 + $0x79] sm:$0xff]
      %v295 = vld [vmem:[%s251 + $0x81] sm:$0xff]
      %v296 = vld [vmem:[%s251 + $0x89] sm:$0xff]
      %v297 = vld [vmem:[%s251 + $0x2] sm:$0xff]
      %v298 = vld [vmem:[%s251 + $0xa] sm:$0xff]
      %v299 = vld [vmem:[%s251 + $0x12] sm:$0xff]
      %v300 = vld [vmem:[%s251 + $0x1a] sm:$0xff]
      %v301 = vld [vmem:[%s251 + $0x22] sm:$0xff]
      %v302 = vld [vmem:[%s251 + $0x2a] sm:$0xff]
      %v303 = vld [vmem:[%s251 + $0x32] sm:$0xff]
      %v304 = vld [vmem:[%s251 + $0x3a] sm:$0xff]
      %v305 = vld [vmem:[%s251 + $0x42] sm:$0xff]
      %v306 = vld [vmem:[%s251 + $0x4a] sm:$0xff]
      %v307 = vld [vmem:[%s251 + $0x52] sm:$0xff]
      %v308 = vld [vmem:[%s251 + $0x5a] sm:$0xff]
      %v309 = vld [vmem:[%s251 + $0x62] sm:$0xff]
      %v310 = vld [vmem:[%s251 + $0x6a] sm:$0xff]
      %v311 = vld [vmem:[%s251 + $0x72] sm:$0xff]
      %v312 = vld [vmem:[%s251 + $0x7a] sm:$0xff]
      %v313 = vld [vmem:[%s251 + $0x82] sm:$0xff]
      %v314 = vld [vmem:[%s251 + $0x8a] sm:$0xff]
      %v315 = vld [vmem:[%s251 + $0x92] sm:$0xff]
      %v316 = vld [vmem:[%s251 + $0x9a] sm:$0xff]
      %v317 = vld [vmem:[%s251 + $0x13] sm:$0xff]
      %v318 = vld [vmem:[%s251 + $0x1b] sm:$0xff]
      %v319 = vld [vmem:[%s251 + $0x23] sm:$0xff]
      %v320 = vld [vmem:[%s251 + $0x2b] sm:$0xff]
      %v321 = vld [vmem:[%s251 + $0x33] sm:$0xff]
      %v322 = vld [vmem:[%s251 + $0x3b] sm:$0xff]
      %v323 = vld [vmem:[%s251 + $0x43] sm:$0xff]
      %v324 = vld [vmem:[%s251 + $0x4b] sm:$0xff]
      %v325 = vld [vmem:[%s251 + $0x53] sm:$0xff]
      %v326 = vld [vmem:[%s251 + $0x5b] sm:$0xff]
      %v327 = vld [vmem:[%s251 + $0x63] sm:$0xff]
      %v328 = vld [vmem:[%s251 + $0x6b] sm:$0xff]
      %v329 = vld [vmem:[%s251 + $0x73] sm:$0xff]
      %v330 = vld [vmem:[%s251 + $0x7b] sm:$0xff]
      %v331 = vld [vmem:[%s251 + $0x83] sm:$0xff]
      %v332 = vld [vmem:[%s251 + $0x8b] sm:$0xff]
      %v333 = vld [vmem:[%s251 + $0x93] sm:$0xff]
      %v334 = vld [vmem:[%s251 + $0x9b] sm:$0xff]
      %v335 = vld [vmem:[%s251 + $0x14] sm:$0xff]
      %v336 = vld [vmem:[%s251 + $0x1c] sm:$0xff]
      %v337 = vld [vmem:[%s251 + $0x24] sm:$0xff]
      %v338 = vld [vmem:[%s251 + $0x2c] sm:$0xff]
      %v339 = vld [vmem:[%s251 + $0x34] sm:$0xff]
      %v340 = vld [vmem:[%s251 + $0x3c] sm:$0xff]
      %v341 = vld [vmem:[%s251 + $0x44] sm:$0xff]
      %v342 = vld [vmem:[%s251 + $0x4c] sm:$0xff]
      %v343 = vld [vmem:[%s251 + $0x54] sm:$0xff]
      %v344 = vld [vmem:[%s251 + $0x5c] sm:$0xff]
      %v345 = vld [vmem:[%s251 + $0x64] sm:$0xff]
      %v346 = vld [vmem:[%s251 + $0x6c] sm:$0xff]
      %v347 = vld [vmem:[%s251 + $0x74] sm:$0xff]
      %v348 = vld [vmem:[%s251 + $0x7c] sm:$0xff]
      %v349 = vld [vmem:[%s251 + $0x84] sm:$0xff]
      %v350 = vld [vmem:[%s251 + $0x8c] sm:$0xff]
      %v351 = vld [vmem:[%s251 + $0x94] sm:$0xff]
      %v352 = vld [vmem:[%s251 + $0x9c] sm:$0xff]
      %v353 = vld [vmem:[%s251 + $0xa4] sm:$0xff]
      %v354 = vld [vmem:[%s251 + $0xac] sm:$0xff]
      %v355 = vld [vmem:[%s251 + $0x25] sm:$0xff]
      %v356 = vld [vmem:[%s251 + $0x2d] sm:$0xff]
      %v357 = vld [vmem:[%s251 + $0x35] sm:$0xff]
      %v358 = vld [vmem:[%s251 + $0x3d] sm:$0xff]
      %v359 = vld [vmem:[%s251 + $0x45] sm:$0xff]
      %v360 = vld [vmem:[%s251 + $0x4d] sm:$0xff]
      %v361 = vld [vmem:[%s251 + $0x55] sm:$0xff]
      %v362 = vld [vmem:[%s251 + $0x5d] sm:$0xff]
      %v363 = vld [vmem:[%s251 + $0x65] sm:$0xff]
      %v364 = vld [vmem:[%s251 + $0x6d] sm:$0xff]
      %v365 = vld [vmem:[%s251 + $0x75] sm:$0xff]
      %v366 = vld [vmem:[%s251 + $0x7d] sm:$0xff]
      %v367 = vld [vmem:[%s251 + $0x85] sm:$0xff]
      %v368 = vld [vmem:[%s251 + $0x8d] sm:$0xff]
      %v369 = vld [vmem:[%s251 + $0x95] sm:$0xff]
      %v370 = vld [vmem:[%s251 + $0x9d] sm:$0xff]
      %v371 = vld [vmem:[%s251 + $0xa5] sm:$0xff]
      %v372 = vld [vmem:[%s251 + $0xad] sm:$0xff]
      %v373 = vld [vmem:[%s251 + $0x26] sm:$0xff]
      %v374 = vld [vmem:[%s251 + $0x2e] sm:$0xff]
      %v375 = vld [vmem:[%s251 + $0x36] sm:$0xff]
      %v376 = vld [vmem:[%s251 + $0x3e] sm:$0xff]
      %v377 = vld [vmem:[%s251 + $0x46] sm:$0xff]
      %v378 = vld [vmem:[%s251 + $0x4e] sm:$0xff]
      %v379 = vld [vmem:[%s251 + $0x56] sm:$0xff]
      %v380 = vld [vmem:[%s251 + $0x5e] sm:$0xff]
      %v381 = vld [vmem:[%s251 + $0x66] sm:$0xff]
      %v382 = vld [vmem:[%s251 + $0x6e] sm:$0xff]
      %v383 = vld [vmem:[%s251 + $0x76] sm:$0xff]
      %v384 = vld [vmem:[%s251 + $0x7e] sm:$0xff]
      %v385 = vld [vmem:[%s251 + $0x86] sm:$0xff]
      %v386 = vld [vmem:[%s251 + $0x8e] sm:$0xff]
      %v387 = vld [vmem:[%s251 + $0x96] sm:$0xff]
      %v388 = vld [vmem:[%s251 + $0x9e] sm:$0xff]
      %v389 = vld [vmem:[%s251 + $0xa6] sm:$0xff]
      %v390 = vld [vmem:[%s251 + $0xae] sm:$0xff]
      %409 = vrot.lane.b32.xlu0 %v279, 4
      %v410 = vpop.permute.xlu0 %409
      %411 = vrot.lane.b32.xlu0 %v280, 4
      %v412 = vpop.permute.xlu0 %411
      %413 = vrot.lane.b32.xlu0 %v281, 4
      %v414 = vpop.permute.xlu0 %413
      %415 = vrot.lane.b32.xlu0 %v282, 4
      %v416 = vpop.permute.xlu0 %415
      %417 = vrot.lane.b32.xlu0 %v283, 4
      %v418 = vpop.permute.xlu0 %417
      %419 = vrot.lane.b32.xlu0 %v284, 4
      %v420 = vpop.permute.xlu0 %419
      %421 = vrot.lane.b32.xlu0 %v285, 4
      %v422 = vpop.permute.xlu0 %421
      %423 = vrot.lane.b32.xlu0 %v286, 4
      %v424 = vpop.permute.xlu0 %423
      %425 = vrot.lane.b32.xlu0 %v287, 4
      %v426 = vpop.permute.xlu0 %425
      %427 = vrot.lane.b32.xlu0 %v288, 4
      %v428 = vpop.permute.xlu0 %427
      %429 = vrot.lane.b32.xlu0 %v289, 4
      %v430 = vpop.permute.xlu0 %429
      %431 = vrot.lane.b32.xlu0 %v290, 4
      %v432 = vpop.permute.xlu0 %431
      %433 = vrot.lane.b32.xlu0 %v291, 4
      %v434 = vpop.permute.xlu0 %433
      %435 = vrot.lane.b32.xlu0 %v292, 4
      %v436 = vpop.permute.xlu0 %435
      %437 = vrot.lane.b32.xlu0 %v293, 4
      %v438 = vpop.permute.xlu0 %437
      %439 = vrot.lane.b32.xlu0 %v294, 4
      %v440 = vpop.permute.xlu0 %439
      %441 = vrot.lane.b32.xlu0 %v295, 4
      %v442 = vpop.permute.xlu0 %441
      %443 = vrot.lane.b32.xlu0 %v296, 4
      %v444 = vpop.permute.xlu0 %443
      %481 = vrot.lane.b32.xlu0 %v297, 8
      %v482 = vpop.permute.xlu0 %481
      %483 = vrot.lane.b32.xlu0 %v298, 8
      %v484 = vpop.permute.xlu0 %483
      %485 = vrot.lane.b32.xlu0 %v299, 8
      %v486 = vpop.permute.xlu0 %485
      %487 = vrot.lane.b32.xlu0 %v300, 8
      %v488 = vpop.permute.xlu0 %487
      %489 = vrot.lane.b32.xlu0 %v301, 8
      %v490 = vpop.permute.xlu0 %489
      %491 = vrot.lane.b32.xlu0 %v302, 8
      %v492 = vpop.permute.xlu0 %491
      %493 = vrot.lane.b32.xlu0 %v303, 8
      %v494 = vpop.permute.xlu0 %493
      %495 = vrot.lane.b32.xlu0 %v304, 8
      %v496 = vpop.permute.xlu0 %495
      %497 = vrot.lane.b32.xlu0 %v305, 8
      %v498 = vpop.permute.xlu0 %497
      %499 = vrot.lane.b32.xlu0 %v306, 8
      %v500 = vpop.permute.xlu0 %499
      %501 = vrot.lane.b32.xlu0 %v307, 8
      %v502 = vpop.permute.xlu0 %501
      %503 = vrot.lane.b32.xlu0 %v308, 8
      %v504 = vpop.permute.xlu0 %503
      %505 = vrot.lane.b32.xlu0 %v309, 8
      %v506 = vpop.permute.xlu0 %505
      %507 = vrot.lane.b32.xlu0 %v310, 8
      %v508 = vpop.permute.xlu0 %507
      %509 = vrot.lane.b32.xlu0 %v311, 8
      %v510 = vpop.permute.xlu0 %509
      %511 = vrot.lane.b32.xlu0 %v312, 8
      %v512 = vpop.permute.xlu0 %511
      %513 = vrot.lane.b32.xlu0 %v313, 8
      %v514 = vpop.permute.xlu0 %513
      %515 = vrot.lane.b32.xlu0 %v314, 8
      %v516 = vpop.permute.xlu0 %515
      %537 = vrot.lane.b32.xlu0 %v299, 12
      %v538 = vpop.permute.xlu0 %537
      %539 = vrot.lane.b32.xlu0 %v300, 12
      %v540 = vpop.permute.xlu0 %539
      %541 = vrot.lane.b32.xlu0 %v301, 12
      %v542 = vpop.permute.xlu0 %541
      %543 = vrot.lane.b32.xlu0 %v302, 12
      %v544 = vpop.permute.xlu0 %543
      %545 = vrot.lane.b32.xlu0 %v303, 12
      %v546 = vpop.permute.xlu0 %545
      %547 = vrot.lane.b32.xlu0 %v304, 12
      %v548 = vpop.permute.xlu0 %547
      %549 = vrot.lane.b32.xlu0 %v305, 12
      %v550 = vpop.permute.xlu0 %549
      %551 = vrot.lane.b32.xlu0 %v306, 12
      %v552 = vpop.permute.xlu0 %551
      %553 = vrot.lane.b32.xlu0 %v307, 12
      %v554 = vpop.permute.xlu0 %553
      %555 = vrot.lane.b32.xlu0 %v308, 12
      %v556 = vpop.permute.xlu0 %555
      %557 = vrot.lane.b32.xlu0 %v309, 12
      %v558 = vpop.permute.xlu0 %557
      %559 = vrot.lane.b32.xlu0 %v310, 12
      %v560 = vpop.permute.xlu0 %559
      %561 = vrot.lane.b32.xlu0 %v311, 12
      %v562 = vpop.permute.xlu0 %561
      %563 = vrot.lane.b32.xlu0 %v312, 12
      %v564 = vpop.permute.xlu0 %563
      %565 = vrot.lane.b32.xlu0 %v313, 12
      %v566 = vpop.permute.xlu0 %565
      %567 = vrot.lane.b32.xlu0 %v314, 12
      %v568 = vpop.permute.xlu0 %567
      %569 = vrot.lane.b32.xlu0 %v315, 12
      %v570 = vpop.permute.xlu0 %569
      %571 = vrot.lane.b32.xlu0 %v316, 12
      %v572 = vpop.permute.xlu0 %571
      %609 = vrot.lane.b32.xlu0 %v317, 16
      %v610 = vpop.permute.xlu0 %609
      %611 = vrot.lane.b32.xlu0 %v318, 16
      %v612 = vpop.permute.xlu0 %611
      %613 = vrot.lane.b32.xlu0 %v319, 16
      %v614 = vpop.permute.xlu0 %613
      %615 = vrot.lane.b32.xlu0 %v320, 16
      %v616 = vpop.permute.xlu0 %615
      %617 = vrot.lane.b32.xlu0 %v321, 16
      %v618 = vpop.permute.xlu0 %617
      %619 = vrot.lane.b32.xlu0 %v322, 16
      %v620 = vpop.permute.xlu0 %619
      %621 = vrot.lane.b32.xlu0 %v323, 16
      %v622 = vpop.permute.xlu0 %621
      %623 = vrot.lane.b32.xlu0 %v324, 16
      %v624 = vpop.permute.xlu0 %623
      %625 = vrot.lane.b32.xlu0 %v325, 16
      %v626 = vpop.permute.xlu0 %625
      %627 = vrot.lane.b32.xlu0 %v326, 16
      %v628 = vpop.permute.xlu0 %627
      %629 = vrot.lane.b32.xlu0 %v327, 16
      %v630 = vpop.permute.xlu0 %629
      %631 = vrot.lane.b32.xlu0 %v328, 16
      %v632 = vpop.permute.xlu0 %631
      %633 = vrot.lane.b32.xlu0 %v329, 16
      %v634 = vpop.permute.xlu0 %633
      %635 = vrot.lane.b32.xlu0 %v330, 16
      %v636 = vpop.permute.xlu0 %635
      %637 = vrot.lane.b32.xlu0 %v331, 16
      %v638 = vpop.permute.xlu0 %637
      %639 = vrot.lane.b32.xlu0 %v332, 16
      %v640 = vpop.permute.xlu0 %639
      %641 = vrot.lane.b32.xlu0 %v333, 16
      %v642 = vpop.permute.xlu0 %641
      %643 = vrot.lane.b32.xlu0 %v334, 16
      %v644 = vpop.permute.xlu0 %643
      %681 = vrot.lane.b32.xlu0 %v335, 20
      %v682 = vpop.permute.xlu0 %681
      %683 = vrot.lane.b32.xlu0 %v336, 20
      %v684 = vpop.permute.xlu0 %683
      %685 = vrot.lane.b32.xlu0 %v337, 20
      %v686 = vpop.permute.xlu0 %685
      %687 = vrot.lane.b32.xlu0 %v338, 20
      %v688 = vpop.permute.xlu0 %687
      %689 = vrot.lane.b32.xlu0 %v339, 20
      %v690 = vpop.permute.xlu0 %689
      %691 = vrot.lane.b32.xlu0 %v340, 20
      %v692 = vpop.permute.xlu0 %691
      %693 = vrot.lane.b32.xlu0 %v341, 20
      %v694 = vpop.permute.xlu0 %693
      %695 = vrot.lane.b32.xlu0 %v342, 20
      %v696 = vpop.permute.xlu0 %695
      %697 = vrot.lane.b32.xlu0 %v343, 20
      %v698 = vpop.permute.xlu0 %697
      %699 = vrot.lane.b32.xlu0 %v344, 20
      %v700 = vpop.permute.xlu0 %699
      %701 = vrot.lane.b32.xlu0 %v345, 20
      %v702 = vpop.permute.xlu0 %701
      %703 = vrot.lane.b32.xlu0 %v346, 20
      %v704 = vpop.permute.xlu0 %703
      %705 = vrot.lane.b32.xlu0 %v347, 20
      %v706 = vpop.permute.xlu0 %705
      %707 = vrot.lane.b32.xlu0 %v348, 20
      %v708 = vpop.permute.xlu0 %707
      %709 = vrot.lane.b32.xlu0 %v349, 20
      %v710 = vpop.permute.xlu0 %709
      %711 = vrot.lane.b32.xlu0 %v350, 20
      %v712 = vpop.permute.xlu0 %711
      %713 = vrot.lane.b32.xlu0 %v351, 20
      %v714 = vpop.permute.xlu0 %713
      %715 = vrot.lane.b32.xlu0 %v352, 20
      %v716 = vpop.permute.xlu0 %715
      %737 = vrot.lane.b32.xlu0 %v337, 24
      %v738 = vpop.permute.xlu0 %737
      %739 = vrot.lane.b32.xlu0 %v338, 24
      %v740 = vpop.permute.xlu0 %739
      %741 = vrot.lane.b32.xlu0 %v339, 24
      %v742 = vpop.permute.xlu0 %741
      %743 = vrot.lane.b32.xlu0 %v340, 24
      %v744 = vpop.permute.xlu0 %743
      %745 = vrot.lane.b32.xlu0 %v341, 24
      %v746 = vpop.permute.xlu0 %745
      %747 = vrot.lane.b32.xlu0 %v342, 24
      %v748 = vpop.permute.xlu0 %747
      %749 = vrot.lane.b32.xlu0 %v343, 24
      %v750 = vpop.permute.xlu0 %749
      %751 = vrot.lane.b32.xlu0 %v344, 24
      %v752 = vpop.permute.xlu0 %751
      %753 = vrot.lane.b32.xlu0 %v345, 24
      %v754 = vpop.permute.xlu0 %753
      %755 = vrot.lane.b32.xlu0 %v346, 24
      %v756 = vpop.permute.xlu0 %755
      %757 = vrot.lane.b32.xlu0 %v347, 24
      %v758 = vpop.permute.xlu0 %757
      %759 = vrot.lane.b32.xlu0 %v348, 24
      %v760 = vpop.permute.xlu0 %759
      %761 = vrot.lane.b32.xlu0 %v349, 24
      %v762 = vpop.permute.xlu0 %761
      %763 = vrot.lane.b32.xlu0 %v350, 24
      %v764 = vpop.permute.xlu0 %763
      %765 = vrot.lane.b32.xlu0 %v351, 24
      %v766 = vpop.permute.xlu0 %765
      %767 = vrot.lane.b32.xlu0 %v352, 24
      %v768 = vpop.permute.xlu0 %767
      %769 = vrot.lane.b32.xlu0 %v353, 24
      %v770 = vpop.permute.xlu0 %769
      %771 = vrot.lane.b32.xlu0 %v354, 24
      %v772 = vpop.permute.xlu0 %771
      %809 = vrot.lane.b32.xlu0 %v355, 28
      %v810 = vpop.permute.xlu0 %809
      %811 = vrot.lane.b32.xlu0 %v356, 28
      %v812 = vpop.permute.xlu0 %811
      %813 = vrot.lane.b32.xlu0 %v357, 28
      %v814 = vpop.permute.xlu0 %813
      %815 = vrot.lane.b32.xlu0 %v358, 28
      %v816 = vpop.permute.xlu0 %815
      %817 = vrot.lane.b32.xlu0 %v359, 28
      %v818 = vpop.permute.xlu0 %817
      %819 = vrot.lane.b32.xlu0 %v360, 28
      %v820 = vpop.permute.xlu0 %819
      %821 = vrot.lane.b32.xlu0 %v361, 28
      %v822 = vpop.permute.xlu0 %821
      %823 = vrot.lane.b32.xlu0 %v362, 28
      %v824 = vpop.permute.xlu0 %823
      %825 = vrot.lane.b32.xlu0 %v363, 28
      %v826 = vpop.permute.xlu0 %825
      %827 = vrot.lane.b32.xlu0 %v364, 28
      %v828 = vpop.permute.xlu0 %827
      %829 = vrot.lane.b32.xlu0 %v365, 28
      %v830 = vpop.permute.xlu0 %829
      %831 = vrot.lane.b32.xlu0 %v366, 28
      %v832 = vpop.permute.xlu0 %831
      %833 = vrot.lane.b32.xlu0 %v367, 28
      %v834 = vpop.permute.xlu0 %833
      %835 = vrot.lane.b32.xlu0 %v368, 28
      %v836 = vpop.permute.xlu0 %835
      %837 = vrot.lane.b32.xlu0 %v369, 28
      %v838 = vpop.permute.xlu0 %837
      %839 = vrot.lane.b32.xlu0 %v370, 28
      %v840 = vpop.permute.xlu0 %839
      %841 = vrot.lane.b32.xlu0 %v371, 28
      %v842 = vpop.permute.xlu0 %841
      %843 = vrot.lane.b32.xlu0 %v372, 28
      %v844 = vpop.permute.xlu0 %843
      %881 = vrot.lane.b32.xlu0 %v373, 32
      %v882 = vpop.permute.xlu0 %881
      %883 = vrot.lane.b32.xlu0 %v374, 32
      %v884 = vpop.permute.xlu0 %883
      %885 = vrot.lane.b32.xlu0 %v375, 32
      %v886 = vpop.permute.xlu0 %885
      %887 = vrot.lane.b32.xlu0 %v376, 32
      %v888 = vpop.permute.xlu0 %887
      %889 = vrot.lane.b32.xlu0 %v377, 32
      %v890 = vpop.permute.xlu0 %889
      %891 = vrot.lane.b32.xlu0 %v378, 32
      %v892 = vpop.permute.xlu0 %891
      %893 = vrot.lane.b32.xlu0 %v379, 32
      %v894 = vpop.permute.xlu0 %893
      %895 = vrot.lane.b32.xlu0 %v380, 32
      %v896 = vpop.permute.xlu0 %895
      %897 = vrot.lane.b32.xlu0 %v381, 32
      %v898 = vpop.permute.xlu0 %897
      %899 = vrot.lane.b32.xlu0 %v382, 32
      %v900 = vpop.permute.xlu0 %899
      %901 = vrot.lane.b32.xlu0 %v383, 32
      %v902 = vpop.permute.xlu0 %901
      %903 = vrot.lane.b32.xlu0 %v384, 32
      %v904 = vpop.permute.xlu0 %903
      %905 = vrot.lane.b32.xlu0 %v385, 32
      %v906 = vpop.permute.xlu0 %905
      %907 = vrot.lane.b32.xlu0 %v386, 32
      %v908 = vpop.permute.xlu0 %907
      %909 = vrot.lane.b32.xlu0 %v387, 32
      %v910 = vpop.permute.xlu0 %909
      %911 = vrot.lane.b32.xlu0 %v388, 32
      %v912 = vpop.permute.xlu0 %911
      %913 = vrot.lane.b32.xlu0 %v389, 32
      %v914 = vpop.permute.xlu0 %913
      %915 = vrot.lane.b32.xlu0 %v390, 32
      %v916 = vpop.permute.xlu0 %915
      %vm935 = vcmask 31744
      %v936 = vsel %vm935, %v261, %v410
      %v937 = vsel %vm935, %v262, %v412
      %v938 = vsel %vm935, %v263, %v414
      %v939 = vsel %vm935, %v264, %v416
      %v940 = vsel %vm935, %v265, %v418
      %v941 = vsel %vm935, %v266, %v420
      %v942 = vsel %vm935, %v267, %v422
      %v943 = vsel %vm935, %v268, %v424
      %v944 = vsel %vm935, %v269, %v426
      %v945 = vsel %vm935, %v270, %v428
      %v946 = vsel %vm935, %v271, %v430
      %v947 = vsel %vm935, %v272, %v432
      %v948 = vsel %vm935, %v273, %v434
      %v949 = vsel %vm935, %v274, %v436
      %v950 = vsel %vm935, %v275, %v438
      %v951 = vsel %vm935, %v276, %v440
      %v952 = vsel %vm935, %v277, %v442
      %v953 = vsel %vm935, %v278, %v444
      %vm954 = vcmask 64512
      %v955 = vsel %vm954, %v936, %v482
      %v956 = vsel %vm954, %v937, %v484
      %v957 = vsel %vm954, %v938, %v486
      %v958 = vsel %vm954, %v939, %v488
      %v959 = vsel %vm954, %v940, %v490
      %v960 = vsel %vm954, %v941, %v492
      %v961 = vsel %vm954, %v942, %v494
      %v962 = vsel %vm954, %v943, %v496
      %v963 = vsel %vm954, %v944, %v498
      %v964 = vsel %vm954, %v945, %v500
      %v965 = vsel %vm954, %v946, %v502
      %v966 = vsel %vm954, %v947, %v504
      %v967 = vsel %vm954, %v948, %v506
      %v968 = vsel %vm954, %v949, %v508
      %v969 = vsel %vm954, %v950, %v510
      %v970 = vsel %vm954, %v951, %v512
      %v971 = vsel %vm954, %v952, %v514
      %v972 = vsel %vm954, %v953, %v516
      %vm973 = vcmask 97280
      %v974 = vsel %vm973, %v955, %v538
      %v975 = vsel %vm973, %v956, %v540
      %v976 = vsel %vm973, %v957, %v542
      %v977 = vsel %vm973, %v958, %v544
      %v978 = vsel %vm973, %v959, %v546
      %v979 = vsel %vm973, %v960, %v548
      %v980 = vsel %vm973, %v961, %v550
      %v981 = vsel %vm973, %v962, %v552
      %v982 = vsel %vm973, %v963, %v554
      %v983 = vsel %vm973, %v964, %v556
      %v984 = vsel %vm973, %v965, %v558
      %v985 = vsel %vm973, %v966, %v560
      %v986 = vsel %vm973, %v967, %v562
      %v987 = vsel %vm973, %v968, %v564
      %v988 = vsel %vm973, %v969, %v566
      %v989 = vsel %vm973, %v970, %v568
      %v990 = vsel %vm973, %v971, %v570
      %v991 = vsel %vm973, %v972, %v572
      %vm992 = vcmask 130048
      %v993 = vsel %vm992, %v974, %v610
      %v994 = vsel %vm992, %v975, %v612
      %v995 = vsel %vm992, %v976, %v614
      %v996 = vsel %vm992, %v977, %v616
      %v997 = vsel %vm992, %v978, %v618
      %v998 = vsel %vm992, %v979, %v620
      %v999 = vsel %vm992, %v980, %v622
      %v1000 = vsel %vm992, %v981, %v624
      %v1001 = vsel %vm992, %v982, %v626
      %v1002 = vsel %vm992, %v983, %v628
      %v1003 = vsel %vm992, %v984, %v630
      %v1004 = vsel %vm992, %v985, %v632
      %v1005 = vsel %vm992, %v986, %v634
      %v1006 = vsel %vm992, %v987, %v636
      %v1007 = vsel %vm992, %v988, %v638
      %v1008 = vsel %vm992, %v989, %v640
      %v1009 = vsel %vm992, %v990, %v642
      %v1010 = vsel %vm992, %v991, %v644
      %vm1011 = vcmask 162816
      %v1012 = vsel %vm1011, %v993, %v682
      %v1013 = vsel %vm1011, %v994, %v684
      %v1014 = vsel %vm1011, %v995, %v686
      %v1015 = vsel %vm1011, %v996, %v688
      %v1016 = vsel %vm1011, %v997, %v690
      %v1017 = vsel %vm1011, %v998, %v692
      %v1018 = vsel %vm1011, %v999, %v694
      %v1019 = vsel %vm1011, %v1000, %v696
      %v1020 = vsel %vm1011, %v1001, %v698
      %v1021 = vsel %vm1011, %v1002, %v700
      %v1022 = vsel %vm1011, %v1003, %v702
      %v1023 = vsel %vm1011, %v1004, %v704
      %v1024 = vsel %vm1011, %v1005, %v706
      %v1025 = vsel %vm1011, %v1006, %v708
      %v1026 = vsel %vm1011, %v1007, %v710
      %v1027 = vsel %vm1011, %v1008, %v712
      %v1028 = vsel %vm1011, %v1009, %v714
      %v1029 = vsel %vm1011, %v1010, %v716
      %vm1030 = vcmask 195584
      %v1031 = vsel %vm1030, %v1012, %v738
      %v1032 = vsel %vm1030, %v1013, %v740
      %v1033 = vsel %vm1030, %v1014, %v742
      %v1034 = vsel %vm1030, %v1015, %v744
      %v1035 = vsel %vm1030, %v1016, %v746
      %v1036 = vsel %vm1030, %v1017, %v748
      %v1037 = vsel %vm1030, %v1018, %v750
      %v1038 = vsel %vm1030, %v1019, %v752
      %v1039 = vsel %vm1030, %v1020, %v754
      %v1040 = vsel %vm1030, %v1021, %v756
      %v1041 = vsel %vm1030, %v1022, %v758
      %v1042 = vsel %vm1030, %v1023, %v760
      %v1043 = vsel %vm1030, %v1024, %v762
      %v1044 = vsel %vm1030, %v1025, %v764
      %v1045 = vsel %vm1030, %v1026, %v766
      %v1046 = vsel %vm1030, %v1027, %v768
      %v1047 = vsel %vm1030, %v1028, %v770
      %v1048 = vsel %vm1030, %v1029, %v772
      %vm1049 = vcmask 228352
      %v1050 = vsel %vm1049, %v1031, %v810
      %v1051 = vsel %vm1049, %v1032, %v812
      %v1052 = vsel %vm1049, %v1033, %v814
      %v1053 = vsel %vm1049, %v1034, %v816
      %v1054 = vsel %vm1049, %v1035, %v818
      %v1055 = vsel %vm1049, %v1036, %v820
      %v1056 = vsel %vm1049, %v1037, %v822
      %v1057 = vsel %vm1049, %v1038, %v824
      %v1058 = vsel %vm1049, %v1039, %v826
      %v1059 = vsel %vm1049, %v1040, %v828
      %v1060 = vsel %vm1049, %v1041, %v830
      %v1061 = vsel %vm1049, %v1042, %v832
      %v1062 = vsel %vm1049, %v1043, %v834
      %v1063 = vsel %vm1049, %v1044, %v836
      %v1064 = vsel %vm1049, %v1045, %v838
      %v1065 = vsel %vm1049, %v1046, %v840
      %v1066 = vsel %vm1049, %v1047, %v842
      %v1067 = vsel %vm1049, %v1048, %v844
      %vm1068 = vcmask 261120
      %v1069 = vsel %vm1068, %v1050, %v882
      %v1070 = vsel %vm1068, %v1051, %v884
      %v1071 = vsel %vm1068, %v1052, %v886
      %v1072 = vsel %vm1068, %v1053, %v888
      %v1073 = vsel %vm1068, %v1054, %v890
      %v1074 = vsel %vm1068, %v1055, %v892
      %v1075 = vsel %vm1068, %v1056, %v894
      %v1076 = vsel %vm1068, %v1057, %v896
      %v1077 = vsel %vm1068, %v1058, %v898
      %v1078 = vsel %vm1068, %v1059, %v900
      %v1079 = vsel %vm1068, %v1060, %v902
      %v1080 = vsel %vm1068, %v1061, %v904
      %v1081 = vsel %vm1068, %v1062, %v906
      %v1082 = vsel %vm1068, %v1063, %v908
      %v1083 = vsel %vm1068, %v1064, %v910
      %v1084 = vsel %vm1068, %v1065, %v912
      %v1085 = vsel %vm1068, %v1066, %v914
      %v1086 = vsel %vm1068, %v1067, %v916
      %v1087 = vld [vmem:[%s1] sm:$0xff]
      %v1088 = vld [vmem:[%s1 + $0x8] sm:$0xff]
      %v1089 = vld [vmem:[%s1 + $0x10] sm:$0xff]
      %v1090 = vld [vmem:[%s1 + $0x18] sm:$0xff]
      %v1091 = vld [vmem:[%s1 + $0x20] sm:$0xf]
      %v1092 = vld [vmem:[%s2] sm:$0x1]
      %v1094 = vperm.slane %v1092, 0
      %vm1096 = vcmask 293888
      %v1098 = vsel %vm1096, %v1069, 0
      %v1101 = vsel %vm1096, %v1070, 0
      %v1104 = vsel %vm1096, %v1071, 0
      %v1107 = vsel %vm1096, %v1072, 0
      %v1110 = vsel %vm1096, %v1073, 0
      %v1113 = vsel %vm1096, %v1074, 0
      %v1116 = vsel %vm1096, %v1075, 0
      %v1119 = vsel %vm1096, %v1076, 0
      %v1122 = vsel %vm1096, %v1077, 0
      %v1125 = vsel %vm1096, %v1078, 0
      %v1128 = vsel %vm1096, %v1079, 0
      %v1131 = vsel %vm1096, %v1080, 0
      %v1134 = vsel %vm1096, %v1081, 0
      %v1137 = vsel %vm1096, %v1082, 0
      %v1140 = vsel %vm1096, %v1083, 0
      %v1143 = vsel %vm1096, %v1084, 0
      %v1146 = vsel %vm1096, %v1085, 0
      %v1149 = vsel %vm1096, %v1086, 0
      %vm1151 = vcmask 1043456
      %v1153 = vsel %vm1151, %v1091, 0
      %1155 = vmatpush.msra.mxu0 0.0
      %1156 = vmatpush.msra.mxu0 0.0
      %1157 = vmatpush.msra.mxu0 0.0
      %1158 = vmatpush.msra.mxu0 0.0
      %1159 = vmatpush.msra.mxu0 0.0
      %1160 = vmatpush.msra.mxu0 0.0
      %1161 = vmatpush.msra.mxu0 0.0
      %1162 = vmatpush.msra.mxu0 0.0
      %1163 = vmatpush.msra.mxu0 0.0
      %1164 = vmatpush.msra.mxu0 0.0
      %1165 = vmatpush.msra.mxu0 0.0
      %1166 = vmatpush.msra.mxu0 %v1153
      %1167 = vmatpush.msra.mxu0 %v1090
      %1168 = vmatpush.msra.mxu0 %v1089
      %1169 = vmatpush.msra.mxu0 %v1088
      %1170 = vmatpush.msra.mxu0 %v1087
      %1171 = vmatmul.f32.gmra.mxu0 %v1098
      %v1172 = vpop.f32.mrf.mxu0
      %v1173 = vadd.f32 %v1094, %v1172
      %1174 = vmatmul.f32.gmra.mxu0 %v1101
      %v1175 = vpop.f32.mrf.mxu0
      %v1176 = vadd.f32 %v1094, %v1175
      %1177 = vmatmul.f32.gmra.mxu0 %v1104
      %v1178 = vpop.f32.mrf.mxu0
      %v1179 = vadd.f32 %v1094, %v1178
      %1180 = vmatmul.f32.gmra.mxu0 %v1107
      %v1181 = vpop.f32.mrf.mxu0
      %v1182 = vadd.f32 %v1094, %v1181
      %1183 = vmatmul.f32.gmra.mxu0 %v1110
      %v1184 = vpop.f32.mrf.mxu0
      %v1185 = vadd.f32 %v1094, %v1184
      %1186 = vmatmul.f32.gmra.mxu0 %v1113
      %v1187 = vpop.f32.mrf.mxu0
      %v1188 = vadd.f32 %v1094, %v1187
      %1189 = vmatmul.f32.gmra.mxu0 %v1116
      %v1190 = vpop.f32.mrf.mxu0
      %v1191 = vadd.f32 %v1094, %v1190
      %1192 = vmatmul.f32.gmra.mxu0 %v1119
      %v1193 = vpop.f32.mrf.mxu0
      %v1194 = vadd.f32 %v1094, %v1193
      %1195 = vmatmul.f32.gmra.mxu0 %v1122
      %v1196 = vpop.f32.mrf.mxu0
      %v1197 = vadd.f32 %v1094, %v1196
      %1198 = vmatmul.f32.gmra.mxu0 %v1125
      %v1199 = vpop.f32.mrf.mxu0
      %v1200 = vadd.f32 %v1094, %v1199
      %1201 = vmatmul.f32.gmra.mxu0 %v1128
      %v1202 = vpop.f32.mrf.mxu0
      %v1203 = vadd.f32 %v1094, %v1202
      %1204 = vmatmul.f32.gmra.mxu0 %v1131
      %v1205 = vpop.f32.mrf.mxu0
      %v1206 = vadd.f32 %v1094, %v1205
      %1207 = vmatmul.f32.gmra.mxu0 %v1134
      %v1208 = vpop.f32.mrf.mxu0
      %v1209 = vadd.f32 %v1094, %v1208
      %1210 = vmatmul.f32.gmra.mxu0 %v1137
      %v1211 = vpop.f32.mrf.mxu0
      %v1212 = vadd.f32 %v1094, %v1211
      %1213 = vmatmul.f32.gmra.mxu0 %v1140
      %v1214 = vpop.f32.mrf.mxu0
      %v1215 = vadd.f32 %v1094, %v1214
      %1216 = vmatmul.f32.gmra.mxu0 %v1143
      %v1217 = vpop.f32.mrf.mxu0
      %v1218 = vadd.f32 %v1094, %v1217
      %1219 = vmatmul.f32.gmra.mxu0 %v1146
      %v1220 = vpop.f32.mrf.mxu0
      %v1221 = vadd.f32 %v1094, %v1220
      %1222 = vmatmul.f32.gmra.mxu0 %v1149
      %v1223 = vpop.f32.mrf.mxu0
      %v1224 = vadd.f32 %v1094, %v1223
      %1225 = vdwg.mxu0
      %vm1226 = vcmp.ge.f32.partialorder %v1173, 0.0
      %vm1227 = vcmp.ge.f32.partialorder %v1176, 0.0
      %vm1228 = vcmp.ge.f32.partialorder %v1179, 0.0
      %vm1229 = vcmp.ge.f32.partialorder %v1182, 0.0
      %vm1230 = vcmp.ge.f32.partialorder %v1185, 0.0
      %vm1231 = vcmp.ge.f32.partialorder %v1188, 0.0
      %vm1232 = vcmp.ge.f32.partialorder %v1191, 0.0
      %vm1233 = vcmp.ge.f32.partialorder %v1194, 0.0
      %vm1234 = vcmp.ge.f32.partialorder %v1197, 0.0
      %vm1235 = vcmp.ge.f32.partialorder %v1200, 0.0
      %vm1236 = vcmp.ge.f32.partialorder %v1203, 0.0
      %vm1237 = vcmp.ge.f32.partialorder %v1206, 0.0
      %vm1238 = vcmp.ge.f32.partialorder %v1209, 0.0
      %vm1239 = vcmp.ge.f32.partialorder %v1212, 0.0
      %vm1240 = vcmp.ge.f32.partialorder %v1215, 0.0
      %vm1241 = vcmp.ge.f32.partialorder %v1218, 0.0
      %vm1242 = vcmp.ge.f32.partialorder %v1221, 0.0
      %vm1243 = vcmp.ge.f32.partialorder %v1224, 0.0
      %v1244 = vmul.f32 %v1173, 0.01
      %v1245 = vmul.f32 %v1176, 0.01
      %v1246 = vmul.f32 %v1179, 0.01
      %v1247 = vmul.f32 %v1182, 0.01
      %v1248 = vmul.f32 %v1185, 0.01
      %v1249 = vmul.f32 %v1188, 0.01
      %v1250 = vmul.f32 %v1191, 0.01
      %v1251 = vmul.f32 %v1194, 0.01
      %v1252 = vmul.f32 %v1197, 0.01
      %v1253 = vmul.f32 %v1200, 0.01
      %v1254 = vmul.f32 %v1203, 0.01
      %v1255 = vmul.f32 %v1206, 0.01
      %v1256 = vmul.f32 %v1209, 0.01
      %v1257 = vmul.f32 %v1212, 0.01
      %v1258 = vmul.f32 %v1215, 0.01
      %v1259 = vmul.f32 %v1218, 0.01
      %v1260 = vmul.f32 %v1221, 0.01
      %v1261 = vmul.f32 %v1224, 0.01
      %v1262 = vsel %vm1226, %v1173, %v1244
      %v1263 = vsel %vm1227, %v1176, %v1245
      %v1264 = vsel %vm1228, %v1179, %v1246
      %v1265 = vsel %vm1229, %v1182, %v1247
      %v1266 = vsel %vm1230, %v1185, %v1248
      %v1267 = vsel %vm1231, %v1188, %v1249
      %v1268 = vsel %vm1232, %v1191, %v1250
      %v1269 = vsel %vm1233, %v1194, %v1251
      %v1270 = vsel %vm1234, %v1197, %v1252
      %v1271 = vsel %vm1235, %v1200, %v1253
      %v1272 = vsel %vm1236, %v1203, %v1254
      %v1273 = vsel %vm1237, %v1206, %v1255
      %v1274 = vsel %vm1238, %v1209, %v1256
      %v1275 = vsel %vm1239, %v1212, %v1257
      %v1276 = vsel %vm1240, %v1215, %v1258
      %v1277 = vsel %vm1241, %v1218, %v1259
      %v1278 = vsel %vm1242, %v1221, %v1260
      %v1279 = vsel %vm1243, %v1224, %v1261
      %v1280 = vld [vmem:[%s3] sm:$0x1]
      %v1282 = vperm.slane %v1280, 0
      %v1284 = vmul.f32 %v1262, %v1282
      %v1285 = vmul.f32 %v1263, %v1282
      %v1286 = vmul.f32 %v1264, %v1282
      %v1287 = vmul.f32 %v1265, %v1282
      %v1288 = vmul.f32 %v1266, %v1282
      %v1289 = vmul.f32 %v1267, %v1282
      %v1290 = vmul.f32 %v1268, %v1282
      %v1291 = vmul.f32 %v1269, %v1282
      %v1292 = vmul.f32 %v1270, %v1282
      %v1293 = vmul.f32 %v1271, %v1282
      %v1294 = vmul.f32 %v1272, %v1282
      %v1295 = vmul.f32 %v1273, %v1282
      %v1296 = vmul.f32 %v1274, %v1282
      %v1297 = vmul.f32 %v1275, %v1282
      %v1298 = vmul.f32 %v1276, %v1282
      %v1299 = vmul.f32 %v1277, %v1282
      %v1300 = vmul.f32 %v1278, %v1282
      %v1301 = vmul.f32 %v1279, %v1282
      %v1302 = vld [vmem:[%s4] sm:$0x1]
      %v1304 = vperm.slane %v1302, 0
      %v1306 = vadd.f32 %v1284, %v1304
      %v1307 = vadd.f32 %v1285, %v1304
      %v1308 = vadd.f32 %v1286, %v1304
      %v1309 = vadd.f32 %v1287, %v1304
      %v1310 = vadd.f32 %v1288, %v1304
      %v1311 = vadd.f32 %v1289, %v1304
      %v1312 = vadd.f32 %v1290, %v1304
      %v1313 = vadd.f32 %v1291, %v1304
      %v1314 = vadd.f32 %v1292, %v1304
      %v1315 = vadd.f32 %v1293, %v1304
      %v1316 = vadd.f32 %v1294, %v1304
      %v1317 = vadd.f32 %v1295, %v1304
      %v1318 = vadd.f32 %v1296, %v1304
      %v1319 = vadd.f32 %v1297, %v1304
      %v1320 = vadd.f32 %v1298, %v1304
      %v1321 = vadd.f32 %v1299, %v1304
      %v1322 = vadd.f32 %v1300, %v1304
      %v1323 = vadd.f32 %v1301, %v1304
      %1324 = vst.msk [vmem:[%s260] sm:$0xff] %vm954, %v1306
      %1325 = vst.msk [vmem:[%s260 + $0x8] sm:$0xff] %vm954, %v1307
      %1326 = vst.msk [vmem:[%s260 + $0x10] sm:$0xff] %vm954, %v1308
      %1327 = vst.msk [vmem:[%s260 + $0x18] sm:$0xff] %vm954, %v1309
      %1328 = vst.msk [vmem:[%s260 + $0x20] sm:$0xff] %vm954, %v1310
      %1329 = vst.msk [vmem:[%s260 + $0x28] sm:$0xff] %vm954, %v1311
      %1330 = vst.msk [vmem:[%s260 + $0x30] sm:$0xff] %vm954, %v1312
      %1331 = vst.msk [vmem:[%s260 + $0x38] sm:$0xff] %vm954, %v1313
      %1332 = vst.msk [vmem:[%s260 + $0x40] sm:$0xff] %vm954, %v1314
      %1333 = vst.msk [vmem:[%s260 + $0x48] sm:$0xff] %vm954, %v1315
      %1334 = vst.msk [vmem:[%s260 + $0x50] sm:$0xff] %vm954, %v1316
      %1335 = vst.msk [vmem:[%s260 + $0x58] sm:$0xff] %vm954, %v1317
      %1336 = vst.msk [vmem:[%s260 + $0x60] sm:$0xff] %vm954, %v1318
      %1337 = vst.msk [vmem:[%s260 + $0x68] sm:$0xff] %vm954, %v1319
      %1338 = vst.msk [vmem:[%s260 + $0x70] sm:$0xff] %vm954, %v1320
      %1339 = vst.msk [vmem:[%s260 + $0x78] sm:$0xff] %vm954, %v1321
      %1340 = vst.msk [vmem:[%s260 + $0x80] sm:$0xff] %vm954, %v1322
      %1341 = vst.msk [vmem:[%s260 + $0x88] sm:$0xff] %vm954, %v1323
      %p1342 = scmp.lt.s32.totalorder %s20, 1
      %s1343 = scalar_select %p1342, %s20, 1
      %p1344 = scmp.lt.s32.totalorder %s21, 1
      %s1345 = scalar_select %p1344, %s21, 1
      %s1346 = smul.addr %s1345, 18
      %s1347 = smul.addr %s1343, 36
      %s1348 = sadd.s32 %s1346, %s1347
      %s1349 = smul.addr %s1348, 8
      %s1350 = scalar_lea.vmem %s5, %s1349
      // Predicated region
      $region41: #{cnn_block_no_maxpool.3} parent=39 // pred_check
        %p1351 = pneg %p160
      $region42: #{cnn_block_no_maxpool.3} parent=39 // pred_check_branch
        %1353 = sbr.rel (%p1351) target = $region44
      $region43: #{cnn_block_no_maxpool.3} parent=39 // pred_region
        _
      $region44: #{cnn_block_no_maxpool.3} parent=39 // pred_fallthru
        _
    $region40: #{cnn_block_no_maxpool.3} parent=5 // pred_fallthru
      _
    %p1354 = scmp.le.s32.totalorder 2, %s11
    // Predicated region
    $region45: #{cnn_block_no_maxpool.3} parent=5 // pred_check
      %p1355 = pneg %p1354
    $region46: #{cnn_block_no_maxpool.3} parent=5 // pred_check_branch
      %1357 = sbr.rel (%p1355) target = $region48
    $region47: #{cnn_block_no_maxpool.3} parent=5 // pred_region
      %s1358 = ssub.s32 %s11, 2
      // Predicated region
      $region49: #{cnn_block_no_maxpool.3} parent=47 // pred_check
        %p1359 = pneg %p166
      $region50: #{cnn_block_no_maxpool.3} parent=47 // pred_check_branch
        %1361 = sbr.rel (%p1359) target = $region52
      $region51: #{cnn_block_no_maxpool.3} parent=47 // pred_region
        %p1362 = scmp.lt.s32.totalorder %s22, 1
        %s1363 = scalar_select %p1362, %s22, 1
        %p1364 = scmp.lt.s32.totalorder %s23, 1
        %s1365 = scalar_select %p1364, %s23, 1
        %s1366 = smul.addr %s1365, 18
        %s1367 = smul.addr %s1363, 36
        %s1368 = sadd.s32 %s1366, %s1367
        %s1369 = smul.addr %s1368, 8
        %s1370 = scalar_lea.vmem %s5, %s1369
      $region52: #{cnn_block_no_maxpool.3} parent=47 // pred_fallthru
        _
    $region48: #{cnn_block_no_maxpool.3} parent=5 // pred_fallthru
      _
  $region6: #{cnn_block_no_maxpool.3} parent=0 // loop_footer
    %s15 = sadd.s32 1, %s11
  $region7: #{cnn_block_no_maxpool.3} parent=0 // loop_footer_branch
    %10 = sbr.rel target = $region3
  $region8: #{cnn_block_no_maxpool.3} parent=0 // loop_exit
    _

// kernel: cnn_block_no_maxpool.2
$region0: #{cnn_block_no_maxpool.2}
  #allocation0 [shape = 'u32[]', space=smem, size = 0x4, offset = 0x4, fixed_abs, tag = 'smem constant byte address 0x4 - core index']
  #allocation1 [shape = 'u32[72,128]{1,0:T(1,128)}', space=vmem, size = 0x9000, scoped, tag = 'internal scratch']
  %s0 = inlined_call_operand.vmem [shape: f32[2,2,182,4], index: 0, kind: input, shape index: {}]
  %s1 = inlined_call_operand.vmem [shape: f32[36,128], index: 1, kind: input, shape index: {}]
  %s2 = inlined_call_operand.vmem [shape: f32[1,128], index: 2, kind: input, shape index: {}]
  %s3 = inlined_call_operand.vmem [shape: f32[2,2,2,128], index: 3, kind: output, shape index: {}]
  %s4 = sld [smem:[#allocation0]]
  $region45: #{cnn_block_no_maxpool.2} parent=0
    _
  %s6 = ssub.s32 1, %s4
  %s7 = scalar_select 0, %s6, %s4
  loop: start=0, step=1, limit=6
  $region2: #{cnn_block_no_maxpool.2} parent=0 // loop_pre_header
    _
  $region3: #{cnn_block_no_maxpool.2} parent=0 // loop_header
    %s9 = sphi 0, %s13
    %p10 = scmp.ge.s32.totalorder %s9, 6
    %s16 = sphi 0, %s28
    %s17 = sphi 0, %s24
    %s18 = sphi 0, %s16
    %s19 = sphi 0, %s17
    %s20 = sphi 0, %s18
    %s21 = sphi 0, %s19
    %s33 = sphi 0, %s35
    %s36 = sphi 0, %s33
    %s37 = sphi 0, %s36
    %s53 = sphi 0, %s37
    %s57 = sphi 0, %s57
    %s59 = sphi 0, %s57
    %s60 = sphi 0, %s59
    %s74 = sphi 0, %s60
    %s78 = sphi 0, %s78
    %s80 = sphi 0, %s78
    %s81 = sphi 0, %s80
    %s95 = sphi 0, %s81
    %s103 = sphi 0, %s105
    %s106 = sphi 0, %s103
    %s107 = sphi 0, %s106
    %s123 = sphi 0, %s107
  $region4: #{cnn_block_no_maxpool.2} parent=0 // loop_header_branch
    %12 = sbr.rel (%p10) target = $region8
  $region5: #{cnn_block_no_maxpool.2} parent=0 // loop_body
    %s14 = ssub.s32 %s9, 1
    %s15 = ssub.s32 %s9, 2
    %s22 = sadd.s32 1, %s17
    %p23 = scmp.ge.s32.totalorder %s22, 2
    %s24 = scalar_select %p23, 0, %s22
    %s25 = sadd.s32 1, %s16
    %s26 = scalar_select %p23, %s25, %s16
    %p27 = scmp.ge.s32.totalorder %s26, 2
    %s28 = scalar_select %p27, 0, %s26
    %s29 = ssub.s32 %s16, %s28
    %s30 = ssub.s32 %s17, %s24
    %s31 = sor.u32 %s29, %s30
    %p32 = scmp.eq.s32.totalorder %s31, 0
    %s34 = sadd.s32 %s33, 1
    %s35 = scalar_select %p32, %s33, %s34
    %p38 = pneg %p32
    %p39 = scmp.eq.s32.totalorder %s9, 3
    %p40 = por %p38, %p39
    %p41 = scmp.ne.s32.totalorder %s33, %s36
    %p42 = scmp.eq.s32.totalorder %s9, 0
    %p43 = por %p41, %p42
    %p44 = scmp.ne.s32.totalorder %s33, %s36
    %p45 = scmp.eq.s32.totalorder %s14, 3
    %p46 = por %p44, %p45
    %p47 = scmp.ne.s32.totalorder %s36, %s37
    %p48 = scmp.eq.s32.totalorder %s14, 0
    %p49 = por %p47, %p48
    %p50 = scmp.ne.s32.totalorder %s36, %s37
    %p51 = scmp.eq.s32.totalorder %s15, 3
    %p52 = por %p50, %p51
    %p54 = scmp.ne.s32.totalorder %s37, %s53
    %p55 = scmp.eq.s32.totalorder %s15, 0
    %p56 = por %p54, %p55
    %s58 = sadd.s32 %s57, 1
    %p61 = scmp.eq.s32.totalorder %s9, 3
    %p62 = scmp.ne.s32.totalorder %s57, %s59
    %p63 = scmp.eq.s32.totalorder %s9, 0
    %p64 = por %p62, %p63
    %p65 = scmp.ne.s32.totalorder %s57, %s59
    %p66 = scmp.eq.s32.totalorder %s14, 3
    %p67 = por %p65, %p66
    %p68 = scmp.ne.s32.totalorder %s59, %s60
    %p69 = scmp.eq.s32.totalorder %s14, 0
    %p70 = por %p68, %p69
    %p71 = scmp.ne.s32.totalorder %s59, %s60
    %p72 = scmp.eq.s32.totalorder %s15, 3
    %p73 = por %p71, %p72
    %p75 = scmp.ne.s32.totalorder %s60, %s74
    %p76 = scmp.eq.s32.totalorder %s15, 0
    %p77 = por %p75, %p76
    %s79 = sadd.s32 %s78, 1
    %p82 = scmp.eq.s32.totalorder %s9, 3
    %p83 = scmp.ne.s32.totalorder %s78, %s80
    %p84 = scmp.eq.s32.totalorder %s9, 0
    %p85 = por %p83, %p84
    %p86 = scmp.ne.s32.totalorder %s78, %s80
    %p87 = scmp.eq.s32.totalorder %s14, 3
    %p88 = por %p86, %p87
    %p89 = scmp.ne.s32.totalorder %s80, %s81
    %p90 = scmp.eq.s32.totalorder %s14, 0
    %p91 = por %p89, %p90
    %p92 = scmp.ne.s32.totalorder %s80, %s81
    %p93 = scmp.eq.s32.totalorder %s15, 3
    %p94 = por %p92, %p93
    %p96 = scmp.ne.s32.totalorder %s81, %s95
    %p97 = scmp.eq.s32.totalorder %s15, 0
    %p98 = por %p96, %p97
    %s99 = ssub.s32 %s16, %s28
    %s100 = ssub.s32 %s17, %s24
    %s101 = sor.u32 %s99, %s100
    %p102 = scmp.eq.s32.totalorder %s101, 0
    %s104 = sadd.s32 %s103, 1
    %s105 = scalar_select %p102, %s103, %s104
    %p108 = pneg %p102
    %p109 = scmp.eq.s32.totalorder %s9, 3
    %p110 = por %p108, %p109
    %p111 = scmp.ne.s32.totalorder %s103, %s106
    %p112 = scmp.eq.s32.totalorder %s9, 0
    %p113 = por %p111, %p112
    %p114 = scmp.ne.s32.totalorder %s103, %s106
    %p115 = scmp.eq.s32.totalorder %s14, 3
    %p116 = por %p114, %p115
    %p117 = scmp.ne.s32.totalorder %s106, %s107
    %p118 = scmp.eq.s32.totalorder %s14, 0
    %p119 = por %p117, %p118
    %p120 = scmp.ne.s32.totalorder %s106, %s107
    %p121 = scmp.eq.s32.totalorder %s15, 3
    %p122 = por %p120, %p121
    %p124 = scmp.ne.s32.totalorder %s107, %s123
    %p125 = scmp.eq.s32.totalorder %s15, 0
    %p126 = por %p124, %p125
    %p127 = scmp.le.s32.totalorder 1, %s9
    %p128 = scmp.lt.s32.totalorder %s9, 5
    %p129 = pnand %p127, %p128
    %p130 = pneg %p129
    // Predicated region
    $region9: #{cnn_block_no_maxpool.2} parent=5 // pred_check
      _
    $region10: #{cnn_block_no_maxpool.2} parent=5 // pred_check_branch
      %132 = sbr.rel (%p129) target = $region12
    $region11: #{cnn_block_no_maxpool.2} parent=5 // pred_region
      %s133 = ssub.s32 %s9, 1
      // Predicated region
      $region13: #{cnn_block_no_maxpool.2} parent=11 // pred_check
        %p134 = pneg %p70
      $region14: #{cnn_block_no_maxpool.2} parent=11 // pred_check_branch
        %136 = sbr.rel (%p134) target = $region16
      $region15: #{cnn_block_no_maxpool.2} parent=11 // pred_region
        _
      $region16: #{cnn_block_no_maxpool.2} parent=11 // pred_fallthru
        _
      // Predicated region
      $region17: #{cnn_block_no_maxpool.2} parent=11 // pred_check
        %p137 = pneg %p91
      $region18: #{cnn_block_no_maxpool.2} parent=11 // pred_check_branch
        %139 = sbr.rel (%p137) target = $region20
      $region19: #{cnn_block_no_maxpool.2} parent=11 // pred_region
        _
      $region20: #{cnn_block_no_maxpool.2} parent=11 // pred_fallthru
        _
    $region12: #{cnn_block_no_maxpool.2} parent=5 // pred_fallthru
      _
    %p140 = scmp.lt.s32.totalorder %s9, 4
    // Predicated region
    $region21: #{cnn_block_no_maxpool.2} parent=5 // pred_check
      %p141 = pneg %p140
    $region22: #{cnn_block_no_maxpool.2} parent=5 // pred_check_branch
      %143 = sbr.rel (%p141) target = $region24
    $region23: #{cnn_block_no_maxpool.2} parent=5 // pred_region
      // Predicated region
      $region25: #{cnn_block_no_maxpool.2} parent=23 // pred_check
        %p144 = pneg %p43
      $region26: #{cnn_block_no_maxpool.2} parent=23 // pred_check_branch
        %146 = sbr.rel (%p144) target = $region28
      $region27: #{cnn_block_no_maxpool.2} parent=23 // pred_region
        %p147 = scmp.lt.s32.totalorder %s16, 1
        %s148 = scalar_select %p147, %s16, 1
        %p149 = scmp.lt.s32.totalorder %s17, 1
        %s150 = scalar_select %p149, %s17, 1
        %s151 = smul.addr %s150, 23
        %s152 = smul.addr %s148, 46
        %s153 = sadd.s32 %s151, %s152
        %s154 = smul.addr %s153, 8
        %s155 = scalar_lea.vmem %s0, %s154
      $region28: #{cnn_block_no_maxpool.2} parent=23 // pred_fallthru
        _
    $region24: #{cnn_block_no_maxpool.2} parent=5 // pred_fallthru
      _
    %p156 = scmp.le.s32.totalorder 1, %s9
    %p157 = scmp.lt.s32.totalorder %s9, 5
    %p158 = pnand %p156, %p157
    %p159 = pneg %p158
    // Predicated region
    $region29: #{cnn_block_no_maxpool.2} parent=5 // pred_check
      _
    $region30: #{cnn_block_no_maxpool.2} parent=5 // pred_check_branch
      %161 = sbr.rel (%p158) target = $region32
    $region31: #{cnn_block_no_maxpool.2} parent=5 // pred_region
      %s162 = ssub.s32 %s9, 1
      %p163 = scmp.lt.s32.totalorder %s18, 1
      %s164 = scalar_select %p163, %s18, 1
      %p165 = scmp.lt.s32.totalorder %s19, 1
      %s166 = scalar_select %p165, %s19, 1
      %s167 = smul.addr %s166, 23
      %s168 = smul.addr %s164, 46
      %s169 = sadd.s32 %s167, %s168
      %s170 = smul.addr %s169, 8
      %s171 = scalar_lea.vmem %s0, %s170
      %p172 = pneg %p49
      %p173 = pneg %p46
      %p174 = pneg %p70
      %p175 = pneg %p67
      %p176 = pneg %p91
      %p177 = pneg %p88
      %p178 = pneg %p119
      %p179 = pneg %p116
      %p180 = scmp.lt.s32.totalorder %s18, 1
      %s181 = scalar_select %p180, %s18, 1
      %p182 = scmp.lt.s32.totalorder %s19, 1
      %s183 = scalar_select %p182, %s19, 1
      %s184 = smul.addr %s181, 2
      %s185 = sadd.s32 %s183, %s184
      %s186 = smul.addr %s185, 2
      %s187 = scalar_lea.vmem %s3, %s186
      %p188 = scmp.lt.s32.totalorder %s18, 1
      %s189 = scalar_select %p188, %s18, 1
      %p190 = scmp.lt.s32.totalorder %s19, 1
      %s191 = scalar_select %p190, %s19, 1
      %s192 = smul.addr %s191, 23
      %s193 = smul.addr %s189, 46
      %s194 = sadd.s32 %s192, %s193
      %s195 = smul.addr %s194, 8
      %s196 = scalar_lea.vmem %s0, %s195
      %p197 = scmp.lt.s32.totalorder %s18, 1
      %s198 = scalar_select %p197, %s18, 1
      %p199 = scmp.lt.s32.totalorder %s19, 1
      %s200 = scalar_select %p199, %s19, 1
      %s201 = smul.addr %s198, 2
      %s202 = sadd.s32 %s200, %s201
      %s203 = smul.addr %s202, 2
      %s204 = scalar_lea.vmem %s3, %s203
      %v205 = vld [vmem:[%s196] sm:$0xff]
      %v206 = vld [vmem:[%s196 + $0x8] sm:$0xff]
      %v207 = vld [vmem:[%s196 + $0x10] sm:$0xff]
      %v208 = vld [vmem:[%s196 + $0x18] sm:$0xff]
      %v209 = vld [vmem:[%s196 + $0x20] sm:$0xff]
      %v210 = vld [vmem:[%s196 + $0x28] sm:$0xff]
      %v211 = vld [vmem:[%s196 + $0x30] sm:$0xff]
      %v212 = vld [vmem:[%s196 + $0x38] sm:$0xff]
      %v213 = vld [vmem:[%s196 + $0x40] sm:$0xff]
      %v214 = vld [vmem:[%s196 + $0x48] sm:$0xff]
      %v215 = vld [vmem:[%s196 + $0x50] sm:$0xff]
      %v216 = vld [vmem:[%s196 + $0x58] sm:$0xff]
      %v217 = vld [vmem:[%s196 + $0x60] sm:$0xff]
      %v218 = vld [vmem:[%s196 + $0x68] sm:$0xff]
      %v219 = vld [vmem:[%s196 + $0x70] sm:$0xff]
      %v220 = vld [vmem:[%s196 + $0x78] sm:$0xff]
      %v221 = vld [vmem:[%s196 + $0x80] sm:$0xff]
      %v222 = vld [vmem:[%s196 + $0x88] sm:$0xff]
      %v223 = vld [vmem:[%s196 + $0x1] sm:$0xff]
      %v224 = vld [vmem:[%s196 + $0x9] sm:$0xff]
      %v225 = vld [vmem:[%s196 + $0x11] sm:$0xff]
      %v226 = vld [vmem:[%s196 + $0x19] sm:$0xff]
      %v227 = vld [vmem:[%s196 + $0x21] sm:$0xff]
      %v228 = vld [vmem:[%s196 + $0x29] sm:$0xff]
      %v229 = vld [vmem:[%s196 + $0x31] sm:$0xff]
      %v230 = vld [vmem:[%s196 + $0x39] sm:$0xff]
      %v231 = vld [vmem:[%s196 + $0x41] sm:$0xff]
      %v232 = vld [vmem:[%s196 + $0x49] sm:$0xff]
      %v233 = vld [vmem:[%s196 + $0x51] sm:$0xff]
      %v234 = vld [vmem:[%s196 + $0x59] sm:$0xff]
      %v235 = vld [vmem:[%s196 + $0x61] sm:$0xff]
      %v236 = vld [vmem:[%s196 + $0x69] sm:$0xff]
      %v237 = vld [vmem:[%s196 + $0x71] sm:$0xff]
      %v238 = vld [vmem:[%s196 + $0x79] sm:$0xff]
      %v239 = vld [vmem:[%s196 + $0x81] sm:$0xff]
      %v240 = vld [vmem:[%s196 + $0x89] sm:$0xff]
      %v241 = vld [vmem:[%s196 + $0x2] sm:$0xff]
      %v242 = vld [vmem:[%s196 + $0xa] sm:$0xff]
      %v243 = vld [vmem:[%s196 + $0x12] sm:$0xff]
      %v244 = vld [vmem:[%s196 + $0x1a] sm:$0xff]
      %v245 = vld [vmem:[%s196 + $0x22] sm:$0xff]
      %v246 = vld [vmem:[%s196 + $0x2a] sm:$0xff]
      %v247 = vld [vmem:[%s196 + $0x32] sm:$0xff]
      %v248 = vld [vmem:[%s196 + $0x3a] sm:$0xff]
      %v249 = vld [vmem:[%s196 + $0x42] sm:$0xff]
      %v250 = vld [vmem:[%s196 + $0x4a] sm:$0xff]
      %v251 = vld [vmem:[%s196 + $0x52] sm:$0xff]
      %v252 = vld [vmem:[%s196 + $0x5a] sm:$0xff]
      %v253 = vld [vmem:[%s196 + $0x62] sm:$0xff]
      %v254 = vld [vmem:[%s196 + $0x6a] sm:$0xff]
      %v255 = vld [vmem:[%s196 + $0x72] sm:$0xff]
      %v256 = vld [vmem:[%s196 + $0x7a] sm:$0xff]
      %v257 = vld [vmem:[%s196 + $0x82] sm:$0xff]
      %v258 = vld [vmem:[%s196 + $0x8a] sm:$0xff]
      %v259 = vld [vmem:[%s196 + $0x92] sm:$0xff]
      %v260 = vld [vmem:[%s196 + $0x9a] sm:$0xff]
      %v261 = vld [vmem:[%s196 + $0x13] sm:$0xff]
      %v262 = vld [vmem:[%s196 + $0x1b] sm:$0xff]
      %v263 = vld [vmem:[%s196 + $0x23] sm:$0xff]
      %v264 = vld [vmem:[%s196 + $0x2b] sm:$0xff]
      %v265 = vld [vmem:[%s196 + $0x33] sm:$0xff]
      %v266 = vld [vmem:[%s196 + $0x3b] sm:$0xff]
      %v267 = vld [vmem:[%s196 + $0x43] sm:$0xff]
      %v268 = vld [vmem:[%s196 + $0x4b] sm:$0xff]
      %v269 = vld [vmem:[%s196 + $0x53] sm:$0xff]
      %v270 = vld [vmem:[%s196 + $0x5b] sm:$0xff]
      %v271 = vld [vmem:[%s196 + $0x63] sm:$0xff]
      %v272 = vld [vmem:[%s196 + $0x6b] sm:$0xff]
      %v273 = vld [vmem:[%s196 + $0x73] sm:$0xff]
      %v274 = vld [vmem:[%s196 + $0x7b] sm:$0xff]
      %v275 = vld [vmem:[%s196 + $0x83] sm:$0xff]
      %v276 = vld [vmem:[%s196 + $0x8b] sm:$0xff]
      %v277 = vld [vmem:[%s196 + $0x93] sm:$0xff]
      %v278 = vld [vmem:[%s196 + $0x9b] sm:$0xff]
      %v279 = vld [vmem:[%s196 + $0x14] sm:$0xff]
      %v280 = vld [vmem:[%s196 + $0x1c] sm:$0xff]
      %v281 = vld [vmem:[%s196 + $0x24] sm:$0xff]
      %v282 = vld [vmem:[%s196 + $0x2c] sm:$0xff]
      %v283 = vld [vmem:[%s196 + $0x34] sm:$0xff]
      %v284 = vld [vmem:[%s196 + $0x3c] sm:$0xff]
      %v285 = vld [vmem:[%s196 + $0x44] sm:$0xff]
      %v286 = vld [vmem:[%s196 + $0x4c] sm:$0xff]
      %v287 = vld [vmem:[%s196 + $0x54] sm:$0xff]
      %v288 = vld [vmem:[%s196 + $0x5c] sm:$0xff]
      %v289 = vld [vmem:[%s196 + $0x64] sm:$0xff]
      %v290 = vld [vmem:[%s196 + $0x6c] sm:$0xff]
      %v291 = vld [vmem:[%s196 + $0x74] sm:$0xff]
      %v292 = vld [vmem:[%s196 + $0x7c] sm:$0xff]
      %v293 = vld [vmem:[%s196 + $0x84] sm:$0xff]
      %v294 = vld [vmem:[%s196 + $0x8c] sm:$0xff]
      %v295 = vld [vmem:[%s196 + $0x94] sm:$0xff]
      %v296 = vld [vmem:[%s196 + $0x9c] sm:$0xff]
      %v297 = vld [vmem:[%s196 + $0xa4] sm:$0xff]
      %v298 = vld [vmem:[%s196 + $0xac] sm:$0xff]
      %v299 = vld [vmem:[%s196 + $0x25] sm:$0xff]
      %v300 = vld [vmem:[%s196 + $0x2d] sm:$0xff]
      %v301 = vld [vmem:[%s196 + $0x35] sm:$0xff]
      %v302 = vld [vmem:[%s196 + $0x3d] sm:$0xff]
      %v303 = vld [vmem:[%s196 + $0x45] sm:$0xff]
      %v304 = vld [vmem:[%s196 + $0x4d] sm:$0xff]
      %v305 = vld [vmem:[%s196 + $0x55] sm:$0xff]
      %v306 = vld [vmem:[%s196 + $0x5d] sm:$0xff]
      %v307 = vld [vmem:[%s196 + $0x65] sm:$0xff]
      %v308 = vld [vmem:[%s196 + $0x6d] sm:$0xff]
      %v309 = vld [vmem:[%s196 + $0x75] sm:$0xff]
      %v310 = vld [vmem:[%s196 + $0x7d] sm:$0xff]
      %v311 = vld [vmem:[%s196 + $0x85] sm:$0xff]
      %v312 = vld [vmem:[%s196 + $0x8d] sm:$0xff]
      %v313 = vld [vmem:[%s196 + $0x95] sm:$0xff]
      %v314 = vld [vmem:[%s196 + $0x9d] sm:$0xff]
      %v315 = vld [vmem:[%s196 + $0xa5] sm:$0xff]
      %v316 = vld [vmem:[%s196 + $0xad] sm:$0xff]
      %v317 = vld [vmem:[%s196 + $0x26] sm:$0xff]
      %v318 = vld [vmem:[%s196 + $0x2e] sm:$0xff]
      %v319 = vld [vmem:[%s196 + $0x36] sm:$0xff]
      %v320 = vld [vmem:[%s196 + $0x3e] sm:$0xff]
      %v321 = vld [vmem:[%s196 + $0x46] sm:$0xff]
      %v322 = vld [vmem:[%s196 + $0x4e] sm:$0xff]
      %v323 = vld [vmem:[%s196 + $0x56] sm:$0xff]
      %v324 = vld [vmem:[%s196 + $0x5e] sm:$0xff]
      %v325 = vld [vmem:[%s196 + $0x66] sm:$0xff]
      %v326 = vld [vmem:[%s196 + $0x6e] sm:$0xff]
      %v327 = vld [vmem:[%s196 + $0x76] sm:$0xff]
      %v328 = vld [vmem:[%s196 + $0x7e] sm:$0xff]
      %v329 = vld [vmem:[%s196 + $0x86] sm:$0xff]
      %v330 = vld [vmem:[%s196 + $0x8e] sm:$0xff]
      %v331 = vld [vmem:[%s196 + $0x96] sm:$0xff]
      %v332 = vld [vmem:[%s196 + $0x9e] sm:$0xff]
      %v333 = vld [vmem:[%s196 + $0xa6] sm:$0xff]
      %v334 = vld [vmem:[%s196 + $0xae] sm:$0xff]
      %353 = vrot.lane.b32.xlu0 %v223, 4
      %v354 = vpop.permute.xlu0 %353
      %355 = vrot.lane.b32.xlu0 %v224, 4
      %v356 = vpop.permute.xlu0 %355
      %357 = vrot.lane.b32.xlu0 %v225, 4
      %v358 = vpop.permute.xlu0 %357
      %359 = vrot.lane.b32.xlu0 %v226, 4
      %v360 = vpop.permute.xlu0 %359
      %361 = vrot.lane.b32.xlu0 %v227, 4
      %v362 = vpop.permute.xlu0 %361
      %363 = vrot.lane.b32.xlu0 %v228, 4
      %v364 = vpop.permute.xlu0 %363
      %365 = vrot.lane.b32.xlu0 %v229, 4
      %v366 = vpop.permute.xlu0 %365
      %367 = vrot.lane.b32.xlu0 %v230, 4
      %v368 = vpop.permute.xlu0 %367
      %369 = vrot.lane.b32.xlu0 %v231, 4
      %v370 = vpop.permute.xlu0 %369
      %371 = vrot.lane.b32.xlu0 %v232, 4
      %v372 = vpop.permute.xlu0 %371
      %373 = vrot.lane.b32.xlu0 %v233, 4
      %v374 = vpop.permute.xlu0 %373
      %375 = vrot.lane.b32.xlu0 %v234, 4
      %v376 = vpop.permute.xlu0 %375
      %377 = vrot.lane.b32.xlu0 %v235, 4
      %v378 = vpop.permute.xlu0 %377
      %379 = vrot.lane.b32.xlu0 %v236, 4
      %v380 = vpop.permute.xlu0 %379
      %381 = vrot.lane.b32.xlu0 %v237, 4
      %v382 = vpop.permute.xlu0 %381
      %383 = vrot.lane.b32.xlu0 %v238, 4
      %v384 = vpop.permute.xlu0 %383
      %385 = vrot.lane.b32.xlu0 %v239, 4
      %v386 = vpop.permute.xlu0 %385
      %387 = vrot.lane.b32.xlu0 %v240, 4
      %v388 = vpop.permute.xlu0 %387
      %425 = vrot.lane.b32.xlu0 %v241, 8
      %v426 = vpop.permute.xlu0 %425
      %427 = vrot.lane.b32.xlu0 %v242, 8
      %v428 = vpop.permute.xlu0 %427
      %429 = vrot.lane.b32.xlu0 %v243, 8
      %v430 = vpop.permute.xlu0 %429
      %431 = vrot.lane.b32.xlu0 %v244, 8
      %v432 = vpop.permute.xlu0 %431
      %433 = vrot.lane.b32.xlu0 %v245, 8
      %v434 = vpop.permute.xlu0 %433
      %435 = vrot.lane.b32.xlu0 %v246, 8
      %v436 = vpop.permute.xlu0 %435
      %437 = vrot.lane.b32.xlu0 %v247, 8
      %v438 = vpop.permute.xlu0 %437
      %439 = vrot.lane.b32.xlu0 %v248, 8
      %v440 = vpop.permute.xlu0 %439
      %441 = vrot.lane.b32.xlu0 %v249, 8
      %v442 = vpop.permute.xlu0 %441
      %443 = vrot.lane.b32.xlu0 %v250, 8
      %v444 = vpop.permute.xlu0 %443
      %445 = vrot.lane.b32.xlu0 %v251, 8
      %v446 = vpop.permute.xlu0 %445
      %447 = vrot.lane.b32.xlu0 %v252, 8
      %v448 = vpop.permute.xlu0 %447
      %449 = vrot.lane.b32.xlu0 %v253, 8
      %v450 = vpop.permute.xlu0 %449
      %451 = vrot.lane.b32.xlu0 %v254, 8
      %v452 = vpop.permute.xlu0 %451
      %453 = vrot.lane.b32.xlu0 %v255, 8
      %v454 = vpop.permute.xlu0 %453
      %455 = vrot.lane.b32.xlu0 %v256, 8
      %v456 = vpop.permute.xlu0 %455
      %457 = vrot.lane.b32.xlu0 %v257, 8
      %v458 = vpop.permute.xlu0 %457
      %459 = vrot.lane.b32.xlu0 %v258, 8
      %v460 = vpop.permute.xlu0 %459
      %481 = vrot.lane.b32.xlu0 %v243, 12
      %v482 = vpop.permute.xlu0 %481
      %483 = vrot.lane.b32.xlu0 %v244, 12
      %v484 = vpop.permute.xlu0 %483
      %485 = vrot.lane.b32.xlu0 %v245, 12
      %v486 = vpop.permute.xlu0 %485
      %487 = vrot.lane.b32.xlu0 %v246, 12
      %v488 = vpop.permute.xlu0 %487
      %489 = vrot.lane.b32.xlu0 %v247, 12
      %v490 = vpop.permute.xlu0 %489
      %491 = vrot.lane.b32.xlu0 %v248, 12
      %v492 = vpop.permute.xlu0 %491
      %493 = vrot.lane.b32.xlu0 %v249, 12
      %v494 = vpop.permute.xlu0 %493
      %495 = vrot.lane.b32.xlu0 %v250, 12
      %v496 = vpop.permute.xlu0 %495
      %497 = vrot.lane.b32.xlu0 %v251, 12
      %v498 = vpop.permute.xlu0 %497
      %499 = vrot.lane.b32.xlu0 %v252, 12
      %v500 = vpop.permute.xlu0 %499
      %501 = vrot.lane.b32.xlu0 %v253, 12
      %v502 = vpop.permute.xlu0 %501
      %503 = vrot.lane.b32.xlu0 %v254, 12
      %v504 = vpop.permute.xlu0 %503
      %505 = vrot.lane.b32.xlu0 %v255, 12
      %v506 = vpop.permute.xlu0 %505
      %507 = vrot.lane.b32.xlu0 %v256, 12
      %v508 = vpop.permute.xlu0 %507
      %509 = vrot.lane.b32.xlu0 %v257, 12
      %v510 = vpop.permute.xlu0 %509
      %511 = vrot.lane.b32.xlu0 %v258, 12
      %v512 = vpop.permute.xlu0 %511
      %513 = vrot.lane.b32.xlu0 %v259, 12
      %v514 = vpop.permute.xlu0 %513
      %515 = vrot.lane.b32.xlu0 %v260, 12
      %v516 = vpop.permute.xlu0 %515
      %553 = vrot.lane.b32.xlu0 %v261, 16
      %v554 = vpop.permute.xlu0 %553
      %555 = vrot.lane.b32.xlu0 %v262, 16
      %v556 = vpop.permute.xlu0 %555
      %557 = vrot.lane.b32.xlu0 %v263, 16
      %v558 = vpop.permute.xlu0 %557
      %559 = vrot.lane.b32.xlu0 %v264, 16
      %v560 = vpop.permute.xlu0 %559
      %561 = vrot.lane.b32.xlu0 %v265, 16
      %v562 = vpop.permute.xlu0 %561
      %563 = vrot.lane.b32.xlu0 %v266, 16
      %v564 = vpop.permute.xlu0 %563
      %565 = vrot.lane.b32.xlu0 %v267, 16
      %v566 = vpop.permute.xlu0 %565
      %567 = vrot.lane.b32.xlu0 %v268, 16
      %v568 = vpop.permute.xlu0 %567
      %569 = vrot.lane.b32.xlu0 %v269, 16
      %v570 = vpop.permute.xlu0 %569
      %571 = vrot.lane.b32.xlu0 %v270, 16
      %v572 = vpop.permute.xlu0 %571
      %573 = vrot.lane.b32.xlu0 %v271, 16
      %v574 = vpop.permute.xlu0 %573
      %575 = vrot.lane.b32.xlu0 %v272, 16
      %v576 = vpop.permute.xlu0 %575
      %577 = vrot.lane.b32.xlu0 %v273, 16
      %v578 = vpop.permute.xlu0 %577
      %579 = vrot.lane.b32.xlu0 %v274, 16
      %v580 = vpop.permute.xlu0 %579
      %581 = vrot.lane.b32.xlu0 %v275, 16
      %v582 = vpop.permute.xlu0 %581
      %583 = vrot.lane.b32.xlu0 %v276, 16
      %v584 = vpop.permute.xlu0 %583
      %585 = vrot.lane.b32.xlu0 %v277, 16
      %v586 = vpop.permute.xlu0 %585
      %587 = vrot.lane.b32.xlu0 %v278, 16
      %v588 = vpop.permute.xlu0 %587
      %625 = vrot.lane.b32.xlu0 %v279, 20
      %v626 = vpop.permute.xlu0 %625
      %627 = vrot.lane.b32.xlu0 %v280, 20
      %v628 = vpop.permute.xlu0 %627
      %629 = vrot.lane.b32.xlu0 %v281, 20
      %v630 = vpop.permute.xlu0 %629
      %631 = vrot.lane.b32.xlu0 %v282, 20
      %v632 = vpop.permute.xlu0 %631
      %633 = vrot.lane.b32.xlu0 %v283, 20
      %v634 = vpop.permute.xlu0 %633
      %635 = vrot.lane.b32.xlu0 %v284, 20
      %v636 = vpop.permute.xlu0 %635
      %637 = vrot.lane.b32.xlu0 %v285, 20
      %v638 = vpop.permute.xlu0 %637
      %639 = vrot.lane.b32.xlu0 %v286, 20
      %v640 = vpop.permute.xlu0 %639
      %641 = vrot.lane.b32.xlu0 %v287, 20
      %v642 = vpop.permute.xlu0 %641
      %643 = vrot.lane.b32.xlu0 %v288, 20
      %v644 = vpop.permute.xlu0 %643
      %645 = vrot.lane.b32.xlu0 %v289, 20
      %v646 = vpop.permute.xlu0 %645
      %647 = vrot.lane.b32.xlu0 %v290, 20
      %v648 = vpop.permute.xlu0 %647
      %649 = vrot.lane.b32.xlu0 %v291, 20
      %v650 = vpop.permute.xlu0 %649
      %651 = vrot.lane.b32.xlu0 %v292, 20
      %v652 = vpop.permute.xlu0 %651
      %653 = vrot.lane.b32.xlu0 %v293, 20
      %v654 = vpop.permute.xlu0 %653
      %655 = vrot.lane.b32.xlu0 %v294, 20
      %v656 = vpop.permute.xlu0 %655
      %657 = vrot.lane.b32.xlu0 %v295, 20
      %v658 = vpop.permute.xlu0 %657
      %659 = vrot.lane.b32.xlu0 %v296, 20
      %v660 = vpop.permute.xlu0 %659
      %681 = vrot.lane.b32.xlu0 %v281, 24
      %v682 = vpop.permute.xlu0 %681
      %683 = vrot.lane.b32.xlu0 %v282, 24
      %v684 = vpop.permute.xlu0 %683
      %685 = vrot.lane.b32.xlu0 %v283, 24
      %v686 = vpop.permute.xlu0 %685
      %687 = vrot.lane.b32.xlu0 %v284, 24
      %v688 = vpop.permute.xlu0 %687
      %689 = vrot.lane.b32.xlu0 %v285, 24
      %v690 = vpop.permute.xlu0 %689
      %691 = vrot.lane.b32.xlu0 %v286, 24
      %v692 = vpop.permute.xlu0 %691
      %693 = vrot.lane.b32.xlu0 %v287, 24
      %v694 = vpop.permute.xlu0 %693
      %695 = vrot.lane.b32.xlu0 %v288, 24
      %v696 = vpop.permute.xlu0 %695
      %697 = vrot.lane.b32.xlu0 %v289, 24
      %v698 = vpop.permute.xlu0 %697
      %699 = vrot.lane.b32.xlu0 %v290, 24
      %v700 = vpop.permute.xlu0 %699
      %701 = vrot.lane.b32.xlu0 %v291, 24
      %v702 = vpop.permute.xlu0 %701
      %703 = vrot.lane.b32.xlu0 %v292, 24
      %v704 = vpop.permute.xlu0 %703
      %705 = vrot.lane.b32.xlu0 %v293, 24
      %v706 = vpop.permute.xlu0 %705
      %707 = vrot.lane.b32.xlu0 %v294, 24
      %v708 = vpop.permute.xlu0 %707
      %709 = vrot.lane.b32.xlu0 %v295, 24
      %v710 = vpop.permute.xlu0 %709
      %711 = vrot.lane.b32.xlu0 %v296, 24
      %v712 = vpop.permute.xlu0 %711
      %713 = vrot.lane.b32.xlu0 %v297, 24
      %v714 = vpop.permute.xlu0 %713
      %715 = vrot.lane.b32.xlu0 %v298, 24
      %v716 = vpop.permute.xlu0 %715
      %753 = vrot.lane.b32.xlu0 %v299, 28
      %v754 = vpop.permute.xlu0 %753
      %755 = vrot.lane.b32.xlu0 %v300, 28
      %v756 = vpop.permute.xlu0 %755
      %757 = vrot.lane.b32.xlu0 %v301, 28
      %v758 = vpop.permute.xlu0 %757
      %759 = vrot.lane.b32.xlu0 %v302, 28
      %v760 = vpop.permute.xlu0 %759
      %761 = vrot.lane.b32.xlu0 %v303, 28
      %v762 = vpop.permute.xlu0 %761
      %763 = vrot.lane.b32.xlu0 %v304, 28
      %v764 = vpop.permute.xlu0 %763
      %765 = vrot.lane.b32.xlu0 %v305, 28
      %v766 = vpop.permute.xlu0 %765
      %767 = vrot.lane.b32.xlu0 %v306, 28
      %v768 = vpop.permute.xlu0 %767
      %769 = vrot.lane.b32.xlu0 %v307, 28
      %v770 = vpop.permute.xlu0 %769
      %771 = vrot.lane.b32.xlu0 %v308, 28
      %v772 = vpop.permute.xlu0 %771
      %773 = vrot.lane.b32.xlu0 %v309, 28
      %v774 = vpop.permute.xlu0 %773
      %775 = vrot.lane.b32.xlu0 %v310, 28
      %v776 = vpop.permute.xlu0 %775
      %777 = vrot.lane.b32.xlu0 %v311, 28
      %v778 = vpop.permute.xlu0 %777
      %779 = vrot.lane.b32.xlu0 %v312, 28
      %v780 = vpop.permute.xlu0 %779
      %781 = vrot.lane.b32.xlu0 %v313, 28
      %v782 = vpop.permute.xlu0 %781
      %783 = vrot.lane.b32.xlu0 %v314, 28
      %v784 = vpop.permute.xlu0 %783
      %785 = vrot.lane.b32.xlu0 %v315, 28
      %v786 = vpop.permute.xlu0 %785
      %787 = vrot.lane.b32.xlu0 %v316, 28
      %v788 = vpop.permute.xlu0 %787
      %825 = vrot.lane.b32.xlu0 %v317, 32
      %v826 = vpop.permute.xlu0 %825
      %827 = vrot.lane.b32.xlu0 %v318, 32
      %v828 = vpop.permute.xlu0 %827
      %829 = vrot.lane.b32.xlu0 %v319, 32
      %v830 = vpop.permute.xlu0 %829
      %831 = vrot.lane.b32.xlu0 %v320, 32
      %v832 = vpop.permute.xlu0 %831
      %833 = vrot.lane.b32.xlu0 %v321, 32
      %v834 = vpop.permute.xlu0 %833
      %835 = vrot.lane.b32.xlu0 %v322, 32
      %v836 = vpop.permute.xlu0 %835
      %837 = vrot.lane.b32.xlu0 %v323, 32
      %v838 = vpop.permute.xlu0 %837
      %839 = vrot.lane.b32.xlu0 %v324, 32
      %v840 = vpop.permute.xlu0 %839
      %841 = vrot.lane.b32.xlu0 %v325, 32
      %v842 = vpop.permute.xlu0 %841
      %843 = vrot.lane.b32.xlu0 %v326, 32
      %v844 = vpop.permute.xlu0 %843
      %845 = vrot.lane.b32.xlu0 %v327, 32
      %v846 = vpop.permute.xlu0 %845
      %847 = vrot.lane.b32.xlu0 %v328, 32
      %v848 = vpop.permute.xlu0 %847
      %849 = vrot.lane.b32.xlu0 %v329, 32
      %v850 = vpop.permute.xlu0 %849
      %851 = vrot.lane.b32.xlu0 %v330, 32
      %v852 = vpop.permute.xlu0 %851
      %853 = vrot.lane.b32.xlu0 %v331, 32
      %v854 = vpop.permute.xlu0 %853
      %855 = vrot.lane.b32.xlu0 %v332, 32
      %v856 = vpop.permute.xlu0 %855
      %857 = vrot.lane.b32.xlu0 %v333, 32
      %v858 = vpop.permute.xlu0 %857
      %859 = vrot.lane.b32.xlu0 %v334, 32
      %v860 = vpop.permute.xlu0 %859
      %vm879 = vcmask 31744
      %v880 = vsel %vm879, %v205, %v354
      %v881 = vsel %vm879, %v206, %v356
      %v882 = vsel %vm879, %v207, %v358
      %v883 = vsel %vm879, %v208, %v360
      %v884 = vsel %vm879, %v209, %v362
      %v885 = vsel %vm879, %v210, %v364
      %v886 = vsel %vm879, %v211, %v366
      %v887 = vsel %vm879, %v212, %v368
      %v888 = vsel %vm879, %v213, %v370
      %v889 = vsel %vm879, %v214, %v372
      %v890 = vsel %vm879, %v215, %v374
      %v891 = vsel %vm879, %v216, %v376
      %v892 = vsel %vm879, %v217, %v378
      %v893 = vsel %vm879, %v218, %v380
      %v894 = vsel %vm879, %v219, %v382
      %v895 = vsel %vm879, %v220, %v384
      %v896 = vsel %vm879, %v221, %v386
      %v897 = vsel %vm879, %v222, %v388
      %vm898 = vcmask 64512
      %v899 = vsel %vm898, %v880, %v426
      %v900 = vsel %vm898, %v881, %v428
      %v901 = vsel %vm898, %v882, %v430
      %v902 = vsel %vm898, %v883, %v432
      %v903 = vsel %vm898, %v884, %v434
      %v904 = vsel %vm898, %v885, %v436
      %v905 = vsel %vm898, %v886, %v438
      %v906 = vsel %vm898, %v887, %v440
      %v907 = vsel %vm898, %v888, %v442
      %v908 = vsel %vm898, %v889, %v444
      %v909 = vsel %vm898, %v890, %v446
      %v910 = vsel %vm898, %v891, %v448
      %v911 = vsel %vm898, %v892, %v450
      %v912 = vsel %vm898, %v893, %v452
      %v913 = vsel %vm898, %v894, %v454
      %v914 = vsel %vm898, %v895, %v456
      %v915 = vsel %vm898, %v896, %v458
      %v916 = vsel %vm898, %v897, %v460
      %vm917 = vcmask 97280
      %v918 = vsel %vm917, %v899, %v482
      %v919 = vsel %vm917, %v900, %v484
      %v920 = vsel %vm917, %v901, %v486
      %v921 = vsel %vm917, %v902, %v488
      %v922 = vsel %vm917, %v903, %v490
      %v923 = vsel %vm917, %v904, %v492
      %v924 = vsel %vm917, %v905, %v494
      %v925 = vsel %vm917, %v906, %v496
      %v926 = vsel %vm917, %v907, %v498
      %v927 = vsel %vm917, %v908, %v500
      %v928 = vsel %vm917, %v909, %v502
      %v929 = vsel %vm917, %v910, %v504
      %v930 = vsel %vm917, %v911, %v506
      %v931 = vsel %vm917, %v912, %v508
      %v932 = vsel %vm917, %v913, %v510
      %v933 = vsel %vm917, %v914, %v512
      %v934 = vsel %vm917, %v915, %v514
      %v935 = vsel %vm917, %v916, %v516
      %vm936 = vcmask 130048
      %v937 = vsel %vm936, %v918, %v554
      %v938 = vsel %vm936, %v919, %v556
      %v939 = vsel %vm936, %v920, %v558
      %v940 = vsel %vm936, %v921, %v560
      %v941 = vsel %vm936, %v922, %v562
      %v942 = vsel %vm936, %v923, %v564
      %v943 = vsel %vm936, %v924, %v566
      %v944 = vsel %vm936, %v925, %v568
      %v945 = vsel %vm936, %v926, %v570
      %v946 = vsel %vm936, %v927, %v572
      %v947 = vsel %vm936, %v928, %v574
      %v948 = vsel %vm936, %v929, %v576
      %v949 = vsel %vm936, %v930, %v578
      %v950 = vsel %vm936, %v931, %v580
      %v951 = vsel %vm936, %v932, %v582
      %v952 = vsel %vm936, %v933, %v584
      %v953 = vsel %vm936, %v934, %v586
      %v954 = vsel %vm936, %v935, %v588
      %vm955 = vcmask 162816
      %v956 = vsel %vm955, %v937, %v626
      %v957 = vsel %vm955, %v938, %v628
      %v958 = vsel %vm955, %v939, %v630
      %v959 = vsel %vm955, %v940, %v632
      %v960 = vsel %vm955, %v941, %v634
      %v961 = vsel %vm955, %v942, %v636
      %v962 = vsel %vm955, %v943, %v638
      %v963 = vsel %vm955, %v944, %v640
      %v964 = vsel %vm955, %v945, %v642
      %v965 = vsel %vm955, %v946, %v644
      %v966 = vsel %vm955, %v947, %v646
      %v967 = vsel %vm955, %v948, %v648
      %v968 = vsel %vm955, %v949, %v650
      %v969 = vsel %vm955, %v950, %v652
      %v970 = vsel %vm955, %v951, %v654
      %v971 = vsel %vm955, %v952, %v656
      %v972 = vsel %vm955, %v953, %v658
      %v973 = vsel %vm955, %v954, %v660
      %vm974 = vcmask 195584
      %v975 = vsel %vm974, %v956, %v682
      %v976 = vsel %vm974, %v957, %v684
      %v977 = vsel %vm974, %v958, %v686
      %v978 = vsel %vm974, %v959, %v688
      %v979 = vsel %vm974, %v960, %v690
      %v980 = vsel %vm974, %v961, %v692
      %v981 = vsel %vm974, %v962, %v694
      %v982 = vsel %vm974, %v963, %v696
      %v983 = vsel %vm974, %v964, %v698
      %v984 = vsel %vm974, %v965, %v700
      %v985 = vsel %vm974, %v966, %v702
      %v986 = vsel %vm974, %v967, %v704
      %v987 = vsel %vm974, %v968, %v706
      %v988 = vsel %vm974, %v969, %v708
      %v989 = vsel %vm974, %v970, %v710
      %v990 = vsel %vm974, %v971, %v712
      %v991 = vsel %vm974, %v972, %v714
      %v992 = vsel %vm974, %v973, %v716
      %vm993 = vcmask 228352
      %v994 = vsel %vm993, %v975, %v754
      %v995 = vsel %vm993, %v976, %v756
      %v996 = vsel %vm993, %v977, %v758
      %v997 = vsel %vm993, %v978, %v760
      %v998 = vsel %vm993, %v979, %v762
      %v999 = vsel %vm993, %v980, %v764
      %v1000 = vsel %vm993, %v981, %v766
      %v1001 = vsel %vm993, %v982, %v768
      %v1002 = vsel %vm993, %v983, %v770
      %v1003 = vsel %vm993, %v984, %v772
      %v1004 = vsel %vm993, %v985, %v774
      %v1005 = vsel %vm993, %v986, %v776
      %v1006 = vsel %vm993, %v987, %v778
      %v1007 = vsel %vm993, %v988, %v780
      %v1008 = vsel %vm993, %v989, %v782
      %v1009 = vsel %vm993, %v990, %v784
      %v1010 = vsel %vm993, %v991, %v786
      %v1011 = vsel %vm993, %v992, %v788
      %vm1012 = vcmask 261120
      %v1013 = vsel %vm1012, %v994, %v826
      %v1014 = vsel %vm1012, %v995, %v828
      %v1015 = vsel %vm1012, %v996, %v830
      %v1016 = vsel %vm1012, %v997, %v832
      %v1017 = vsel %vm1012, %v998, %v834
      %v1018 = vsel %vm1012, %v999, %v836
      %v1019 = vsel %vm1012, %v1000, %v838
      %v1020 = vsel %vm1012, %v1001, %v840
      %v1021 = vsel %vm1012, %v1002, %v842
      %v1022 = vsel %vm1012, %v1003, %v844
      %v1023 = vsel %vm1012, %v1004, %v846
      %v1024 = vsel %vm1012, %v1005, %v848
      %v1025 = vsel %vm1012, %v1006, %v850
      %v1026 = vsel %vm1012, %v1007, %v852
      %v1027 = vsel %vm1012, %v1008, %v854
      %v1028 = vsel %vm1012, %v1009, %v856
      %v1029 = vsel %vm1012, %v1010, %v858
      %v1030 = vsel %vm1012, %v1011, %v860
      %v1031 = vld [vmem:[%s1] sm:$0xff]
      %v1032 = vld [vmem:[%s1 + $0x8] sm:$0xff]
      %v1033 = vld [vmem:[%s1 + $0x10] sm:$0xff]
      %v1034 = vld [vmem:[%s1 + $0x18] sm:$0xff]
      %v1035 = vld [vmem:[%s1 + $0x20] sm:$0xf]
      %v1036 = vld [vmem:[%s2] sm:$0x1]
      %v1038 = vperm.slane %v1036, 0
      %vm1040 = vcmask 293888
      %v1042 = vsel %vm1040, %v1013, 0
      %v1045 = vsel %vm1040, %v1014, 0
      %v1048 = vsel %vm1040, %v1015, 0
      %v1051 = vsel %vm1040, %v1016, 0
      %v1054 = vsel %vm1040, %v1017, 0
      %v1057 = vsel %vm1040, %v1018, 0
      %v1060 = vsel %vm1040, %v1019, 0
      %v1063 = vsel %vm1040, %v1020, 0
      %v1066 = vsel %vm1040, %v1021, 0
      %v1069 = vsel %vm1040, %v1022, 0
      %v1072 = vsel %vm1040, %v1023, 0
      %v1075 = vsel %vm1040, %v1024, 0
      %v1078 = vsel %vm1040, %v1025, 0
      %v1081 = vsel %vm1040, %v1026, 0
      %v1084 = vsel %vm1040, %v1027, 0
      %v1087 = vsel %vm1040, %v1028, 0
      %v1090 = vsel %vm1040, %v1029, 0
      %v1093 = vsel %vm1040, %v1030, 0
      %vm1095 = vcmask 1043456
      %v1097 = vsel %vm1095, %v1035, 0
      %1099 = vmatpush.msra.mxu0 0.0
      %1100 = vmatpush.msra.mxu0 0.0
      %1101 = vmatpush.msra.mxu0 0.0
      %1102 = vmatpush.msra.mxu0 0.0
      %1103 = vmatpush.msra.mxu0 0.0
      %1104 = vmatpush.msra.mxu0 0.0
      %1105 = vmatpush.msra.mxu0 0.0
      %1106 = vmatpush.msra.mxu0 0.0
      %1107 = vmatpush.msra.mxu0 0.0
      %1108 = vmatpush.msra.mxu0 0.0
      %1109 = vmatpush.msra.mxu0 0.0
      %1110 = vmatpush.msra.mxu0 %v1097
      %1111 = vmatpush.msra.mxu0 %v1034
      %1112 = vmatpush.msra.mxu0 %v1033
      %1113 = vmatpush.msra.mxu0 %v1032
      %1114 = vmatpush.msra.mxu0 %v1031
      %1115 = vmatmul.f32.gmra.mxu0 %v1042
      %v1116 = vpop.f32.mrf.mxu0
      %v1117 = vadd.f32 %v1038, %v1116
      %1118 = vmatmul.f32.gmra.mxu0 %v1045
      %v1119 = vpop.f32.mrf.mxu0
      %v1120 = vadd.f32 %v1038, %v1119
      %1121 = vmatmul.f32.gmra.mxu0 %v1048
      %v1122 = vpop.f32.mrf.mxu0
      %v1123 = vadd.f32 %v1038, %v1122
      %1124 = vmatmul.f32.gmra.mxu0 %v1051
      %v1125 = vpop.f32.mrf.mxu0
      %v1126 = vadd.f32 %v1038, %v1125
      %1127 = vmatmul.f32.gmra.mxu0 %v1054
      %v1128 = vpop.f32.mrf.mxu0
      %v1129 = vadd.f32 %v1038, %v1128
      %1130 = vmatmul.f32.gmra.mxu0 %v1057
      %v1131 = vpop.f32.mrf.mxu0
      %v1132 = vadd.f32 %v1038, %v1131
      %1133 = vmatmul.f32.gmra.mxu0 %v1060
      %v1134 = vpop.f32.mrf.mxu0
      %v1135 = vadd.f32 %v1038, %v1134
      %1136 = vmatmul.f32.gmra.mxu0 %v1063
      %v1137 = vpop.f32.mrf.mxu0
      %v1138 = vadd.f32 %v1038, %v1137
      %1139 = vmatmul.f32.gmra.mxu0 %v1066
      %v1140 = vpop.f32.mrf.mxu0
      %v1141 = vadd.f32 %v1038, %v1140
      %1142 = vmatmul.f32.gmra.mxu0 %v1069
      %v1143 = vpop.f32.mrf.mxu0
      %v1144 = vadd.f32 %v1038, %v1143
      %1145 = vmatmul.f32.gmra.mxu0 %v1072
      %v1146 = vpop.f32.mrf.mxu0
      %v1147 = vadd.f32 %v1038, %v1146
      %1148 = vmatmul.f32.gmra.mxu0 %v1075
      %v1149 = vpop.f32.mrf.mxu0
      %v1150 = vadd.f32 %v1038, %v1149
      %1151 = vmatmul.f32.gmra.mxu0 %v1078
      %v1152 = vpop.f32.mrf.mxu0
      %v1153 = vadd.f32 %v1038, %v1152
      %1154 = vmatmul.f32.gmra.mxu0 %v1081
      %v1155 = vpop.f32.mrf.mxu0
      %v1156 = vadd.f32 %v1038, %v1155
      %1157 = vmatmul.f32.gmra.mxu0 %v1084
      %v1158 = vpop.f32.mrf.mxu0
      %v1159 = vadd.f32 %v1038, %v1158
      %1160 = vmatmul.f32.gmra.mxu0 %v1087
      %v1161 = vpop.f32.mrf.mxu0
      %v1162 = vadd.f32 %v1038, %v1161
      %1163 = vmatmul.f32.gmra.mxu0 %v1090
      %v1164 = vpop.f32.mrf.mxu0
      %v1165 = vadd.f32 %v1038, %v1164
      %1166 = vmatmul.f32.gmra.mxu0 %v1093
      %v1167 = vpop.f32.mrf.mxu0
      %v1168 = vadd.f32 %v1038, %v1167
      %1169 = vdwg.mxu0
      %vm1170 = vcmp.ge.f32.partialorder %v1117, 0.0
      %vm1171 = vcmp.ge.f32.partialorder %v1120, 0.0
      %vm1172 = vcmp.ge.f32.partialorder %v1123, 0.0
      %vm1173 = vcmp.ge.f32.partialorder %v1126, 0.0
      %vm1174 = vcmp.ge.f32.partialorder %v1129, 0.0
      %vm1175 = vcmp.ge.f32.partialorder %v1132, 0.0
      %vm1176 = vcmp.ge.f32.partialorder %v1135, 0.0
      %vm1177 = vcmp.ge.f32.partialorder %v1138, 0.0
      %vm1178 = vcmp.ge.f32.partialorder %v1141, 0.0
      %vm1179 = vcmp.ge.f32.partialorder %v1144, 0.0
      %vm1180 = vcmp.ge.f32.partialorder %v1147, 0.0
      %vm1181 = vcmp.ge.f32.partialorder %v1150, 0.0
      %vm1182 = vcmp.ge.f32.partialorder %v1153, 0.0
      %vm1183 = vcmp.ge.f32.partialorder %v1156, 0.0
      %vm1184 = vcmp.ge.f32.partialorder %v1159, 0.0
      %vm1185 = vcmp.ge.f32.partialorder %v1162, 0.0
      %vm1186 = vcmp.ge.f32.partialorder %v1165, 0.0
      %vm1187 = vcmp.ge.f32.partialorder %v1168, 0.0
      %v1188 = vmul.f32 %v1117, 0.01
      %v1189 = vmul.f32 %v1120, 0.01
      %v1190 = vmul.f32 %v1123, 0.01
      %v1191 = vmul.f32 %v1126, 0.01
      %v1192 = vmul.f32 %v1129, 0.01
      %v1193 = vmul.f32 %v1132, 0.01
      %v1194 = vmul.f32 %v1135, 0.01
      %v1195 = vmul.f32 %v1138, 0.01
      %v1196 = vmul.f32 %v1141, 0.01
      %v1197 = vmul.f32 %v1144, 0.01
      %v1198 = vmul.f32 %v1147, 0.01
      %v1199 = vmul.f32 %v1150, 0.01
      %v1200 = vmul.f32 %v1153, 0.01
      %v1201 = vmul.f32 %v1156, 0.01
      %v1202 = vmul.f32 %v1159, 0.01
      %v1203 = vmul.f32 %v1162, 0.01
      %v1204 = vmul.f32 %v1165, 0.01
      %v1205 = vmul.f32 %v1168, 0.01
      %v1206 = vsel %vm1170, %v1117, %v1188
      %v1207 = vsel %vm1171, %v1120, %v1189
      %v1208 = vsel %vm1172, %v1123, %v1190
      %v1209 = vsel %vm1173, %v1126, %v1191
      %v1210 = vsel %vm1174, %v1129, %v1192
      %v1211 = vsel %vm1175, %v1132, %v1193
      %v1212 = vsel %vm1176, %v1135, %v1194
      %v1213 = vsel %vm1177, %v1138, %v1195
      %v1214 = vsel %vm1178, %v1141, %v1196
      %v1215 = vsel %vm1179, %v1144, %v1197
      %v1216 = vsel %vm1180, %v1147, %v1198
      %v1217 = vsel %vm1181, %v1150, %v1199
      %v1218 = vsel %vm1182, %v1153, %v1200
      %v1219 = vsel %vm1183, %v1156, %v1201
      %v1220 = vsel %vm1184, %v1159, %v1202
      %v1221 = vsel %vm1185, %v1162, %v1203
      %v1222 = vsel %vm1186, %v1165, %v1204
      %v1223 = vsel %vm1187, %v1168, %v1205
      %v1224 = vlaneseq
      %v1225 = vshrl.u32 %v1224, 7
      %v1226 = vadd.s32 %v1225, 8
      %v1227 = vadd.s32 %v1225, 16
      %v1228 = vadd.s32 %v1225, 24
      %v1229 = vadd.s32 %v1225, 32
      %v1230 = vadd.s32 %v1225, 40
      %v1231 = vadd.s32 %v1225, 48
      %v1232 = vadd.s32 %v1225, 56
      %v1233 = vadd.s32 %v1225, 64
      %v1234 = vadd.s32 %v1225, 72
      %v1235 = vadd.s32 %v1225, 80
      %v1236 = vadd.s32 %v1225, 88
      %v1237 = vadd.s32 %v1225, 96
      %v1238 = vadd.s32 %v1225, 104
      %v1239 = vadd.s32 %v1225, 112
      %v1240 = vadd.s32 %v1225, 120
      %v1241 = vadd.s32 %v1225, 128
      %v1242 = vadd.s32 %v1225, 136
      %vm1243 = vcmp.lt.s32.totalorder %v1225, 0
      %v1244 = vsub.s32 0, %v1225
      %v1245 = vsel %vm1243, %v1244, %v1225
      %v1246 = vand.u32 %v1245, 65535
      %v1247 = vshrl.u32 %v1245, 16
      %v1249 = vmul.u32 %v1246, 14564
      %v1250 = vmul.u32 %v1246, 58254
      %v1251 = vmul.u32 %v1247, 14564
      %v1252 = vmul.u32 %v1247, 58254
      %v1253 = vshll.u32 %v1250, 16
      %v1254 = vshrl.u32 %v1250, 16
      %v1255 = vshll.u32 %v1251, 16
      %v1256 = vshrl.u32 %v1251, 16
      %vm1257 = vc.u32 %v1249, %v1253
      %v1258 = vsel %vm1257, 1, 0
      %v1259 = vadd.s32 %v1249, %v1253
      %v1260 = vadd.s32 %v1252, %v1258
      %vm1261 = vc.u32 %v1259, %v1255
      %v1262 = vsel %vm1261, 1, 0
      %v1263 = vadd.s32 %v1259, %v1255
      %v1264 = vadd.s32 %v1260, %v1262
      %v1265 = vadd.s32 %v1264, %v1254
      %v1266 = vadd.s32 %v1265, %v1256
      %v1267 = vshrl.u32 %v1266, 4
      %v1268 = vmul.u32 %v1267, 18
      %v1269 = vsub.s32 %v1245, %v1268
      %v1270 = vsub.s32 0, %v1269
      %v1271 = vsel %vm1243, %v1270, %v1269
      %vm1272 = vcmp.lt.s32.totalorder %v1226, 0
      %v1273 = vsub.s32 0, %v1226
      %v1274 = vsel %vm1272, %v1273, %v1226
      %v1275 = vand.u32 %v1274, 65535
      %v1276 = vshrl.u32 %v1274, 16
      %v1278 = vmul.u32 %v1275, 14564
      %v1279 = vmul.u32 %v1275, 58254
      %v1280 = vmul.u32 %v1276, 14564
      %v1281 = vmul.u32 %v1276, 58254
      %v1282 = vshll.u32 %v1279, 16
      %v1283 = vshrl.u32 %v1279, 16
      %v1284 = vshll.u32 %v1280, 16
      %v1285 = vshrl.u32 %v1280, 16
      %vm1286 = vc.u32 %v1278, %v1282
      %v1287 = vsel %vm1286, 1, 0
      %v1288 = vadd.s32 %v1278, %v1282
      %v1289 = vadd.s32 %v1281, %v1287
      %vm1290 = vc.u32 %v1288, %v1284
      %v1291 = vsel %vm1290, 1, 0
      %v1292 = vadd.s32 %v1288, %v1284
      %v1293 = vadd.s32 %v1289, %v1291
      %v1294 = vadd.s32 %v1293, %v1283
      %v1295 = vadd.s32 %v1294, %v1285
      %v1296 = vshrl.u32 %v1295, 4
      %v1297 = vmul.u32 %v1296, 18
      %v1298 = vsub.s32 %v1274, %v1297
      %v1299 = vsub.s32 0, %v1298
      %v1300 = vsel %vm1272, %v1299, %v1298
      %vm1301 = vcmp.lt.s32.totalorder %v1227, 0
      %v1302 = vsub.s32 0, %v1227
      %v1303 = vsel %vm1301, %v1302, %v1227
      %v1304 = vand.u32 %v1303, 65535
      %v1305 = vshrl.u32 %v1303, 16
      %v1307 = vmul.u32 %v1304, 14564
      %v1308 = vmul.u32 %v1304, 58254
      %v1309 = vmul.u32 %v1305, 14564
      %v1310 = vmul.u32 %v1305, 58254
      %v1311 = vshll.u32 %v1308, 16
      %v1312 = vshrl.u32 %v1308, 16
      %v1313 = vshll.u32 %v1309, 16
      %v1314 = vshrl.u32 %v1309, 16
      %vm1315 = vc.u32 %v1307, %v1311
      %v1316 = vsel %vm1315, 1, 0
      %v1317 = vadd.s32 %v1307, %v1311
      %v1318 = vadd.s32 %v1310, %v1316
      %vm1319 = vc.u32 %v1317, %v1313
      %v1320 = vsel %vm1319, 1, 0
      %v1321 = vadd.s32 %v1317, %v1313
      %v1322 = vadd.s32 %v1318, %v1320
      %v1323 = vadd.s32 %v1322, %v1312
      %v1324 = vadd.s32 %v1323, %v1314
      %v1325 = vshrl.u32 %v1324, 4
      %v1326 = vmul.u32 %v1325, 18
      %v1327 = vsub.s32 %v1303, %v1326
      %v1328 = vsub.s32 0, %v1327
      %v1329 = vsel %vm1301, %v1328, %v1327
      %vm1330 = vcmp.lt.s32.totalorder %v1228, 0
      %v1331 = vsub.s32 0, %v1228
      %v1332 = vsel %vm1330, %v1331, %v1228
      %v1333 = vand.u32 %v1332, 65535
      %v1334 = vshrl.u32 %v1332, 16
      %v1336 = vmul.u32 %v1333, 14564
      %v1337 = vmul.u32 %v1333, 58254
      %v1338 = vmul.u32 %v1334, 14564
      %v1339 = vmul.u32 %v1334, 58254
      %v1340 = vshll.u32 %v1337, 16
      %v1341 = vshrl.u32 %v1337, 16
      %v1342 = vshll.u32 %v1338, 16
      %v1343 = vshrl.u32 %v1338, 16
      %vm1344 = vc.u32 %v1336, %v1340
      %v1345 = vsel %vm1344, 1, 0
      %v1346 = vadd.s32 %v1336, %v1340
      %v1347 = vadd.s32 %v1339, %v1345
      %vm1348 = vc.u32 %v1346, %v1342
      %v1349 = vsel %vm1348, 1, 0
      %v1350 = vadd.s32 %v1346, %v1342
      %v1351 = vadd.s32 %v1347, %v1349
      %v1352 = vadd.s32 %v1351, %v1341
      %v1353 = vadd.s32 %v1352, %v1343
      %v1354 = vshrl.u32 %v1353, 4
      %v1355 = vmul.u32 %v1354, 18
      %v1356 = vsub.s32 %v1332, %v1355
      %v1357 = vsub.s32 0, %v1356
      %v1358 = vsel %vm1330, %v1357, %v1356
      %vm1359 = vcmp.lt.s32.totalorder %v1229, 0
      %v1360 = vsub.s32 0, %v1229
      %v1361 = vsel %vm1359, %v1360, %v1229
      %v1362 = vand.u32 %v1361, 65535
      %v1363 = vshrl.u32 %v1361, 16
      %v1365 = vmul.u32 %v1362, 14564
      %v1366 = vmul.u32 %v1362, 58254
      %v1367 = vmul.u32 %v1363, 14564
      %v1368 = vmul.u32 %v1363, 58254
      %v1369 = vshll.u32 %v1366, 16
      %v1370 = vshrl.u32 %v1366, 16
      %v1371 = vshll.u32 %v1367, 16
      %v1372 = vshrl.u32 %v1367, 16
      %vm1373 = vc.u32 %v1365, %v1369
      %v1374 = vsel %vm1373, 1, 0
      %v1375 = vadd.s32 %v1365, %v1369
      %v1376 = vadd.s32 %v1368, %v1374
      %vm1377 = vc.u32 %v1375, %v1371
      %v1378 = vsel %vm1377, 1, 0
      %v1379 = vadd.s32 %v1375, %v1371
      %v1380 = vadd.s32 %v1376, %v1378
      %v1381 = vadd.s32 %v1380, %v1370
      %v1382 = vadd.s32 %v1381, %v1372
      %v1383 = vshrl.u32 %v1382, 4
      %v1384 = vmul.u32 %v1383, 18
      %v1385 = vsub.s32 %v1361, %v1384
      %v1386 = vsub.s32 0, %v1385
      %v1387 = vsel %vm1359, %v1386, %v1385
      %vm1388 = vcmp.lt.s32.totalorder %v1230, 0
      %v1389 = vsub.s32 0, %v1230
      %v1390 = vsel %vm1388, %v1389, %v1230
      %v1391 = vand.u32 %v1390, 65535
      %v1392 = vshrl.u32 %v1390, 16
      %v1394 = vmul.u32 %v1391, 14564
      %v1395 = vmul.u32 %v1391, 58254
      %v1396 = vmul.u32 %v1392, 14564
      %v1397 = vmul.u32 %v1392, 58254
      %v1398 = vshll.u32 %v1395, 16
      %v1399 = vshrl.u32 %v1395, 16
      %v1400 = vshll.u32 %v1396, 16
      %v1401 = vshrl.u32 %v1396, 16
      %vm1402 = vc.u32 %v1394, %v1398
      %v1403 = vsel %vm1402, 1, 0
      %v1404 = vadd.s32 %v1394, %v1398
      %v1405 = vadd.s32 %v1397, %v1403
      %vm1406 = vc.u32 %v1404, %v1400
      %v1407 = vsel %vm1406, 1, 0
      %v1408 = vadd.s32 %v1404, %v1400
      %v1409 = vadd.s32 %v1405, %v1407
      %v1410 = vadd.s32 %v1409, %v1399
      %v1411 = vadd.s32 %v1410, %v1401
      %v1412 = vshrl.u32 %v1411, 4
      %v1413 = vmul.u32 %v1412, 18
      %v1414 = vsub.s32 %v1390, %v1413
      %v1415 = vsub.s32 0, %v1414
      %v1416 = vsel %vm1388, %v1415, %v1414
      %vm1417 = vcmp.lt.s32.totalorder %v1231, 0
      %v1418 = vsub.s32 0, %v1231
      %v1419 = vsel %vm1417, %v1418, %v1231
      %v1420 = vand.u32 %v1419, 65535
      %v1421 = vshrl.u32 %v1419, 16
      %v1423 = vmul.u32 %v1420, 14564
      %v1424 = vmul.u32 %v1420, 58254
      %v1425 = vmul.u32 %v1421, 14564
      %v1426 = vmul.u32 %v1421, 58254
      %v1427 = vshll.u32 %v1424, 16
      %v1428 = vshrl.u32 %v1424, 16
      %v1429 = vshll.u32 %v1425, 16
      %v1430 = vshrl.u32 %v1425, 16
      %vm1431 = vc.u32 %v1423, %v1427
      %v1432 = vsel %vm1431, 1, 0
      %v1433 = vadd.s32 %v1423, %v1427
      %v1434 = vadd.s32 %v1426, %v1432
      %vm1435 = vc.u32 %v1433, %v1429
      %v1436 = vsel %vm1435, 1, 0
      %v1437 = vadd.s32 %v1433, %v1429
      %v1438 = vadd.s32 %v1434, %v1436
      %v1439 = vadd.s32 %v1438, %v1428
      %v1440 = vadd.s32 %v1439, %v1430
      %v1441 = vshrl.u32 %v1440, 4
      %v1442 = vmul.u32 %v1441, 18
      %v1443 = vsub.s32 %v1419, %v1442
      %v1444 = vsub.s32 0, %v1443
      %v1445 = vsel %vm1417, %v1444, %v1443
      %vm1446 = vcmp.lt.s32.totalorder %v1232, 0
      %v1447 = vsub.s32 0, %v1232
      %v1448 = vsel %vm1446, %v1447, %v1232
      %v1449 = vand.u32 %v1448, 65535
      %v1450 = vshrl.u32 %v1448, 16
      %v1452 = vmul.u32 %v1449, 14564
      %v1453 = vmul.u32 %v1449, 58254
      %v1454 = vmul.u32 %v1450, 14564
      %v1455 = vmul.u32 %v1450, 58254
      %v1456 = vshll.u32 %v1453, 16
      %v1457 = vshrl.u32 %v1453, 16
      %v1458 = vshll.u32 %v1454, 16
      %v1459 = vshrl.u32 %v1454, 16
      %vm1460 = vc.u32 %v1452, %v1456
      %v1461 = vsel %vm1460, 1, 0
      %v1462 = vadd.s32 %v1452, %v1456
      %v1463 = vadd.s32 %v1455, %v1461
      %vm1464 = vc.u32 %v1462, %v1458
      %v1465 = vsel %vm1464, 1, 0
      %v1466 = vadd.s32 %v1462, %v1458
      %v1467 = vadd.s32 %v1463, %v1465
      %v1468 = vadd.s32 %v1467, %v1457
      %v1469 = vadd.s32 %v1468, %v1459
      %v1470 = vshrl.u32 %v1469, 4
      %v1471 = vmul.u32 %v1470, 18
      %v1472 = vsub.s32 %v1448, %v1471
      %v1473 = vsub.s32 0, %v1472
      %v1474 = vsel %vm1446, %v1473, %v1472
      %vm1475 = vcmp.lt.s32.totalorder %v1233, 0
      %v1476 = vsub.s32 0, %v1233
      %v1477 = vsel %vm1475, %v1476, %v1233
      %v1478 = vand.u32 %v1477, 65535
      %v1479 = vshrl.u32 %v1477, 16
      %v1481 = vmul.u32 %v1478, 14564
      %v1482 = vmul.u32 %v1478, 58254
      %v1483 = vmul.u32 %v1479, 14564
      %v1484 = vmul.u32 %v1479, 58254
      %v1485 = vshll.u32 %v1482, 16
      %v1486 = vshrl.u32 %v1482, 16
      %v1487 = vshll.u32 %v1483, 16
      %v1488 = vshrl.u32 %v1483, 16
      %vm1489 = vc.u32 %v1481, %v1485
      %v1490 = vsel %vm1489, 1, 0
      %v1491 = vadd.s32 %v1481, %v1485
      %v1492 = vadd.s32 %v1484, %v1490
      %vm1493 = vc.u32 %v1491, %v1487
      %v1494 = vsel %vm1493, 1, 0
      %v1495 = vadd.s32 %v1491, %v1487
      %v1496 = vadd.s32 %v1492, %v1494
      %v1497 = vadd.s32 %v1496, %v1486
      %v1498 = vadd.s32 %v1497, %v1488
      %v1499 = vshrl.u32 %v1498, 4
      %v1500 = vmul.u32 %v1499, 18
      %v1501 = vsub.s32 %v1477, %v1500
      %v1502 = vsub.s32 0, %v1501
      %v1503 = vsel %vm1475, %v1502, %v1501
      %vm1504 = vcmp.lt.s32.totalorder %v1234, 0
      %v1505 = vsub.s32 0, %v1234
      %v1506 = vsel %vm1504, %v1505, %v1234
      %v1507 = vand.u32 %v1506, 65535
      %v1508 = vshrl.u32 %v1506, 16
      %v1510 = vmul.u32 %v1507, 14564
      %v1511 = vmul.u32 %v1507, 58254
      %v1512 = vmul.u32 %v1508, 14564
      %v1513 = vmul.u32 %v1508, 58254
      %v1514 = vshll.u32 %v1511, 16
      %v1515 = vshrl.u32 %v1511, 16
      %v1516 = vshll.u32 %v1512, 16
      %v1517 = vshrl.u32 %v1512, 16
      %vm1518 = vc.u32 %v1510, %v1514
      %v1519 = vsel %vm1518, 1, 0
      %v1520 = vadd.s32 %v1510, %v1514
      %v1521 = vadd.s32 %v1513, %v1519
      %vm1522 = vc.u32 %v1520, %v1516
      %v1523 = vsel %vm1522, 1, 0
      %v1524 = vadd.s32 %v1520, %v1516
      %v1525 = vadd.s32 %v1521, %v1523
      %v1526 = vadd.s32 %v1525, %v1515
      %v1527 = vadd.s32 %v1526, %v1517
      %v1528 = vshrl.u32 %v1527, 4
      %v1529 = vmul.u32 %v1528, 18
      %v1530 = vsub.s32 %v1506, %v1529
      %v1531 = vsub.s32 0, %v1530
      %v1532 = vsel %vm1504, %v1531, %v1530
      %vm1533 = vcmp.lt.s32.totalorder %v1235, 0
      %v1534 = vsub.s32 0, %v1235
      %v1535 = vsel %vm1533, %v1534, %v1235
      %v1536 = vand.u32 %v1535, 65535
      %v1537 = vshrl.u32 %v1535, 16
      %v1539 = vmul.u32 %v1536, 14564
      %v1540 = vmul.u32 %v1536, 58254
      %v1541 = vmul.u32 %v1537, 14564
      %v1542 = vmul.u32 %v1537, 58254
      %v1543 = vshll.u32 %v1540, 16
      %v1544 = vshrl.u32 %v1540, 16
      %v1545 = vshll.u32 %v1541, 16
      %v1546 = vshrl.u32 %v1541, 16
      %vm1547 = vc.u32 %v1539, %v1543
      %v1548 = vsel %vm1547, 1, 0
      %v1549 = vadd.s32 %v1539, %v1543
      %v1550 = vadd.s32 %v1542, %v1548
      %vm1551 = vc.u32 %v1549, %v1545
      %v1552 = vsel %vm1551, 1, 0
      %v1553 = vadd.s32 %v1549, %v1545
      %v1554 = vadd.s32 %v1550, %v1552
      %v1555 = vadd.s32 %v1554, %v1544
      %v1556 = vadd.s32 %v1555, %v1546
      %v1557 = vshrl.u32 %v1556, 4
      %v1558 = vmul.u32 %v1557, 18
      %v1559 = vsub.s32 %v1535, %v1558
      %v1560 = vsub.s32 0, %v1559
      %v1561 = vsel %vm1533, %v1560, %v1559
      %vm1562 = vcmp.lt.s32.totalorder %v1236, 0
      %v1563 = vsub.s32 0, %v1236
      %v1564 = vsel %vm1562, %v1563, %v1236
      %v1565 = vand.u32 %v1564, 65535
      %v1566 = vshrl.u32 %v1564, 16
      %v1568 = vmul.u32 %v1565, 14564
      %v1569 = vmul.u32 %v1565, 58254
      %v1570 = vmul.u32 %v1566, 14564
      %v1571 = vmul.u32 %v1566, 58254
      %v1572 = vshll.u32 %v1569, 16
      %v1573 = vshrl.u32 %v1569, 16
      %v1574 = vshll.u32 %v1570, 16
      %v1575 = vshrl.u32 %v1570, 16
      %vm1576 = vc.u32 %v1568, %v1572
      %v1577 = vsel %vm1576, 1, 0
      %v1578 = vadd.s32 %v1568, %v1572
      %v1579 = vadd.s32 %v1571, %v1577
      %vm1580 = vc.u32 %v1578, %v1574
      %v1581 = vsel %vm1580, 1, 0
      %v1582 = vadd.s32 %v1578, %v1574
      %v1583 = vadd.s32 %v1579, %v1581
      %v1584 = vadd.s32 %v1583, %v1573
      %v1585 = vadd.s32 %v1584, %v1575
      %v1586 = vshrl.u32 %v1585, 4
      %v1587 = vmul.u32 %v1586, 18
      %v1588 = vsub.s32 %v1564, %v1587
      %v1589 = vsub.s32 0, %v1588
      %v1590 = vsel %vm1562, %v1589, %v1588
      %vm1591 = vcmp.lt.s32.totalorder %v1237, 0
      %v1592 = vsub.s32 0, %v1237
      %v1593 = vsel %vm1591, %v1592, %v1237
      %v1594 = vand.u32 %v1593, 65535
      %v1595 = vshrl.u32 %v1593, 16
      %v1597 = vmul.u32 %v1594, 14564
      %v1598 = vmul.u32 %v1594, 58254
      %v1599 = vmul.u32 %v1595, 14564
      %v1600 = vmul.u32 %v1595, 58254
      %v1601 = vshll.u32 %v1598, 16
      %v1602 = vshrl.u32 %v1598, 16
      %v1603 = vshll.u32 %v1599, 16
      %v1604 = vshrl.u32 %v1599, 16
      %vm1605 = vc.u32 %v1597, %v1601
      %v1606 = vsel %vm1605, 1, 0
      %v1607 = vadd.s32 %v1597, %v1601
      %v1608 = vadd.s32 %v1600, %v1606
      %vm1609 = vc.u32 %v1607, %v1603
      %v1610 = vsel %vm1609, 1, 0
      %v1611 = vadd.s32 %v1607, %v1603
      %v1612 = vadd.s32 %v1608, %v1610
      %v1613 = vadd.s32 %v1612, %v1602
      %v1614 = vadd.s32 %v1613, %v1604
      %v1615 = vshrl.u32 %v1614, 4
      %v1616 = vmul.u32 %v1615, 18
      %v1617 = vsub.s32 %v1593, %v1616
      %v1618 = vsub.s32 0, %v1617
      %v1619 = vsel %vm1591, %v1618, %v1617
      %vm1620 = vcmp.lt.s32.totalorder %v1238, 0
      %v1621 = vsub.s32 0, %v1238
      %v1622 = vsel %vm1620, %v1621, %v1238
      %v1623 = vand.u32 %v1622, 65535
      %v1624 = vshrl.u32 %v1622, 16
      %v1626 = vmul.u32 %v1623, 14564
      %v1627 = vmul.u32 %v1623, 58254
      %v1628 = vmul.u32 %v1624, 14564
      %v1629 = vmul.u32 %v1624, 58254
      %v1630 = vshll.u32 %v1627, 16
      %v1631 = vshrl.u32 %v1627, 16
      %v1632 = vshll.u32 %v1628, 16
      %v1633 = vshrl.u32 %v1628, 16
      %vm1634 = vc.u32 %v1626, %v1630
      %v1635 = vsel %vm1634, 1, 0
      %v1636 = vadd.s32 %v1626, %v1630
      %v1637 = vadd.s32 %v1629, %v1635
      %vm1638 = vc.u32 %v1636, %v1632
      %v1639 = vsel %vm1638, 1, 0
      %v1640 = vadd.s32 %v1636, %v1632
      %v1641 = vadd.s32 %v1637, %v1639
      %v1642 = vadd.s32 %v1641, %v1631
      %v1643 = vadd.s32 %v1642, %v1633
      %v1644 = vshrl.u32 %v1643, 4
      %v1645 = vmul.u32 %v1644, 18
      %v1646 = vsub.s32 %v1622, %v1645
      %v1647 = vsub.s32 0, %v1646
      %v1648 = vsel %vm1620, %v1647, %v1646
      %vm1649 = vcmp.lt.s32.totalorder %v1239, 0
      %v1650 = vsub.s32 0, %v1239
      %v1651 = vsel %vm1649, %v1650, %v1239
      %v1652 = vand.u32 %v1651, 65535
      %v1653 = vshrl.u32 %v1651, 16
      %v1655 = vmul.u32 %v1652, 14564
      %v1656 = vmul.u32 %v1652, 58254
      %v1657 = vmul.u32 %v1653, 14564
      %v1658 = vmul.u32 %v1653, 58254
      %v1659 = vshll.u32 %v1656, 16
      %v1660 = vshrl.u32 %v1656, 16
      %v1661 = vshll.u32 %v1657, 16
      %v1662 = vshrl.u32 %v1657, 16
      %vm1663 = vc.u32 %v1655, %v1659
      %v1664 = vsel %vm1663, 1, 0
      %v1665 = vadd.s32 %v1655, %v1659
      %v1666 = vadd.s32 %v1658, %v1664
      %vm1667 = vc.u32 %v1665, %v1661
      %v1668 = vsel %vm1667, 1, 0
      %v1669 = vadd.s32 %v1665, %v1661
      %v1670 = vadd.s32 %v1666, %v1668
      %v1671 = vadd.s32 %v1670, %v1660
      %v1672 = vadd.s32 %v1671, %v1662
      %v1673 = vshrl.u32 %v1672, 4
      %v1674 = vmul.u32 %v1673, 18
      %v1675 = vsub.s32 %v1651, %v1674
      %v1676 = vsub.s32 0, %v1675
      %v1677 = vsel %vm1649, %v1676, %v1675
      %vm1678 = vcmp.lt.s32.totalorder %v1240, 0
      %v1679 = vsub.s32 0, %v1240
      %v1680 = vsel %vm1678, %v1679, %v1240
      %v1681 = vand.u32 %v1680, 65535
      %v1682 = vshrl.u32 %v1680, 16
      %v1684 = vmul.u32 %v1681, 14564
      %v1685 = vmul.u32 %v1681, 58254
      %v1686 = vmul.u32 %v1682, 14564
      %v1687 = vmul.u32 %v1682, 58254
      %v1688 = vshll.u32 %v1685, 16
      %v1689 = vshrl.u32 %v1685, 16
      %v1690 = vshll.u32 %v1686, 16
      %v1691 = vshrl.u32 %v1686, 16
      %vm1692 = vc.u32 %v1684, %v1688
      %v1693 = vsel %vm1692, 1, 0
      %v1694 = vadd.s32 %v1684, %v1688
      %v1695 = vadd.s32 %v1687, %v1693
      %vm1696 = vc.u32 %v1694, %v1690
      %v1697 = vsel %vm1696, 1, 0
      %v1698 = vadd.s32 %v1694, %v1690
      %v1699 = vadd.s32 %v1695, %v1697
      %v1700 = vadd.s32 %v1699, %v1689
      %v1701 = vadd.s32 %v1700, %v1691
      %v1702 = vshrl.u32 %v1701, 4
      %v1703 = vmul.u32 %v1702, 18
      %v1704 = vsub.s32 %v1680, %v1703
      %v1705 = vsub.s32 0, %v1704
      %v1706 = vsel %vm1678, %v1705, %v1704
      %vm1707 = vcmp.lt.s32.totalorder %v1241, 0
      %v1708 = vsub.s32 0, %v1241
      %v1709 = vsel %vm1707, %v1708, %v1241
      %v1710 = vand.u32 %v1709, 65535
      %v1711 = vshrl.u32 %v1709, 16
      %v1713 = vmul.u32 %v1710, 14564
      %v1714 = vmul.u32 %v1710, 58254
      %v1715 = vmul.u32 %v1711, 14564
      %v1716 = vmul.u32 %v1711, 58254
      %v1717 = vshll.u32 %v1714, 16
      %v1718 = vshrl.u32 %v1714, 16
      %v1719 = vshll.u32 %v1715, 16
      %v1720 = vshrl.u32 %v1715, 16
      %vm1721 = vc.u32 %v1713, %v1717
      %v1722 = vsel %vm1721, 1, 0
      %v1723 = vadd.s32 %v1713, %v1717
      %v1724 = vadd.s32 %v1716, %v1722
      %vm1725 = vc.u32 %v1723, %v1719
      %v1726 = vsel %vm1725, 1, 0
      %v1727 = vadd.s32 %v1723, %v1719
      %v1728 = vadd.s32 %v1724, %v1726
      %v1729 = vadd.s32 %v1728, %v1718
      %v1730 = vadd.s32 %v1729, %v1720
      %v1731 = vshrl.u32 %v1730, 4
      %v1732 = vmul.u32 %v1731, 18
      %v1733 = vsub.s32 %v1709, %v1732
      %v1734 = vsub.s32 0, %v1733
      %v1735 = vsel %vm1707, %v1734, %v1733
      %vm1736 = vcmp.lt.s32.totalorder %v1242, 0
      %v1737 = vsub.s32 0, %v1242
      %v1738 = vsel %vm1736, %v1737, %v1242
      %v1739 = vand.u32 %v1738, 65535
      %v1740 = vshrl.u32 %v1738, 16
      %v1742 = vmul.u32 %v1739, 14564
      %v1743 = vmul.u32 %v1739, 58254
      %v1744 = vmul.u32 %v1740, 14564
      %v1745 = vmul.u32 %v1740, 58254
      %v1746 = vshll.u32 %v1743, 16
      %v1747 = vshrl.u32 %v1743, 16
      %v1748 = vshll.u32 %v1744, 16
      %v1749 = vshrl.u32 %v1744, 16
      %vm1750 = vc.u32 %v1742, %v1746
      %v1751 = vsel %vm1750, 1, 0
      %v1752 = vadd.s32 %v1742, %v1746
      %v1753 = vadd.s32 %v1745, %v1751
      %vm1754 = vc.u32 %v1752, %v1748
      %v1755 = vsel %vm1754, 1, 0
      %v1756 = vadd.s32 %v1752, %v1748
      %v1757 = vadd.s32 %v1753, %v1755
      %v1758 = vadd.s32 %v1757, %v1747
      %v1759 = vadd.s32 %v1758, %v1749
      %v1760 = vshrl.u32 %v1759, 4
      %v1761 = vmul.u32 %v1760, 18
      %v1762 = vsub.s32 %v1738, %v1761
      %v1763 = vsub.s32 0, %v1762
      %v1764 = vsel %vm1736, %v1763, %v1762
      %vm1765 = vcmp.ne.s32.totalorder %v1271, 0
      %vm1766 = vcmp.ne.s32.totalorder %v1300, 0
      %vm1767 = vcmp.ne.s32.totalorder %v1329, 0
      %vm1768 = vcmp.ne.s32.totalorder %v1358, 0
      %vm1769 = vcmp.ne.s32.totalorder %v1387, 0
      %vm1770 = vcmp.ne.s32.totalorder %v1416, 0
      %vm1771 = vcmp.ne.s32.totalorder %v1445, 0
      %vm1772 = vcmp.ne.s32.totalorder %v1474, 0
      %vm1773 = vcmp.ne.s32.totalorder %v1503, 0
      %vm1774 = vcmp.ne.s32.totalorder %v1532, 0
      %vm1775 = vcmp.ne.s32.totalorder %v1561, 0
      %vm1776 = vcmp.ne.s32.totalorder %v1590, 0
      %vm1777 = vcmp.ne.s32.totalorder %v1619, 0
      %vm1778 = vcmp.ne.s32.totalorder %v1648, 0
      %vm1779 = vcmp.ne.s32.totalorder %v1677, 0
      %vm1780 = vcmp.ne.s32.totalorder %v1706, 0
      %vm1781 = vcmp.ne.s32.totalorder %v1735, 0
      %vm1782 = vcmp.ne.s32.totalorder %v1764, 0
      %vm1783 = vcmp.lt.s32.totalorder %v1271, 0
      %vm1784 = vcmp.lt.s32.totalorder %v1300, 0
      %vm1785 = vcmp.lt.s32.totalorder %v1329, 0
      %vm1786 = vcmp.lt.s32.totalorder %v1358, 0
      %vm1787 = vcmp.lt.s32.totalorder %v1387, 0
      %vm1788 = vcmp.lt.s32.totalorder %v1416, 0
      %vm1789 = vcmp.lt.s32.totalorder %v1445, 0
      %vm1790 = vcmp.lt.s32.totalorder %v1474, 0
      %vm1791 = vcmp.lt.s32.totalorder %v1503, 0
      %vm1792 = vcmp.lt.s32.totalorder %v1532, 0
      %vm1793 = vcmp.lt.s32.totalorder %v1561, 0
      %vm1794 = vcmp.lt.s32.totalorder %v1590, 0
      %vm1795 = vcmp.lt.s32.totalorder %v1619, 0
      %vm1796 = vcmp.lt.s32.totalorder %v1648, 0
      %vm1797 = vcmp.lt.s32.totalorder %v1677, 0
      %vm1798 = vcmp.lt.s32.totalorder %v1706, 0
      %vm1799 = vcmp.lt.s32.totalorder %v1735, 0
      %vm1800 = vcmp.lt.s32.totalorder %v1764, 0
      %vm1801 = vmand %vm1783, %vm1765
      %vm1802 = vmand %vm1784, %vm1766
      %vm1803 = vmand %vm1785, %vm1767
      %vm1804 = vmand %vm1786, %vm1768
      %vm1805 = vmand %vm1787, %vm1769
      %vm1806 = vmand %vm1788, %vm1770
      %vm1807 = vmand %vm1789, %vm1771
      %vm1808 = vmand %vm1790, %vm1772
      %vm1809 = vmand %vm1791, %vm1773
      %vm1810 = vmand %vm1792, %vm1774
      %vm1811 = vmand %vm1793, %vm1775
      %vm1812 = vmand %vm1794, %vm1776
      %vm1813 = vmand %vm1795, %vm1777
      %vm1814 = vmand %vm1796, %vm1778
      %vm1815 = vmand %vm1797, %vm1779
      %vm1816 = vmand %vm1798, %vm1780
      %vm1817 = vmand %vm1799, %vm1781
      %vm1818 = vmand %vm1800, %vm1782
      %v1819 = vadd.s32 %v1271, 18
      %v1820 = vadd.s32 %v1300, 18
      %v1821 = vadd.s32 %v1329, 18
      %v1822 = vadd.s32 %v1358, 18
      %v1823 = vadd.s32 %v1387, 18
      %v1824 = vadd.s32 %v1416, 18
      %v1825 = vadd.s32 %v1445, 18
      %v1826 = vadd.s32 %v1474, 18
      %v1827 = vadd.s32 %v1503, 18
      %v1828 = vadd.s32 %v1532, 18
      %v1829 = vadd.s32 %v1561, 18
      %v1830 = vadd.s32 %v1590, 18
      %v1831 = vadd.s32 %v1619, 18
      %v1832 = vadd.s32 %v1648, 18
      %v1833 = vadd.s32 %v1677, 18
      %v1834 = vadd.s32 %v1706, 18
      %v1835 = vadd.s32 %v1735, 18
      %v1836 = vadd.s32 %v1764, 18
      %v1837 = vsel %vm1801, %v1819, %v1271
      %v1838 = vsel %vm1802, %v1820, %v1300
      %v1839 = vsel %vm1803, %v1821, %v1329
      %v1840 = vsel %vm1804, %v1822, %v1358
      %v1841 = vsel %vm1805, %v1823, %v1387
      %v1842 = vsel %vm1806, %v1824, %v1416
      %v1843 = vsel %vm1807, %v1825, %v1445
      %v1844 = vsel %vm1808, %v1826, %v1474
      %v1845 = vsel %vm1809, %v1827, %v1503
      %v1846 = vsel %vm1810, %v1828, %v1532
      %v1847 = vsel %vm1811, %v1829, %v1561
      %v1848 = vsel %vm1812, %v1830, %v1590
      %v1849 = vsel %vm1813, %v1831, %v1619
      %v1850 = vsel %vm1814, %v1832, %v1648
      %v1851 = vsel %vm1815, %v1833, %v1677
      %v1852 = vsel %vm1816, %v1834, %v1706
      %v1853 = vsel %vm1817, %v1835, %v1735
      %v1854 = vsel %vm1818, %v1836, %v1764
      %vm1855 = vcmp.lt.s32.totalorder %v1837, 16
      %vm1856 = vcmp.lt.s32.totalorder %v1838, 16
      %vm1857 = vcmp.lt.s32.totalorder %v1839, 16
      %vm1858 = vcmp.lt.s32.totalorder %v1840, 16
      %vm1859 = vcmp.lt.s32.totalorder %v1841, 16
      %vm1860 = vcmp.lt.s32.totalorder %v1842, 16
      %vm1861 = vcmp.lt.s32.totalorder %v1843, 16
      %vm1862 = vcmp.lt.s32.totalorder %v1844, 16
      %vm1863 = vcmp.lt.s32.totalorder %v1845, 16
      %vm1864 = vcmp.lt.s32.totalorder %v1846, 16
      %vm1865 = vcmp.lt.s32.totalorder %v1847, 16
      %vm1866 = vcmp.lt.s32.totalorder %v1848, 16
      %vm1867 = vcmp.lt.s32.totalorder %v1849, 16
      %vm1868 = vcmp.lt.s32.totalorder %v1850, 16
      %vm1869 = vcmp.lt.s32.totalorder %v1851, 16
      %vm1870 = vcmp.lt.s32.totalorder %v1852, 16
      %vm1871 = vcmp.lt.s32.totalorder %v1853, 16
      %vm1872 = vcmp.lt.s32.totalorder %v1854, 16
      %v1873 = vsel %vm1855, 1, 0
      %v1874 = vsel %vm1856, 1, 0
      %v1875 = vsel %vm1857, 1, 0
      %v1876 = vsel %vm1858, 1, 0
      %v1877 = vsel %vm1859, 1, 0
      %v1878 = vsel %vm1860, 1, 0
      %v1879 = vsel %vm1861, 1, 0
      %v1880 = vsel %vm1862, 1, 0
      %v1881 = vsel %vm1863, 1, 0
      %v1882 = vsel %vm1864, 1, 0
      %v1883 = vsel %vm1865, 1, 0
      %v1884 = vsel %vm1866, 1, 0
      %v1885 = vsel %vm1867, 1, 0
      %v1886 = vsel %vm1868, 1, 0
      %v1887 = vsel %vm1869, 1, 0
      %v1888 = vsel %vm1870, 1, 0
      %v1889 = vsel %vm1871, 1, 0
      %v1890 = vsel %vm1872, 1, 0
      %vm1891 = vcmp.eq.s32.totalorder %v1873, 1
      %vm1892 = vcmp.eq.s32.totalorder %v1874, 1
      %vm1893 = vcmp.eq.s32.totalorder %v1875, 1
      %vm1894 = vcmp.eq.s32.totalorder %v1876, 1
      %vm1895 = vcmp.eq.s32.totalorder %v1877, 1
      %vm1896 = vcmp.eq.s32.totalorder %v1878, 1
      %vm1897 = vcmp.eq.s32.totalorder %v1879, 1
      %vm1898 = vcmp.eq.s32.totalorder %v1880, 1
      %vm1899 = vcmp.eq.s32.totalorder %v1881, 1
      %vm1900 = vcmp.eq.s32.totalorder %v1882, 1
      %vm1901 = vcmp.eq.s32.totalorder %v1883, 1
      %vm1902 = vcmp.eq.s32.totalorder %v1884, 1
      %vm1903 = vcmp.eq.s32.totalorder %v1885, 1
      %vm1904 = vcmp.eq.s32.totalorder %v1886, 1
      %vm1905 = vcmp.eq.s32.totalorder %v1887, 1
      %vm1906 = vcmp.eq.s32.totalorder %v1888, 1
      %vm1907 = vcmp.eq.s32.totalorder %v1889, 1
      %vm1908 = vcmp.eq.s32.totalorder %v1890, 1
      %v1909 = vsel %vm1891, %v1206, 0.0
      %v1910 = vsel %vm1892, %v1207, 0.0
      %v1911 = vsel %vm1893, %v1208, 0.0
      %v1912 = vsel %vm1894, %v1209, 0.0
      %v1913 = vsel %vm1895, %v1210, 0.0
      %v1914 = vsel %vm1896, %v1211, 0.0
      %v1915 = vsel %vm1897, %v1212, 0.0
      %v1916 = vsel %vm1898, %v1213, 0.0
      %v1917 = vsel %vm1899, %v1214, 0.0
      %v1918 = vsel %vm1900, %v1215, 0.0
      %v1919 = vsel %vm1901, %v1216, 0.0
      %v1920 = vsel %vm1902, %v1217, 0.0
      %v1921 = vsel %vm1903, %v1218, 0.0
      %v1922 = vsel %vm1904, %v1219, 0.0
      %v1923 = vsel %vm1905, %v1220, 0.0
      %v1924 = vsel %vm1906, %v1221, 0.0
      %v1925 = vsel %vm1907, %v1222, 0.0
      %v1926 = vsel %vm1908, %v1223, 0.0
      %v1927 = vadd.f32 %v1909, %v1910
      %v1928 = vadd.f32 %v1927, %v1911
      %v1929 = vadd.f32 %v1928, %v1912
      %v1930 = vadd.f32 %v1929, %v1913
      %v1931 = vadd.f32 %v1930, %v1914
      %v1932 = vadd.f32 %v1931, %v1915
      %v1933 = vadd.f32 %v1932, %v1916
      %v1934 = vadd.f32 %v1933, %v1917
      %v1935 = vadd.f32 %v1934, %v1918
      %v1936 = vadd.f32 %v1935, %v1919
      %v1937 = vadd.f32 %v1936, %v1920
      %v1938 = vadd.f32 %v1937, %v1921
      %v1939 = vadd.f32 %v1938, %v1922
      %v1940 = vadd.f32 %v1939, %v1923
      %v1941 = vadd.f32 %v1940, %v1924
      %v1942 = vadd.f32 %v1941, %v1925
      %v1943 = vadd.f32 %v1942, %v1926
      %v1944 = vrot.slane %v1943, 4
      %v1945 = vadd.f32 %v1943, %v1944
      %v1946 = vrot.slane %v1945, 2
      %v1947 = vadd.f32 %v1945, %v1946
      %v1948 = vrot.slane %v1947, 1
      %v1949 = vadd.f32 %v1947, %v1948
      %v1950 = vmul.f32 %v1909, %v1909
      %v1951 = vmul.f32 %v1910, %v1910
      %v1952 = vmul.f32 %v1911, %v1911
      %v1953 = vmul.f32 %v1912, %v1912
      %v1954 = vmul.f32 %v1913, %v1913
      %v1955 = vmul.f32 %v1914, %v1914
      %v1956 = vmul.f32 %v1915, %v1915
      %v1957 = vmul.f32 %v1916, %v1916
      %v1958 = vmul.f32 %v1917, %v1917
      %v1959 = vmul.f32 %v1918, %v1918
      %v1960 = vmul.f32 %v1919, %v1919
      %v1961 = vmul.f32 %v1920, %v1920
      %v1962 = vmul.f32 %v1921, %v1921
      %v1963 = vmul.f32 %v1922, %v1922
      %v1964 = vmul.f32 %v1923, %v1923
      %v1965 = vmul.f32 %v1924, %v1924
      %v1966 = vmul.f32 %v1925, %v1925
      %v1967 = vmul.f32 %v1926, %v1926
      %v1968 = vadd.f32 %v1950, %v1951
      %v1969 = vadd.f32 %v1968, %v1952
      %v1970 = vadd.f32 %v1969, %v1953
      %v1971 = vadd.f32 %v1970, %v1954
      %v1972 = vadd.f32 %v1971, %v1955
      %v1973 = vadd.f32 %v1972, %v1956
      %v1974 = vadd.f32 %v1973, %v1957
      %v1975 = vadd.f32 %v1974, %v1958
      %v1976 = vadd.f32 %v1975, %v1959
      %v1977 = vadd.f32 %v1976, %v1960
      %v1978 = vadd.f32 %v1977, %v1961
      %v1979 = vadd.f32 %v1978, %v1962
      %v1980 = vadd.f32 %v1979, %v1963
      %v1981 = vadd.f32 %v1980, %v1964
      %v1982 = vadd.f32 %v1981, %v1965
      %v1983 = vadd.f32 %v1982, %v1966
      %v1984 = vadd.f32 %v1983, %v1967
      %v1985 = vrot.slane %v1984, 4
      %v1986 = vadd.f32 %v1984, %v1985
      %v1987 = vrot.slane %v1986, 2
      %v1988 = vadd.f32 %v1986, %v1987
      %v1989 = vrot.slane %v1988, 1
      %v1990 = vadd.f32 %v1988, %v1989
      %vm1991 = vcmp.eq.s32.totalorder %v1225, 0
      %v1992 = vsel %vm1991, %v1949, %v1990
      %1993 = vst [vmem:[%s204] sm:$0x3] %v1992
      %p1994 = scmp.lt.s32.totalorder %s18, 1
      %s1995 = scalar_select %p1994, %s18, 1
      %p1996 = scmp.lt.s32.totalorder %s19, 1
      %s1997 = scalar_select %p1996, %s19, 1
      %s1998 = smul.addr %s1995, 2
      %s1999 = sadd.s32 %s1997, %s1998
      %s2000 = smul.addr %s1999, 2
      %s2001 = scalar_lea.vmem %s3, %s2000
      // Predicated region
      $region33: #{cnn_block_no_maxpool.2} parent=31 // pred_check
        %p2002 = pneg %p116
      $region34: #{cnn_block_no_maxpool.2} parent=31 // pred_check_branch
        %2004 = sbr.rel (%p2002) target = $region36
      $region35: #{cnn_block_no_maxpool.2} parent=31 // pred_region
        _
      $region36: #{cnn_block_no_maxpool.2} parent=31 // pred_fallthru
        _
    $region32: #{cnn_block_no_maxpool.2} parent=5 // pred_fallthru
      _
    %p2005 = scmp.le.s32.totalorder 2, %s9
    // Predicated region
    $region37: #{cnn_block_no_maxpool.2} parent=5 // pred_check
      %p2006 = pneg %p2005
    $region38: #{cnn_block_no_maxpool.2} parent=5 // pred_check_branch
      %2008 = sbr.rel (%p2006) target = $region40
    $region39: #{cnn_block_no_maxpool.2} parent=5 // pred_region
      %s2009 = ssub.s32 %s9, 2
      // Predicated region
      $region41: #{cnn_block_no_maxpool.2} parent=39 // pred_check
        %p2010 = pneg %p122
      $region42: #{cnn_block_no_maxpool.2} parent=39 // pred_check_branch
        %2012 = sbr.rel (%p2010) target = $region44
      $region43: #{cnn_block_no_maxpool.2} parent=39 // pred_region
        %p2013 = scmp.lt.s32.totalorder %s20, 1
        %s2014 = scalar_select %p2013, %s20, 1
        %p2015 = scmp.lt.s32.totalorder %s21, 1
        %s2016 = scalar_select %p2015, %s21, 1
        %s2017 = smul.addr %s2014, 2
        %s2018 = sadd.s32 %s2016, %s2017
        %s2019 = smul.addr %s2018, 2
        %s2020 = scalar_lea.vmem %s3, %s2019
      $region44: #{cnn_block_no_maxpool.2} parent=39 // pred_fallthru
        _
    $region40: #{cnn_block_no_maxpool.2} parent=5 // pred_fallthru
      _
  $region6: #{cnn_block_no_maxpool.2} parent=0 // loop_footer
    %s13 = sadd.s32 1, %s9
  $region7: #{cnn_block_no_maxpool.2} parent=0 // loop_footer_branch
    %8 = sbr.rel target = $region3
  $region8: #{cnn_block_no_maxpool.2} parent=0 // loop_exit
    _

</llo_original>
